<compile_context>
chip_gen: v7x
topology: tpu7x:2x2x1
jax: 0.10.0
libtpu: 0.0.40
codegen_flags: <defaults>
</compile_context>

<pallas_src>
import jax
import jax.numpy as jnp
import numpy as np
from jax.experimental import pallas as pl
from jax.experimental.pallas import tpu as pltpu

D_MODEL = 32
N_HEAD = 4
HEAD_DIM = D_MODEL // N_HEAD
LN_EPS = 1e-5
INV_SCALE = 1.0 / (HEAD_DIM ** 0.5)
NEG_INF = -1e9

# weight-slab row indices (each weight zero-padded to (32, 128))
W_SA_QKV, W_SA_O, W_CA_Q, W_CA_KV, W_CA_O, W_FFN1 = range(6)
# vector-slab row indices (each vector zero-padded to 128 lanes)
(V_G1, V_BE1, V_SA_BQKV, V_SA_BO, V_G2, V_BE2, V_CA_BQ, V_CA_BKV, V_CA_BO,
 V_G3, V_BE3, V_FFN_B1, V_FFN_B2) = range(13)


# ----------------------------------- kernel -----------------------------------

def decoder_layer_kernel(x_ref, mem_ref, tgt_bias_ref, src_bias_ref,
                         w32_ref, w_ffn2_ref, vec_ref, out_ref):
    bb, Tq, D = x_ref.shape
    Tk = mem_ref.shape[1]
    M = bb * Tq
    Mk = bb * Tk

    V = vec_ref[...]                               # (13, 128) f32, loaded once

    # flatten the batch block into one (rows, D) slab (leading-dim merge only)
    x = x_ref[...].reshape(M, D)                   # (M, D) f32
    mem = mem_ref[...].reshape(Mk, D)              # (Mk, D) f32

    # additive masks built once per grid step (no O(T^2) HBM mask traffic)
    row = jax.lax.broadcasted_iota(jnp.int32, (Tq, Tq), 0)
    col = jax.lax.broadcasted_iota(jnp.int32, (Tq, Tq), 1)
    causal = jnp.where(col > row, jnp.float32(NEG_INF), jnp.float32(0.0))   # (Tq,Tq)
    self_mask = (causal[None, :, :] + tgt_bias_ref[...]).reshape(M, Tq)     # (M, Tq)
    cross_mask = jnp.broadcast_to(src_bias_ref[...], (bb, Tq, Tk)).reshape(M, Tk)

    def mm(a, w_bf16):
        # bf16 MXU operands, f32 accumulation
        return jnp.dot(a.astype(jnp.bfloat16), w_bf16,
                       preferred_element_type=jnp.float32)

    def layer_norm(a, gi, bi):
        g = V[gi:gi + 1, :D]
        be = V[bi:bi + 1, :D]
        mu = jnp.mean(a, axis=-1, keepdims=True)
        var = jnp.mean((a - mu) ** 2, axis=-1, keepdims=True)
        return (a - mu) * jax.lax.rsqrt(var + LN_EPS) * g + be

    def attention(q, k, v, mask_add, Lq, Lk, wo_idx, bo_idx):
        # q: (M, D) pre-scaled by 1/sqrt(hd); k, v: (bb*Lk, D); mask_add: (M, Lk)
        ctx_heads = []
        for h in range(N_HEAD):                    # static unroll over 4 heads
            sl = slice(h * HEAD_DIM, (h + 1) * HEAD_DIM)
            qh, kh, vh = q[:, sl], k[:, sl], v[:, sl]      # one lane slice per head
            parts = []
            for b in range(bb):                    # scores are per (batch, head)
                s_b = jax.lax.dot_general(
                    qh[b * Lq:(b + 1) * Lq], kh[b * Lk:(b + 1) * Lk],
                    (((1,), (1,)), ((), ())), preferred_element_type=jnp.float32)
                parts.append(s_b)
            s = parts[0] if bb == 1 else jnp.concatenate(parts, axis=0)   # (M, Lk)
            s = s + mask_add
            s = s - jnp.max(s, axis=-1, keepdims=True)
            e = jnp.exp(s)
            # deferred normalization: EUP approx reciprocal, applied to (M, hd)
            inv = pl.reciprocal(jnp.sum(e, axis=-1, keepdims=True), approx=True)
            parts = []
            for b in range(bb):
                parts.append(jnp.dot(e[b * Lq:(b + 1) * Lq],
                                     vh[b * Lk:(b + 1) * Lk],
                                     preferred_element_type=jnp.float32))
            c = parts[0] if bb == 1 else jnp.concatenate(parts, axis=0)   # (M, hd)
            ctx_heads.append(c * inv)
        ctx = jnp.concatenate(ctx_heads, axis=-1)          # (M, D)
        # single full-slab output projection (valid out-lanes are the first D)
        return (mm(ctx, w32_ref[wo_idx]) + V[bo_idx:bo_idx + 1])[:, :D]

    # --- sublayer 1: masked self-attention (dropout == identity, eval mode) ---
    x_ln = layer_norm(x, V_G1, V_BE1)
    qkv = mm(x_ln, w32_ref[W_SA_QKV]) + V[V_SA_BQKV:V_SA_BQKV + 1]   # (M, 128)
    q = qkv[:, 0:D] * INV_SCALE                      # pre-scale Q once
    k = qkv[:, D:2 * D]
    v = qkv[:, 2 * D:3 * D]
    x = x + attention(q, k, v, self_mask, Tq, Tq, W_SA_O, V_SA_BO)

    # --- sublayer 2: cross attention over encoder memory ---
    x_ln = layer_norm(x, V_G2, V_BE2)
    q = (mm(x_ln, w32_ref[W_CA_Q]) + V[V_CA_BQ:V_CA_BQ + 1])[:, 0:D] * INV_SCALE
    kv = mm(mem, w32_ref[W_CA_KV]) + V[V_CA_BKV:V_CA_BKV + 1]        # (Mk, 128)
    k = kv[:, 0:D]
    v = kv[:, D:2 * D]
    x = x + attention(q, k, v, cross_mask, Tq, Tk, W_CA_O, V_CA_BO)

    # --- sublayer 3: position-wise FFN ---
    x_ln = layer_norm(x, V_G3, V_BE3)
    hidden = jnp.maximum(mm(x_ln, w32_ref[W_FFN1]) + V[V_FFN_B1:V_FFN_B1 + 1], 0.0)
    x = x + mm(hidden, w_ffn2_ref[...]) + V[V_FFN_B2:V_FFN_B2 + 1, :D]

    out_ref[...] = x.reshape(bb, Tq, D)


# ----------------------------------- wrapper -----------------------------------

def _num_tensorcores_per_chip():
    """Robust 2-TC (v7x) detection: try pltpu.get_tpu_info(), then device_kind."""
    try:
        info = pltpu.get_tpu_info()
        for attr in ("num_cores", "core_count", "num_tensorcores",
                     "tensorcore_count", "cores_per_chip", "num_cores_per_chip"):
            try:
                n = getattr(info, attr, None)
                if n is not None and int(n) > 0:
                    return int(n)
            except Exception:
                continue
    except Exception:
        pass
    try:
        if "v7" in jax.devices()[0].device_kind.lower():
            return 2
    except Exception:
        pass
    return 1


def _default_batch_block(B):
    # v5e/v6e (1 TC): whole batch in one grid step. v7x (2 TCs): split in two
    # parallel grid steps so each TensorCore gets half the batch.
    if _num_tensorcores_per_chip() >= 2 and B >= 2 and B % 2 == 0:
        return B // 2
    return B


def _pack_params(p):
    """Pack 20 parameter tensors into 3 arrays: bf16 weight slab, bf16 ffn_w2,
    f32 vector slab.  Weights/vectors are zero-padded to 128 lanes so matmul
    outputs can use full-width bias adds and prefix slices."""
    def padw(w):                                   # (32, n) -> (32, 128)
        return jnp.pad(w, ((0, 0), (0, 128 - w.shape[1])))

    def padv(v):                                   # (1, n) -> (128,)
        v = v.reshape(-1)
        return jnp.pad(v, (0, 128 - v.shape[0]))

    w32 = jnp.stack([
        padw(jnp.concatenate([p["sa_wq"], p["sa_wk"], p["sa_wv"]], axis=1)),
        padw(p["sa_wo"]),
        padw(p["ca_wq"]),
        padw(jnp.concatenate([p["ca_wk"], p["ca_wv"]], axis=1)),
        padw(p["ca_wo"]),
        padw(p["ffn_w1"]),
    ]).astype(jnp.bfloat16)                        # (6, 32, 128)

    w_ffn2 = p["ffn_w2"].astype(jnp.bfloat16)      # (128, 32)

    vecs = jnp.stack([
        padv(p["g1"]), padv(p["be1"]),
        padv(jnp.concatenate([p["sa_bq"], p["sa_bk"], p["sa_bv"]], axis=1)),
        padv(p["sa_bo"]),
        padv(p["g2"]), padv(p["be2"]),
        padv(p["ca_bq"]),
        padv(jnp.concatenate([p["ca_bk"], p["ca_bv"]], axis=1)),
        padv(p["ca_bo"]),
        padv(p["g3"]), padv(p["be3"]),
        padv(p["ffn_b1"]), padv(p["ffn_b2"]),
    ]).astype(jnp.float32)                         # (13, 128)

    return w32, w_ffn2, vecs


def decoder_layer(x, memory, src_mask, tgt_mask, params, batch_block=None):
    B, Tq, D = x.shape
    Tk = memory.shape[1]
    if batch_block is None:
        batch_block = _default_batch_block(B)
    assert B % batch_block == 0, "batch_block must divide B"
    grid = (B // batch_block,)

    # additive key-padding rows only (0 / -1e9); causal mask is built in-kernel
    tgt_bias = jnp.where(tgt_mask.reshape(B, 1, Tq) > 0.5, NEG_INF, 0.0).astype(jnp.float32)
    src_bias = jnp.where(src_mask.reshape(B, 1, Tk) > 0.5, NEG_INF, 0.0).astype(jnp.float32)

    w32, w_ffn2, vecs = _pack_params(params)

    in_specs = [
        pl.BlockSpec((batch_block, Tq, D), lambda i: (i, 0, 0)),    # x
        pl.BlockSpec((batch_block, Tk, D), lambda i: (i, 0, 0)),    # memory
        pl.BlockSpec((batch_block, 1, Tq), lambda i: (i, 0, 0)),    # tgt pad bias
        pl.BlockSpec((batch_block, 1, Tk), lambda i: (i, 0, 0)),    # src pad bias
        pl.BlockSpec(w32.shape, lambda i: (0, 0, 0)),               # weight slab
        pl.BlockSpec(w_ffn2.shape, lambda i: (0, 0)),               # ffn down-proj
        pl.BlockSpec(vecs.shape, lambda i: (0, 0)),                 # vector slab
    ]

    return pl.pallas_call(
        decoder_layer_kernel,
        out_shape=jax.ShapeDtypeStruct((B, Tq, D), jnp.float32),
        grid=grid,
        in_specs=in_specs,
        out_specs=pl.BlockSpec((batch_block, Tq, D), lambda i: (i, 0, 0)),
        compiler_params=pltpu.CompilerParams(dimension_semantics=("parallel",)),
    )(x, memory, tgt_bias, src_bias, w32, w_ffn2, vecs)


# ------------------------- deterministic parameter init -------------------------

def init_params(key, d_model=D_MODEL):
    keys = iter(jax.random.split(key, 40))

    def lin(din, dout):
        w = jax.random.normal(next(keys), (din, dout), jnp.float32) * 0.1  # (in, out)
        b = jax.random.normal(next(keys), (1, dout), jnp.float32) * 0.1
        return w, b

    p = {}
    for i in (1, 2, 3):
        p[f"g{i}"] = jnp.ones((1, d_model), jnp.float32)   # LayerNorm default init
        p[f"be{i}"] = jnp.zeros((1, d_model), jnp.float32)
    for pref in ("sa", "ca"):
        for name in ("q", "k", "v", "o"):
            w, b = lin(d_model, d_model)
            p[f"{pref}_w{name}"], p[f"{pref}_b{name}"] = w, b
    p["ffn_w1"], p["ffn_b1"] = lin(d_model, 4 * d_model)
    p["ffn_w2"], p["ffn_b2"] = lin(4 * d_model, d_model)
    return p


# ---------------- pure-JAX f32 reference (faithful to the PyTorch module) ----------------

def reference(x, memory, src_mask, tgt_mask, p):
    def ln(x, g, b):
        mu = x.mean(-1, keepdims=True)
        var = ((x - mu) ** 2).mean(-1, keepdims=True)
        return (x - mu) / jnp.sqrt(var + LN_EPS) * g[0] + b[0]

    def mha(q, kv, wq, bq, wk, bk, wv, bv, wo, bo, mask):
        B, Lq, D = q.shape
        Lk = kv.shape[1]
        Q = (q @ wq + bq[0]).reshape(B, Lq, N_HEAD, HEAD_DIM).transpose(0, 2, 1, 3)
        K = (kv @ wk + bk[0]).reshape(B, Lk, N_HEAD, HEAD_DIM).transpose(0, 2, 1, 3)
        V = (kv @ wv + bv[0]).reshape(B, Lk, N_HEAD, HEAD_DIM).transpose(0, 2, 1, 3)
        s = jnp.einsum('bhqd,bhkd->bhqk', Q, K)
        s = jnp.where(mask, NEG_INF, s)              # masked_fill BEFORE scaling
        attn = jax.nn.softmax(s / HEAD_DIM ** 0.5, axis=-1)
        ctx = jnp.einsum('bhqk,bhkd->bhqd', attn, V).transpose(0, 2, 1, 3).reshape(B, Lq, D)
        return ctx @ wo + bo[0]

    B, Tq, _ = x.shape
    causal = jnp.triu(jnp.ones((Tq, Tq), bool), k=1)
    tmask = (tgt_mask[:, None, None, :] > 0.5) | causal[None, None]
    smask = src_mask[:, None, None, :] > 0.5

    xl = ln(x, p["g1"], p["be1"])
    x = x + mha(xl, xl, p["sa_wq"], p["sa_bq"], p["sa_wk"], p["sa_bk"],
                p["sa_wv"], p["sa_bv"], p["sa_wo"], p["sa_bo"], tmask)
    xl = ln(x, p["g2"], p["be2"])
    x = x + mha(xl, memory, p["ca_wq"], p["ca_bq"], p["ca_wk"], p["ca_bk"],
                p["ca_wv"], p["ca_bv"], p["ca_wo"], p["ca_bo"], smask)
    xl = ln(x, p["g3"], p["be3"])
    h = jnp.maximum(xl @ p["ffn_w1"] + p["ffn_b1"][0], 0.0)
    return x + h @ p["ffn_w2"] + p["ffn_b2"][0]


if __name__ == "__main__":
    key = jax.random.PRNGKey(0)
    k_x, k_m, k_p = jax.random.split(key, 3)
    B, Tq, Tk = 2, 8, 8
    x = jax.random.normal(k_x, (B, Tq, D_MODEL), jnp.float32)
    memory = jax.random.normal(k_m, (B, Tk, D_MODEL), jnp.float32)
    # padding masks: 1.0 == padded (masked) position, mirroring the PyTorch bool masks
    tgt_mask = jnp.zeros((B, Tq), jnp.float32).at[:, -2:].set(1.0)
    src_mask = jnp.zeros((B, Tk), jnp.float32).at[:, -1:].set(1.0)

    params = init_params(k_p)

    out = decoder_layer(x, memory, src_mask, tgt_mask, params)
    jax.block_until_ready(out)

    ref = reference(x, memory, src_mask, tgt_mask, params)
    assert out.shape == (B, Tq, D_MODEL)
    out_np, ref_np = np.asarray(out), np.asarray(ref)
    # Tolerances reflect bf16 weight operands on the MXU and the EUP approx
    # reciprocal used for softmax normalization (reference is pure f32).
    assert np.allclose(out_np, ref_np, atol=5e-2, rtol=5e-2)
    rel = np.linalg.norm(out_np - ref_np) / np.linalg.norm(ref_np)
    assert rel < 2e-2, f"relative error too large: {rel}"
    print("KERNEL_OK")
</pallas_src>

<mosaic_0001>
module attributes {stable_mosaic.version = 11 : i64} {
  func.func @decoder_layer_kernel(%arg0: i32, %arg1: memref<2x8x32xf32, #tpu.memory_space<vmem>>, %arg2: memref<2x8x32xf32, #tpu.memory_space<vmem>>, %arg3: memref<2x1x8xf32, #tpu.memory_space<vmem>>, %arg4: memref<2x1x8xf32, #tpu.memory_space<vmem>>, %arg5: memref<6x32x128xbf16, #tpu.memory_space<vmem>>, %arg6: memref<128x32xbf16, #tpu.memory_space<vmem>>, %arg7: memref<13x128xf32, #tpu.memory_space<vmem>>, %arg8: memref<2x8x32xf32, #tpu.memory_space<vmem>>) attributes {dimension_semantics = [#tpu.dimension_semantics<parallel>], iteration_bounds = array<i64: 1>, scalar_prefetch = 0 : i64, scratch_operands = 0 : i64, tpu.core_type = #tpu.core_type<tc>, window_params = [{transform_indices = @transform_0, window_bounds = array<i64: 2, 8, 32>}, {transform_indices = @transform_1, window_bounds = array<i64: 2, 8, 32>}, {transform_indices = @transform_2, window_bounds = array<i64: 2, 1, 8>}, {transform_indices = @transform_3, window_bounds = array<i64: 2, 1, 8>}, {pipeline_mode = #tpu.pipeline_mode<synchronous>, transform_indices = @transform_4, window_bounds = array<i64: 6, 32, 128>}, {pipeline_mode = #tpu.pipeline_mode<synchronous>, transform_indices = @transform_5, window_bounds = array<i64: 128, 32>}, {pipeline_mode = #tpu.pipeline_mode<synchronous>, transform_indices = @transform_6, window_bounds = array<i64: 13, 128>}, {transform_indices = @transform_7, window_bounds = array<i64: 2, 8, 32>}]} {
    %c0 = arith.constant 0 : index
    %c0_0 = arith.constant 0 : index
    %0 = vector.load %arg7[%c0, %c0_0] : memref<13x128xf32, #tpu.memory_space<vmem>>, vector<13x128xf32>
    %c0_1 = arith.constant 0 : index
    %c0_2 = arith.constant 0 : index
    %c0_3 = arith.constant 0 : index
    %1 = vector.load %arg1[%c0_1, %c0_2, %c0_3] : memref<2x8x32xf32, #tpu.memory_space<vmem>>, vector<2x8x32xf32>
    %2 = vector.shape_cast %1 : vector<2x8x32xf32> to vector<16x32xf32>
    %c0_4 = arith.constant 0 : index
    %c0_5 = arith.constant 0 : index
    %c0_6 = arith.constant 0 : index
    %3 = vector.load %arg2[%c0_4, %c0_5, %c0_6] : memref<2x8x32xf32, #tpu.memory_space<vmem>>, vector<2x8x32xf32>
    %4 = vector.shape_cast %3 : vector<2x8x32xf32> to vector<16x32xf32>
    %5 = tpu.iota {dimensions = array<i32: 0>} : vector<8x8xi32>
    %6 = tpu.iota {dimensions = array<i32: 1>} : vector<8x8xi32>
    %7 = arith.cmpi sgt, %6, %5 : vector<8x8xi32>
    %cst = arith.constant -1.000000e+09 : f32
    %cst_7 = arith.constant 0.000000e+00 : f32
    %8 = vector.broadcast %cst : f32 to vector<8x8xf32>
    %9 = vector.broadcast %cst_7 : f32 to vector<8x8xf32>
    %10 = arith.select %7, %8, %9 : vector<8x8xi1>, vector<8x8xf32>
    %11 = vector.shape_cast %10 : vector<8x8xf32> to vector<1x8x8xf32>
    %c0_8 = arith.constant 0 : index
    %c0_9 = arith.constant 0 : index
    %c0_10 = arith.constant 0 : index
    %12 = vector.load %arg3[%c0_8, %c0_9, %c0_10] : memref<2x1x8xf32, #tpu.memory_space<vmem>>, vector<2x1x8xf32>
    %13 = vector.broadcast %11 : vector<1x8x8xf32> to vector<2x8x8xf32>
    %14 = vector.broadcast %12 : vector<2x1x8xf32> to vector<2x8x8xf32>
    %15 = arith.addf %13, %14 : vector<2x8x8xf32>
    %16 = vector.shape_cast %15 : vector<2x8x8xf32> to vector<16x8xf32>
    %c0_11 = arith.constant 0 : index
    %c0_12 = arith.constant 0 : index
    %c0_13 = arith.constant 0 : index
    %17 = vector.load %arg4[%c0_11, %c0_12, %c0_13] : memref<2x1x8xf32, #tpu.memory_space<vmem>>, vector<2x1x8xf32>
    %18 = vector.shape_cast %17 : vector<2x1x8xf32> to vector<2x1x8xf32>
    %19 = vector.broadcast %18 : vector<2x1x8xf32> to vector<2x8x8xf32>
    %20 = vector.shape_cast %19 : vector<2x8x8xf32> to vector<16x8xf32>
    %21 = vector.extract_strided_slice %0 {offsets = [0, 0], sizes = [1, 32], strides = [1, 1]} : vector<13x128xf32> to vector<1x32xf32>
    %22 = vector.extract_strided_slice %0 {offsets = [1, 0], sizes = [1, 32], strides = [1, 1]} : vector<13x128xf32> to vector<1x32xf32>
    %cst_14 = arith.constant dense<0.000000e+00> : vector<16xf32>
    %23 = vector.multi_reduction <add>, %2, %cst_14 [1] : vector<16x32xf32> to vector<16xf32>
    %24 = vector.shape_cast %23 : vector<16xf32> to vector<16x1xf32>
    %cst_15 = arith.constant 3.200000e+01 : f32
    %25 = vector.broadcast %cst_15 : f32 to vector<16x1xf32>
    %26 = arith.divf %24, %25 : vector<16x1xf32>
    %27 = vector.broadcast %26 : vector<16x1xf32> to vector<16x32xf32>
    %28 = arith.subf %2, %27 : vector<16x32xf32>
    %29 = arith.mulf %28, %28 : vector<16x32xf32>
    %cst_16 = arith.constant dense<0.000000e+00> : vector<16xf32>
    %30 = vector.multi_reduction <add>, %29, %cst_16 [1] : vector<16x32xf32> to vector<16xf32>
    %31 = vector.shape_cast %30 : vector<16xf32> to vector<16x1xf32>
    %cst_17 = arith.constant 3.200000e+01 : f32
    %32 = vector.broadcast %cst_17 : f32 to vector<16x1xf32>
    %33 = arith.divf %31, %32 : vector<16x1xf32>
    %34 = vector.broadcast %26 : vector<16x1xf32> to vector<16x32xf32>
    %35 = arith.subf %2, %34 : vector<16x32xf32>
    %cst_18 = arith.constant 9.99999974E-6 : f32
    %36 = vector.broadcast %cst_18 : f32 to vector<16x1xf32>
    %37 = arith.addf %33, %36 : vector<16x1xf32>
    %38 = math.rsqrt %37 : vector<16x1xf32>
    %39 = vector.broadcast %38 : vector<16x1xf32> to vector<16x32xf32>
    %40 = arith.mulf %35, %39 : vector<16x32xf32>
    %41 = vector.broadcast %21 : vector<1x32xf32> to vector<16x32xf32>
    %42 = arith.mulf %40, %41 : vector<16x32xf32>
    %43 = vector.broadcast %22 : vector<1x32xf32> to vector<16x32xf32>
    %44 = arith.addf %42, %43 : vector<16x32xf32>
    %c0_19 = arith.constant 0 : index
    %c0_20 = arith.constant 0 : index
    %c0_21 = arith.constant 0 : index
    %45 = vector.load %arg5[%c0_19, %c0_20, %c0_21] : memref<6x32x128xbf16, #tpu.memory_space<vmem>>, vector<1x32x128xbf16>
    %46 = vector.shape_cast %45 : vector<1x32x128xbf16> to vector<32x128xbf16>
    %47 = arith.truncf %44 : vector<16x32xf32> to vector<16x32xbf16>
    %cst_22 = arith.constant dense<0.000000e+00> : vector<16x128xf32>
    %48 = tpu.matmul %47, %46, %cst_22 {dimension_numbers = #tpu.dot_dimension_numbers<[1], [0], [0], [1], [0, 0, 1, 1], [], []>} : vector<16x32xbf16>, vector<32x128xbf16>, vector<16x128xf32> -> vector<16x128xf32>
    %49 = vector.extract_strided_slice %0 {offsets = [2, 0], sizes = [1, 128], strides = [1, 1]} : vector<13x128xf32> to vector<1x128xf32>
    %50 = vector.broadcast %49 : vector<1x128xf32> to vector<16x128xf32>
    %51 = arith.addf %48, %50 : vector<16x128xf32>
    %52 = vector.extract_strided_slice %51 {offsets = [0, 0], sizes = [16, 32], strides = [1, 1]} : vector<16x128xf32> to vector<16x32xf32>
    %cst_23 = arith.constant 0.353553385 : f32
    %53 = vector.broadcast %cst_23 : f32 to vector<16x32xf32>
    %54 = arith.mulf %52, %53 : vector<16x32xf32>
    %55 = vector.extract_strided_slice %51 {offsets = [0, 32], sizes = [16, 32], strides = [1, 1]} : vector<16x128xf32> to vector<16x32xf32>
    %56 = vector.extract_strided_slice %51 {offsets = [0, 64], sizes = [16, 32], strides = [1, 1]} : vector<16x128xf32> to vector<16x32xf32>
    %57 = vector.extract_strided_slice %54 {offsets = [0, 0], sizes = [16, 8], strides = [1, 1]} : vector<16x32xf32> to vector<16x8xf32>
    %58 = vector.extract_strided_slice %55 {offsets = [0, 0], sizes = [16, 8], strides = [1, 1]} : vector<16x32xf32> to vector<16x8xf32>
    %59 = vector.extract_strided_slice %56 {offsets = [0, 0], sizes = [16, 8], strides = [1, 1]} : vector<16x32xf32> to vector<16x8xf32>
    %60 = vector.extract_strided_slice %57 {offsets = [0, 0], sizes = [8, 8], strides = [1, 1]} : vector<16x8xf32> to vector<8x8xf32>
    %61 = vector.extract_strided_slice %58 {offsets = [0, 0], sizes = [8, 8], strides = [1, 1]} : vector<16x8xf32> to vector<8x8xf32>
    %cst_24 = arith.constant dense<0.000000e+00> : vector<8x8xf32>
    %62 = tpu.matmul %60, %61, %cst_24 {dimension_numbers = #tpu.dot_dimension_numbers<[1], [1], [0], [0], [0, 0, 1, 0], [], []>} : vector<8x8xf32>, vector<8x8xf32>, vector<8x8xf32> -> vector<8x8xf32>
    %63 = vector.extract_strided_slice %57 {offsets = [8, 0], sizes = [8, 8], strides = [1, 1]} : vector<16x8xf32> to vector<8x8xf32>
    %64 = vector.extract_strided_slice %58 {offsets = [8, 0], sizes = [8, 8], strides = [1, 1]} : vector<16x8xf32> to vector<8x8xf32>
    %cst_25 = arith.constant dense<0.000000e+00> : vector<8x8xf32>
    %65 = tpu.matmul %63, %64, %cst_25 {dimension_numbers = #tpu.dot_dimension_numbers<[1], [1], [0], [0], [0, 0, 1, 0], [], []>} : vector<8x8xf32>, vector<8x8xf32>, vector<8x8xf32> -> vector<8x8xf32>
    %66 = tpu.concatenate %62, %65 in 0 : vector<8x8xf32>, vector<8x8xf32> -> vector<16x8xf32>
    %67 = arith.addf %66, %16 : vector<16x8xf32>
    %cst_26 = arith.constant dense<0xFF800000> : vector<16xf32>
    %68 = vector.multi_reduction <maximumf>, %67, %cst_26 [1] : vector<16x8xf32> to vector<16xf32>
    %69 = vector.shape_cast %68 : vector<16xf32> to vector<16x1xf32>
    %70 = vector.broadcast %69 : vector<16x1xf32> to vector<16x8xf32>
    %71 = arith.subf %67, %70 : vector<16x8xf32>
    %72 = math.exp %71 : vector<16x8xf32>
    %cst_27 = arith.constant dense<0.000000e+00> : vector<16xf32>
    %73 = vector.multi_reduction <add>, %72, %cst_27 [1] : vector<16x8xf32> to vector<16xf32>
    %74 = vector.shape_cast %73 : vector<16xf32> to vector<16x1xf32>
    %75 = tpu.reciprocal %74 {approx = true} : vector<16x1xf32> -> vector<16x1xf32>
    %76 = vector.extract_strided_slice %72 {offsets = [0, 0], sizes = [8, 8], strides = [1, 1]} : vector<16x8xf32> to vector<8x8xf32>
    %77 = vector.extract_strided_slice %59 {offsets = [0, 0], sizes = [8, 8], strides = [1, 1]} : vector<16x8xf32> to vector<8x8xf32>
    %cst_28 = arith.constant dense<0.000000e+00> : vector<8x8xf32>
    %78 = tpu.matmul %76, %77, %cst_28 {dimension_numbers = #tpu.dot_dimension_numbers<[1], [0], [0], [1], [0, 0, 1, 1], [], []>} : vector<8x8xf32>, vector<8x8xf32>, vector<8x8xf32> -> vector<8x8xf32>
    %79 = vector.extract_strided_slice %72 {offsets = [8, 0], sizes = [8, 8], strides = [1, 1]} : vector<16x8xf32> to vector<8x8xf32>
    %80 = vector.extract_strided_slice %59 {offsets = [8, 0], sizes = [8, 8], strides = [1, 1]} : vector<16x8xf32> to vector<8x8xf32>
    %cst_29 = arith.constant dense<0.000000e+00> : vector<8x8xf32>
    %81 = tpu.matmul %79, %80, %cst_29 {dimension_numbers = #tpu.dot_dimension_numbers<[1], [0], [0], [1], [0, 0, 1, 1], [], []>} : vector<8x8xf32>, vector<8x8xf32>, vector<8x8xf32> -> vector<8x8xf32>
    %82 = tpu.concatenate %78, %81 in 0 : vector<8x8xf32>, vector<8x8xf32> -> vector<16x8xf32>
    %83 = vector.broadcast %75 : vector<16x1xf32> to vector<16x8xf32>
    %84 = arith.mulf %82, %83 : vector<16x8xf32>
    %85 = vector.extract_strided_slice %54 {offsets = [0, 8], sizes = [16, 8], strides = [1, 1]} : vector<16x32xf32> to vector<16x8xf32>
    %86 = vector.extract_strided_slice %55 {offsets = [0, 8], sizes = [16, 8], strides = [1, 1]} : vector<16x32xf32> to vector<16x8xf32>
    %87 = vector.extract_strided_slice %56 {offsets = [0, 8], sizes = [16, 8], strides = [1, 1]} : vector<16x32xf32> to vector<16x8xf32>
    %88 = vector.extract_strided_slice %85 {offsets = [0, 0], sizes = [8, 8], strides = [1, 1]} : vector<16x8xf32> to vector<8x8xf32>
    %89 = vector.extract_strided_slice %86 {offsets = [0, 0], sizes = [8, 8], strides = [1, 1]} : vector<16x8xf32> to vector<8x8xf32>
    %cst_30 = arith.constant dense<0.000000e+00> : vector<8x8xf32>
    %90 = tpu.matmul %88, %89, %cst_30 {dimension_numbers = #tpu.dot_dimension_numbers<[1], [1], [0], [0], [0, 0, 1, 0], [], []>} : vector<8x8xf32>, vector<8x8xf32>, vector<8x8xf32> -> vector<8x8xf32>
    %91 = vector.extract_strided_slice %85 {offsets = [8, 0], sizes = [8, 8], strides = [1, 1]} : vector<16x8xf32> to vector<8x8xf32>
    %92 = vector.extract_strided_slice %86 {offsets = [8, 0], sizes = [8, 8], strides = [1, 1]} : vector<16x8xf32> to vector<8x8xf32>
    %cst_31 = arith.constant dense<0.000000e+00> : vector<8x8xf32>
    %93 = tpu.matmul %91, %92, %cst_31 {dimension_numbers = #tpu.dot_dimension_numbers<[1], [1], [0], [0], [0, 0, 1, 0], [], []>} : vector<8x8xf32>, vector<8x8xf32>, vector<8x8xf32> -> vector<8x8xf32>
    %94 = tpu.concatenate %90, %93 in 0 : vector<8x8xf32>, vector<8x8xf32> -> vector<16x8xf32>
    %95 = arith.addf %94, %16 : vector<16x8xf32>
    %cst_32 = arith.constant dense<0xFF800000> : vector<16xf32>
    %96 = vector.multi_reduction <maximumf>, %95, %cst_32 [1] : vector<16x8xf32> to vector<16xf32>
    %97 = vector.shape_cast %96 : vector<16xf32> to vector<16x1xf32>
    %98 = vector.broadcast %97 : vector<16x1xf32> to vector<16x8xf32>
    %99 = arith.subf %95, %98 : vector<16x8xf32>
    %100 = math.exp %99 : vector<16x8xf32>
    %cst_33 = arith.constant dense<0.000000e+00> : vector<16xf32>
    %101 = vector.multi_reduction <add>, %100, %cst_33 [1] : vector<16x8xf32> to vector<16xf32>
    %102 = vector.shape_cast %101 : vector<16xf32> to vector<16x1xf32>
    %103 = tpu.reciprocal %102 {approx = true} : vector<16x1xf32> -> vector<16x1xf32>
    %104 = vector.extract_strided_slice %100 {offsets = [0, 0], sizes = [8, 8], strides = [1, 1]} : vector<16x8xf32> to vector<8x8xf32>
    %105 = vector.extract_strided_slice %87 {offsets = [0, 0], sizes = [8, 8], strides = [1, 1]} : vector<16x8xf32> to vector<8x8xf32>
    %cst_34 = arith.constant dense<0.000000e+00> : vector<8x8xf32>
    %106 = tpu.matmul %104, %105, %cst_34 {dimension_numbers = #tpu.dot_dimension_numbers<[1], [0], [0], [1], [0, 0, 1, 1], [], []>} : vector<8x8xf32>, vector<8x8xf32>, vector<8x8xf32> -> vector<8x8xf32>
    %107 = vector.extract_strided_slice %100 {offsets = [8, 0], sizes = [8, 8], strides = [1, 1]} : vector<16x8xf32> to vector<8x8xf32>
    %108 = vector.extract_strided_slice %87 {offsets = [8, 0], sizes = [8, 8], strides = [1, 1]} : vector<16x8xf32> to vector<8x8xf32>
    %cst_35 = arith.constant dense<0.000000e+00> : vector<8x8xf32>
    %109 = tpu.matmul %107, %108, %cst_35 {dimension_numbers = #tpu.dot_dimension_numbers<[1], [0], [0], [1], [0, 0, 1, 1], [], []>} : vector<8x8xf32>, vector<8x8xf32>, vector<8x8xf32> -> vector<8x8xf32>
    %110 = tpu.concatenate %106, %109 in 0 : vector<8x8xf32>, vector<8x8xf32> -> vector<16x8xf32>
    %111 = vector.broadcast %103 : vector<16x1xf32> to vector<16x8xf32>
    %112 = arith.mulf %110, %111 : vector<16x8xf32>
    %113 = vector.extract_strided_slice %54 {offsets = [0, 16], sizes = [16, 8], strides = [1, 1]} : vector<16x32xf32> to vector<16x8xf32>
    %114 = vector.extract_strided_slice %55 {offsets = [0, 16], sizes = [16, 8], strides = [1, 1]} : vector<16x32xf32> to vector<16x8xf32>
    %115 = vector.extract_strided_slice %56 {offsets = [0, 16], sizes = [16, 8], strides = [1, 1]} : vector<16x32xf32> to vector<16x8xf32>
    %116 = vector.extract_strided_slice %113 {offsets = [0, 0], sizes = [8, 8], strides = [1, 1]} : vector<16x8xf32> to vector<8x8xf32>
    %117 = vector.extract_strided_slice %114 {offsets = [0, 0], sizes = [8, 8], strides = [1, 1]} : vector<16x8xf32> to vector<8x8xf32>
    %cst_36 = arith.constant dense<0.000000e+00> : vector<8x8xf32>
    %118 = tpu.matmul %116, %117, %cst_36 {dimension_numbers = #tpu.dot_dimension_numbers<[1], [1], [0], [0], [0, 0, 1, 0], [], []>} : vector<8x8xf32>, vector<8x8xf32>, vector<8x8xf32> -> vector<8x8xf32>
    %119 = vector.extract_strided_slice %113 {offsets = [8, 0], sizes = [8, 8], strides = [1, 1]} : vector<16x8xf32> to vector<8x8xf32>
    %120 = vector.extract_strided_slice %114 {offsets = [8, 0], sizes = [8, 8], strides = [1, 1]} : vector<16x8xf32> to vector<8x8xf32>
    %cst_37 = arith.constant dense<0.000000e+00> : vector<8x8xf32>
    %121 = tpu.matmul %119, %120, %cst_37 {dimension_numbers = #tpu.dot_dimension_numbers<[1], [1], [0], [0], [0, 0, 1, 0], [], []>} : vector<8x8xf32>, vector<8x8xf32>, vector<8x8xf32> -> vector<8x8xf32>
    %122 = tpu.concatenate %118, %121 in 0 : vector<8x8xf32>, vector<8x8xf32> -> vector<16x8xf32>
    %123 = arith.addf %122, %16 : vector<16x8xf32>
    %cst_38 = arith.constant dense<0xFF800000> : vector<16xf32>
    %124 = vector.multi_reduction <maximumf>, %123, %cst_38 [1] : vector<16x8xf32> to vector<16xf32>
    %125 = vector.shape_cast %124 : vector<16xf32> to vector<16x1xf32>
    %126 = vector.broadcast %125 : vector<16x1xf32> to vector<16x8xf32>
    %127 = arith.subf %123, %126 : vector<16x8xf32>
    %128 = math.exp %127 : vector<16x8xf32>
    %cst_39 = arith.constant dense<0.000000e+00> : vector<16xf32>
    %129 = vector.multi_reduction <add>, %128, %cst_39 [1] : vector<16x8xf32> to vector<16xf32>
    %130 = vector.shape_cast %129 : vector<16xf32> to vector<16x1xf32>
    %131 = tpu.reciprocal %130 {approx = true} : vector<16x1xf32> -> vector<16x1xf32>
    %132 = vector.extract_strided_slice %128 {offsets = [0, 0], sizes = [8, 8], strides = [1, 1]} : vector<16x8xf32> to vector<8x8xf32>
    %133 = vector.extract_strided_slice %115 {offsets = [0, 0], sizes = [8, 8], strides = [1, 1]} : vector<16x8xf32> to vector<8x8xf32>
    %cst_40 = arith.constant dense<0.000000e+00> : vector<8x8xf32>
    %134 = tpu.matmul %132, %133, %cst_40 {dimension_numbers = #tpu.dot_dimension_numbers<[1], [0], [0], [1], [0, 0, 1, 1], [], []>} : vector<8x8xf32>, vector<8x8xf32>, vector<8x8xf32> -> vector<8x8xf32>
    %135 = vector.extract_strided_slice %128 {offsets = [8, 0], sizes = [8, 8], strides = [1, 1]} : vector<16x8xf32> to vector<8x8xf32>
    %136 = vector.extract_strided_slice %115 {offsets = [8, 0], sizes = [8, 8], strides = [1, 1]} : vector<16x8xf32> to vector<8x8xf32>
    %cst_41 = arith.constant dense<0.000000e+00> : vector<8x8xf32>
    %137 = tpu.matmul %135, %136, %cst_41 {dimension_numbers = #tpu.dot_dimension_numbers<[1], [0], [0], [1], [0, 0, 1, 1], [], []>} : vector<8x8xf32>, vector<8x8xf32>, vector<8x8xf32> -> vector<8x8xf32>
    %138 = tpu.concatenate %134, %137 in 0 : vector<8x8xf32>, vector<8x8xf32> -> vector<16x8xf32>
    %139 = vector.broadcast %131 : vector<16x1xf32> to vector<16x8xf32>
    %140 = arith.mulf %138, %139 : vector<16x8xf32>
    %141 = vector.extract_strided_slice %54 {offsets = [0, 24], sizes = [16, 8], strides = [1, 1]} : vector<16x32xf32> to vector<16x8xf32>
    %142 = vector.extract_strided_slice %55 {offsets = [0, 24], sizes = [16, 8], strides = [1, 1]} : vector<16x32xf32> to vector<16x8xf32>
    %143 = vector.extract_strided_slice %56 {offsets = [0, 24], sizes = [16, 8], strides = [1, 1]} : vector<16x32xf32> to vector<16x8xf32>
    %144 = vector.extract_strided_slice %141 {offsets = [0, 0], sizes = [8, 8], strides = [1, 1]} : vector<16x8xf32> to vector<8x8xf32>
    %145 = vector.extract_strided_slice %142 {offsets = [0, 0], sizes = [8, 8], strides = [1, 1]} : vector<16x8xf32> to vector<8x8xf32>
    %cst_42 = arith.constant dense<0.000000e+00> : vector<8x8xf32>
    %146 = tpu.matmul %144, %145, %cst_42 {dimension_numbers = #tpu.dot_dimension_numbers<[1], [1], [0], [0], [0, 0, 1, 0], [], []>} : vector<8x8xf32>, vector<8x8xf32>, vector<8x8xf32> -> vector<8x8xf32>
    %147 = vector.extract_strided_slice %141 {offsets = [8, 0], sizes = [8, 8], strides = [1, 1]} : vector<16x8xf32> to vector<8x8xf32>
    %148 = vector.extract_strided_slice %142 {offsets = [8, 0], sizes = [8, 8], strides = [1, 1]} : vector<16x8xf32> to vector<8x8xf32>
    %cst_43 = arith.constant dense<0.000000e+00> : vector<8x8xf32>
    %149 = tpu.matmul %147, %148, %cst_43 {dimension_numbers = #tpu.dot_dimension_numbers<[1], [1], [0], [0], [0, 0, 1, 0], [], []>} : vector<8x8xf32>, vector<8x8xf32>, vector<8x8xf32> -> vector<8x8xf32>
    %150 = tpu.concatenate %146, %149 in 0 : vector<8x8xf32>, vector<8x8xf32> -> vector<16x8xf32>
    %151 = arith.addf %150, %16 : vector<16x8xf32>
    %cst_44 = arith.constant dense<0xFF800000> : vector<16xf32>
    %152 = vector.multi_reduction <maximumf>, %151, %cst_44 [1] : vector<16x8xf32> to vector<16xf32>
    %153 = vector.shape_cast %152 : vector<16xf32> to vector<16x1xf32>
    %154 = vector.broadcast %153 : vector<16x1xf32> to vector<16x8xf32>
    %155 = arith.subf %151, %154 : vector<16x8xf32>
    %156 = math.exp %155 : vector<16x8xf32>
    %cst_45 = arith.constant dense<0.000000e+00> : vector<16xf32>
    %157 = vector.multi_reduction <add>, %156, %cst_45 [1] : vector<16x8xf32> to vector<16xf32>
    %158 = vector.shape_cast %157 : vector<16xf32> to vector<16x1xf32>
    %159 = tpu.reciprocal %158 {approx = true} : vector<16x1xf32> -> vector<16x1xf32>
    %160 = vector.extract_strided_slice %156 {offsets = [0, 0], sizes = [8, 8], strides = [1, 1]} : vector<16x8xf32> to vector<8x8xf32>
    %161 = vector.extract_strided_slice %143 {offsets = [0, 0], sizes = [8, 8], strides = [1, 1]} : vector<16x8xf32> to vector<8x8xf32>
    %cst_46 = arith.constant dense<0.000000e+00> : vector<8x8xf32>
    %162 = tpu.matmul %160, %161, %cst_46 {dimension_numbers = #tpu.dot_dimension_numbers<[1], [0], [0], [1], [0, 0, 1, 1], [], []>} : vector<8x8xf32>, vector<8x8xf32>, vector<8x8xf32> -> vector<8x8xf32>
    %163 = vector.extract_strided_slice %156 {offsets = [8, 0], sizes = [8, 8], strides = [1, 1]} : vector<16x8xf32> to vector<8x8xf32>
    %164 = vector.extract_strided_slice %143 {offsets = [8, 0], sizes = [8, 8], strides = [1, 1]} : vector<16x8xf32> to vector<8x8xf32>
    %cst_47 = arith.constant dense<0.000000e+00> : vector<8x8xf32>
    %165 = tpu.matmul %163, %164, %cst_47 {dimension_numbers = #tpu.dot_dimension_numbers<[1], [0], [0], [1], [0, 0, 1, 1], [], []>} : vector<8x8xf32>, vector<8x8xf32>, vector<8x8xf32> -> vector<8x8xf32>
    %166 = tpu.concatenate %162, %165 in 0 : vector<8x8xf32>, vector<8x8xf32> -> vector<16x8xf32>
    %167 = vector.broadcast %159 : vector<16x1xf32> to vector<16x8xf32>
    %168 = arith.mulf %166, %167 : vector<16x8xf32>
    %169 = tpu.concatenate %84, %112, %140, %168 in 1 : vector<16x8xf32>, vector<16x8xf32>, vector<16x8xf32>, vector<16x8xf32> -> vector<16x32xf32>
    %c1 = arith.constant 1 : index
    %c0_48 = arith.constant 0 : index
    %c0_49 = arith.constant 0 : index
    %170 = vector.load %arg5[%c1, %c0_48, %c0_49] : memref<6x32x128xbf16, #tpu.memory_space<vmem>>, vector<1x32x128xbf16>
    %171 = vector.shape_cast %170 : vector<1x32x128xbf16> to vector<32x128xbf16>
    %172 = arith.truncf %169 : vector<16x32xf32> to vector<16x32xbf16>
    %cst_50 = arith.constant dense<0.000000e+00> : vector<16x128xf32>
    %173 = tpu.matmul %172, %171, %cst_50 {dimension_numbers = #tpu.dot_dimension_numbers<[1], [0], [0], [1], [0, 0, 1, 1], [], []>} : vector<16x32xbf16>, vector<32x128xbf16>, vector<16x128xf32> -> vector<16x128xf32>
    %174 = vector.extract_strided_slice %0 {offsets = [3, 0], sizes = [1, 128], strides = [1, 1]} : vector<13x128xf32> to vector<1x128xf32>
    %175 = vector.broadcast %174 : vector<1x128xf32> to vector<16x128xf32>
    %176 = arith.addf %173, %175 : vector<16x128xf32>
    %177 = vector.extract_strided_slice %176 {offsets = [0, 0], sizes = [16, 32], strides = [1, 1]} : vector<16x128xf32> to vector<16x32xf32>
    %178 = arith.addf %2, %177 : vector<16x32xf32>
    %179 = vector.extract_strided_slice %0 {offsets = [4, 0], sizes = [1, 32], strides = [1, 1]} : vector<13x128xf32> to vector<1x32xf32>
    %180 = vector.extract_strided_slice %0 {offsets = [5, 0], sizes = [1, 32], strides = [1, 1]} : vector<13x128xf32> to vector<1x32xf32>
    %cst_51 = arith.constant dense<0.000000e+00> : vector<16xf32>
    %181 = vector.multi_reduction <add>, %178, %cst_51 [1] : vector<16x32xf32> to vector<16xf32>
    %182 = vector.shape_cast %181 : vector<16xf32> to vector<16x1xf32>
    %cst_52 = arith.constant 3.200000e+01 : f32
    %183 = vector.broadcast %cst_52 : f32 to vector<16x1xf32>
    %184 = arith.divf %182, %183 : vector<16x1xf32>
    %185 = vector.broadcast %184 : vector<16x1xf32> to vector<16x32xf32>
    %186 = arith.subf %178, %185 : vector<16x32xf32>
    %187 = arith.mulf %186, %186 : vector<16x32xf32>
    %cst_53 = arith.constant dense<0.000000e+00> : vector<16xf32>
    %188 = vector.multi_reduction <add>, %187, %cst_53 [1] : vector<16x32xf32> to vector<16xf32>
    %189 = vector.shape_cast %188 : vector<16xf32> to vector<16x1xf32>
    %cst_54 = arith.constant 3.200000e+01 : f32
    %190 = vector.broadcast %cst_54 : f32 to vector<16x1xf32>
    %191 = arith.divf %189, %190 : vector<16x1xf32>
    %192 = vector.broadcast %184 : vector<16x1xf32> to vector<16x32xf32>
    %193 = arith.subf %178, %192 : vector<16x32xf32>
    %cst_55 = arith.constant 9.99999974E-6 : f32
    %194 = vector.broadcast %cst_55 : f32 to vector<16x1xf32>
    %195 = arith.addf %191, %194 : vector<16x1xf32>
    %196 = math.rsqrt %195 : vector<16x1xf32>
    %197 = vector.broadcast %196 : vector<16x1xf32> to vector<16x32xf32>
    %198 = arith.mulf %193, %197 : vector<16x32xf32>
    %199 = vector.broadcast %179 : vector<1x32xf32> to vector<16x32xf32>
    %200 = arith.mulf %198, %199 : vector<16x32xf32>
    %201 = vector.broadcast %180 : vector<1x32xf32> to vector<16x32xf32>
    %202 = arith.addf %200, %201 : vector<16x32xf32>
    %c2 = arith.constant 2 : index
    %c0_56 = arith.constant 0 : index
    %c0_57 = arith.constant 0 : index
    %203 = vector.load %arg5[%c2, %c0_56, %c0_57] : memref<6x32x128xbf16, #tpu.memory_space<vmem>>, vector<1x32x128xbf16>
    %204 = vector.shape_cast %203 : vector<1x32x128xbf16> to vector<32x128xbf16>
    %205 = arith.truncf %202 : vector<16x32xf32> to vector<16x32xbf16>
    %cst_58 = arith.constant dense<0.000000e+00> : vector<16x128xf32>
    %206 = tpu.matmul %205, %204, %cst_58 {dimension_numbers = #tpu.dot_dimension_numbers<[1], [0], [0], [1], [0, 0, 1, 1], [], []>} : vector<16x32xbf16>, vector<32x128xbf16>, vector<16x128xf32> -> vector<16x128xf32>
    %207 = vector.extract_strided_slice %0 {offsets = [6, 0], sizes = [1, 128], strides = [1, 1]} : vector<13x128xf32> to vector<1x128xf32>
    %208 = vector.broadcast %207 : vector<1x128xf32> to vector<16x128xf32>
    %209 = arith.addf %206, %208 : vector<16x128xf32>
    %210 = vector.extract_strided_slice %209 {offsets = [0, 0], sizes = [16, 32], strides = [1, 1]} : vector<16x128xf32> to vector<16x32xf32>
    %cst_59 = arith.constant 0.353553385 : f32
    %211 = vector.broadcast %cst_59 : f32 to vector<16x32xf32>
    %212 = arith.mulf %210, %211 : vector<16x32xf32>
    %c3 = arith.constant 3 : index
    %c0_60 = arith.constant 0 : index
    %c0_61 = arith.constant 0 : index
    %213 = vector.load %arg5[%c3, %c0_60, %c0_61] : memref<6x32x128xbf16, #tpu.memory_space<vmem>>, vector<1x32x128xbf16>
    %214 = vector.shape_cast %213 : vector<1x32x128xbf16> to vector<32x128xbf16>
    %215 = arith.truncf %4 : vector<16x32xf32> to vector<16x32xbf16>
    %cst_62 = arith.constant dense<0.000000e+00> : vector<16x128xf32>
    %216 = tpu.matmul %215, %214, %cst_62 {dimension_numbers = #tpu.dot_dimension_numbers<[1], [0], [0], [1], [0, 0, 1, 1], [], []>} : vector<16x32xbf16>, vector<32x128xbf16>, vector<16x128xf32> -> vector<16x128xf32>
    %217 = vector.extract_strided_slice %0 {offsets = [7, 0], sizes = [1, 128], strides = [1, 1]} : vector<13x128xf32> to vector<1x128xf32>
    %218 = vector.broadcast %217 : vector<1x128xf32> to vector<16x128xf32>
    %219 = arith.addf %216, %218 : vector<16x128xf32>
    %220 = vector.extract_strided_slice %219 {offsets = [0, 0], sizes = [16, 32], strides = [1, 1]} : vector<16x128xf32> to vector<16x32xf32>
    %221 = vector.extract_strided_slice %219 {offsets = [0, 32], sizes = [16, 32], strides = [1, 1]} : vector<16x128xf32> to vector<16x32xf32>
    %222 = vector.extract_strided_slice %212 {offsets = [0, 0], sizes = [16, 8], strides = [1, 1]} : vector<16x32xf32> to vector<16x8xf32>
    %223 = vector.extract_strided_slice %220 {offsets = [0, 0], sizes = [16, 8], strides = [1, 1]} : vector<16x32xf32> to vector<16x8xf32>
    %224 = vector.extract_strided_slice %221 {offsets = [0, 0], sizes = [16, 8], strides = [1, 1]} : vector<16x32xf32> to vector<16x8xf32>
    %225 = vector.extract_strided_slice %222 {offsets = [0, 0], sizes = [8, 8], strides = [1, 1]} : vector<16x8xf32> to vector<8x8xf32>
    %226 = vector.extract_strided_slice %223 {offsets = [0, 0], sizes = [8, 8], strides = [1, 1]} : vector<16x8xf32> to vector<8x8xf32>
    %cst_63 = arith.constant dense<0.000000e+00> : vector<8x8xf32>
    %227 = tpu.matmul %225, %226, %cst_63 {dimension_numbers = #tpu.dot_dimension_numbers<[1], [1], [0], [0], [0, 0, 1, 0], [], []>} : vector<8x8xf32>, vector<8x8xf32>, vector<8x8xf32> -> vector<8x8xf32>
    %228 = vector.extract_strided_slice %222 {offsets = [8, 0], sizes = [8, 8], strides = [1, 1]} : vector<16x8xf32> to vector<8x8xf32>
    %229 = vector.extract_strided_slice %223 {offsets = [8, 0], sizes = [8, 8], strides = [1, 1]} : vector<16x8xf32> to vector<8x8xf32>
    %cst_64 = arith.constant dense<0.000000e+00> : vector<8x8xf32>
    %230 = tpu.matmul %228, %229, %cst_64 {dimension_numbers = #tpu.dot_dimension_numbers<[1], [1], [0], [0], [0, 0, 1, 0], [], []>} : vector<8x8xf32>, vector<8x8xf32>, vector<8x8xf32> -> vector<8x8xf32>
    %231 = tpu.concatenate %227, %230 in 0 : vector<8x8xf32>, vector<8x8xf32> -> vector<16x8xf32>
    %232 = arith.addf %231, %20 : vector<16x8xf32>
    %cst_65 = arith.constant dense<0xFF800000> : vector<16xf32>
    %233 = vector.multi_reduction <maximumf>, %232, %cst_65 [1] : vector<16x8xf32> to vector<16xf32>
    %234 = vector.shape_cast %233 : vector<16xf32> to vector<16x1xf32>
    %235 = vector.broadcast %234 : vector<16x1xf32> to vector<16x8xf32>
    %236 = arith.subf %232, %235 : vector<16x8xf32>
    %237 = math.exp %236 : vector<16x8xf32>
    %cst_66 = arith.constant dense<0.000000e+00> : vector<16xf32>
    %238 = vector.multi_reduction <add>, %237, %cst_66 [1] : vector<16x8xf32> to vector<16xf32>
    %239 = vector.shape_cast %238 : vector<16xf32> to vector<16x1xf32>
    %240 = tpu.reciprocal %239 {approx = true} : vector<16x1xf32> -> vector<16x1xf32>
    %241 = vector.extract_strided_slice %237 {offsets = [0, 0], sizes = [8, 8], strides = [1, 1]} : vector<16x8xf32> to vector<8x8xf32>
    %242 = vector.extract_strided_slice %224 {offsets = [0, 0], sizes = [8, 8], strides = [1, 1]} : vector<16x8xf32> to vector<8x8xf32>
    %cst_67 = arith.constant dense<0.000000e+00> : vector<8x8xf32>
    %243 = tpu.matmul %241, %242, %cst_67 {dimension_numbers = #tpu.dot_dimension_numbers<[1], [0], [0], [1], [0, 0, 1, 1], [], []>} : vector<8x8xf32>, vector<8x8xf32>, vector<8x8xf32> -> vector<8x8xf32>
    %244 = vector.extract_strided_slice %237 {offsets = [8, 0], sizes = [8, 8], strides = [1, 1]} : vector<16x8xf32> to vector<8x8xf32>
    %245 = vector.extract_strided_slice %224 {offsets = [8, 0], sizes = [8, 8], strides = [1, 1]} : vector<16x8xf32> to vector<8x8xf32>
    %cst_68 = arith.constant dense<0.000000e+00> : vector<8x8xf32>
    %246 = tpu.matmul %244, %245, %cst_68 {dimension_numbers = #tpu.dot_dimension_numbers<[1], [0], [0], [1], [0, 0, 1, 1], [], []>} : vector<8x8xf32>, vector<8x8xf32>, vector<8x8xf32> -> vector<8x8xf32>
    %247 = tpu.concatenate %243, %246 in 0 : vector<8x8xf32>, vector<8x8xf32> -> vector<16x8xf32>
    %248 = vector.broadcast %240 : vector<16x1xf32> to vector<16x8xf32>
    %249 = arith.mulf %247, %248 : vector<16x8xf32>
    %250 = vector.extract_strided_slice %212 {offsets = [0, 8], sizes = [16, 8], strides = [1, 1]} : vector<16x32xf32> to vector<16x8xf32>
    %251 = vector.extract_strided_slice %220 {offsets = [0, 8], sizes = [16, 8], strides = [1, 1]} : vector<16x32xf32> to vector<16x8xf32>
    %252 = vector.extract_strided_slice %221 {offsets = [0, 8], sizes = [16, 8], strides = [1, 1]} : vector<16x32xf32> to vector<16x8xf32>
    %253 = vector.extract_strided_slice %250 {offsets = [0, 0], sizes = [8, 8], strides = [1, 1]} : vector<16x8xf32> to vector<8x8xf32>
    %254 = vector.extract_strided_slice %251 {offsets = [0, 0], sizes = [8, 8], strides = [1, 1]} : vector<16x8xf32> to vector<8x8xf32>
    %cst_69 = arith.constant dense<0.000000e+00> : vector<8x8xf32>
    %255 = tpu.matmul %253, %254, %cst_69 {dimension_numbers = #tpu.dot_dimension_numbers<[1], [1], [0], [0], [0, 0, 1, 0], [], []>} : vector<8x8xf32>, vector<8x8xf32>, vector<8x8xf32> -> vector<8x8xf32>
    %256 = vector.extract_strided_slice %250 {offsets = [8, 0], sizes = [8, 8], strides = [1, 1]} : vector<16x8xf32> to vector<8x8xf32>
    %257 = vector.extract_strided_slice %251 {offsets = [8, 0], sizes = [8, 8], strides = [1, 1]} : vector<16x8xf32> to vector<8x8xf32>
    %cst_70 = arith.constant dense<0.000000e+00> : vector<8x8xf32>
    %258 = tpu.matmul %256, %257, %cst_70 {dimension_numbers = #tpu.dot_dimension_numbers<[1], [1], [0], [0], [0, 0, 1, 0], [], []>} : vector<8x8xf32>, vector<8x8xf32>, vector<8x8xf32> -> vector<8x8xf32>
    %259 = tpu.concatenate %255, %258 in 0 : vector<8x8xf32>, vector<8x8xf32> -> vector<16x8xf32>
    %260 = arith.addf %259, %20 : vector<16x8xf32>
    %cst_71 = arith.constant dense<0xFF800000> : vector<16xf32>
    %261 = vector.multi_reduction <maximumf>, %260, %cst_71 [1] : vector<16x8xf32> to vector<16xf32>
    %262 = vector.shape_cast %261 : vector<16xf32> to vector<16x1xf32>
    %263 = vector.broadcast %262 : vector<16x1xf32> to vector<16x8xf32>
    %264 = arith.subf %260, %263 : vector<16x8xf32>
    %265 = math.exp %264 : vector<16x8xf32>
    %cst_72 = arith.constant dense<0.000000e+00> : vector<16xf32>
    %266 = vector.multi_reduction <add>, %265, %cst_72 [1] : vector<16x8xf32> to vector<16xf32>
    %267 = vector.shape_cast %266 : vector<16xf32> to vector<16x1xf32>
    %268 = tpu.reciprocal %267 {approx = true} : vector<16x1xf32> -> vector<16x1xf32>
    %269 = vector.extract_strided_slice %265 {offsets = [0, 0], sizes = [8, 8], strides = [1, 1]} : vector<16x8xf32> to vector<8x8xf32>
    %270 = vector.extract_strided_slice %252 {offsets = [0, 0], sizes = [8, 8], strides = [1, 1]} : vector<16x8xf32> to vector<8x8xf32>
    %cst_73 = arith.constant dense<0.000000e+00> : vector<8x8xf32>
    %271 = tpu.matmul %269, %270, %cst_73 {dimension_numbers = #tpu.dot_dimension_numbers<[1], [0], [0], [1], [0, 0, 1, 1], [], []>} : vector<8x8xf32>, vector<8x8xf32>, vector<8x8xf32> -> vector<8x8xf32>
    %272 = vector.extract_strided_slice %265 {offsets = [8, 0], sizes = [8, 8], strides = [1, 1]} : vector<16x8xf32> to vector<8x8xf32>
    %273 = vector.extract_strided_slice %252 {offsets = [8, 0], sizes = [8, 8], strides = [1, 1]} : vector<16x8xf32> to vector<8x8xf32>
    %cst_74 = arith.constant dense<0.000000e+00> : vector<8x8xf32>
    %274 = tpu.matmul %272, %273, %cst_74 {dimension_numbers = #tpu.dot_dimension_numbers<[1], [0], [0], [1], [0, 0, 1, 1], [], []>} : vector<8x8xf32>, vector<8x8xf32>, vector<8x8xf32> -> vector<8x8xf32>
    %275 = tpu.concatenate %271, %274 in 0 : vector<8x8xf32>, vector<8x8xf32> -> vector<16x8xf32>
    %276 = vector.broadcast %268 : vector<16x1xf32> to vector<16x8xf32>
    %277 = arith.mulf %275, %276 : vector<16x8xf32>
    %278 = vector.extract_strided_slice %212 {offsets = [0, 16], sizes = [16, 8], strides = [1, 1]} : vector<16x32xf32> to vector<16x8xf32>
    %279 = vector.extract_strided_slice %220 {offsets = [0, 16], sizes = [16, 8], strides = [1, 1]} : vector<16x32xf32> to vector<16x8xf32>
    %280 = vector.extract_strided_slice %221 {offsets = [0, 16], sizes = [16, 8], strides = [1, 1]} : vector<16x32xf32> to vector<16x8xf32>
    %281 = vector.extract_strided_slice %278 {offsets = [0, 0], sizes = [8, 8], strides = [1, 1]} : vector<16x8xf32> to vector<8x8xf32>
    %282 = vector.extract_strided_slice %279 {offsets = [0, 0], sizes = [8, 8], strides = [1, 1]} : vector<16x8xf32> to vector<8x8xf32>
    %cst_75 = arith.constant dense<0.000000e+00> : vector<8x8xf32>
    %283 = tpu.matmul %281, %282, %cst_75 {dimension_numbers = #tpu.dot_dimension_numbers<[1], [1], [0], [0], [0, 0, 1, 0], [], []>} : vector<8x8xf32>, vector<8x8xf32>, vector<8x8xf32> -> vector<8x8xf32>
    %284 = vector.extract_strided_slice %278 {offsets = [8, 0], sizes = [8, 8], strides = [1, 1]} : vector<16x8xf32> to vector<8x8xf32>
    %285 = vector.extract_strided_slice %279 {offsets = [8, 0], sizes = [8, 8], strides = [1, 1]} : vector<16x8xf32> to vector<8x8xf32>
    %cst_76 = arith.constant dense<0.000000e+00> : vector<8x8xf32>
    %286 = tpu.matmul %284, %285, %cst_76 {dimension_numbers = #tpu.dot_dimension_numbers<[1], [1], [0], [0], [0, 0, 1, 0], [], []>} : vector<8x8xf32>, vector<8x8xf32>, vector<8x8xf32> -> vector<8x8xf32>
    %287 = tpu.concatenate %283, %286 in 0 : vector<8x8xf32>, vector<8x8xf32> -> vector<16x8xf32>
    %288 = arith.addf %287, %20 : vector<16x8xf32>
    %cst_77 = arith.constant dense<0xFF800000> : vector<16xf32>
    %289 = vector.multi_reduction <maximumf>, %288, %cst_77 [1] : vector<16x8xf32> to vector<16xf32>
    %290 = vector.shape_cast %289 : vector<16xf32> to vector<16x1xf32>
    %291 = vector.broadcast %290 : vector<16x1xf32> to vector<16x8xf32>
    %292 = arith.subf %288, %291 : vector<16x8xf32>
    %293 = math.exp %292 : vector<16x8xf32>
    %cst_78 = arith.constant dense<0.000000e+00> : vector<16xf32>
    %294 = vector.multi_reduction <add>, %293, %cst_78 [1] : vector<16x8xf32> to vector<16xf32>
    %295 = vector.shape_cast %294 : vector<16xf32> to vector<16x1xf32>
    %296 = tpu.reciprocal %295 {approx = true} : vector<16x1xf32> -> vector<16x1xf32>
    %297 = vector.extract_strided_slice %293 {offsets = [0, 0], sizes = [8, 8], strides = [1, 1]} : vector<16x8xf32> to vector<8x8xf32>
    %298 = vector.extract_strided_slice %280 {offsets = [0, 0], sizes = [8, 8], strides = [1, 1]} : vector<16x8xf32> to vector<8x8xf32>
    %cst_79 = arith.constant dense<0.000000e+00> : vector<8x8xf32>
    %299 = tpu.matmul %297, %298, %cst_79 {dimension_numbers = #tpu.dot_dimension_numbers<[1], [0], [0], [1], [0, 0, 1, 1], [], []>} : vector<8x8xf32>, vector<8x8xf32>, vector<8x8xf32> -> vector<8x8xf32>
    %300 = vector.extract_strided_slice %293 {offsets = [8, 0], sizes = [8, 8], strides = [1, 1]} : vector<16x8xf32> to vector<8x8xf32>
    %301 = vector.extract_strided_slice %280 {offsets = [8, 0], sizes = [8, 8], strides = [1, 1]} : vector<16x8xf32> to vector<8x8xf32>
    %cst_80 = arith.constant dense<0.000000e+00> : vector<8x8xf32>
    %302 = tpu.matmul %300, %301, %cst_80 {dimension_numbers = #tpu.dot_dimension_numbers<[1], [0], [0], [1], [0, 0, 1, 1], [], []>} : vector<8x8xf32>, vector<8x8xf32>, vector<8x8xf32> -> vector<8x8xf32>
    %303 = tpu.concatenate %299, %302 in 0 : vector<8x8xf32>, vector<8x8xf32> -> vector<16x8xf32>
    %304 = vector.broadcast %296 : vector<16x1xf32> to vector<16x8xf32>
    %305 = arith.mulf %303, %304 : vector<16x8xf32>
    %306 = vector.extract_strided_slice %212 {offsets = [0, 24], sizes = [16, 8], strides = [1, 1]} : vector<16x32xf32> to vector<16x8xf32>
    %307 = vector.extract_strided_slice %220 {offsets = [0, 24], sizes = [16, 8], strides = [1, 1]} : vector<16x32xf32> to vector<16x8xf32>
    %308 = vector.extract_strided_slice %221 {offsets = [0, 24], sizes = [16, 8], strides = [1, 1]} : vector<16x32xf32> to vector<16x8xf32>
    %309 = vector.extract_strided_slice %306 {offsets = [0, 0], sizes = [8, 8], strides = [1, 1]} : vector<16x8xf32> to vector<8x8xf32>
    %310 = vector.extract_strided_slice %307 {offsets = [0, 0], sizes = [8, 8], strides = [1, 1]} : vector<16x8xf32> to vector<8x8xf32>
    %cst_81 = arith.constant dense<0.000000e+00> : vector<8x8xf32>
    %311 = tpu.matmul %309, %310, %cst_81 {dimension_numbers = #tpu.dot_dimension_numbers<[1], [1], [0], [0], [0, 0, 1, 0], [], []>} : vector<8x8xf32>, vector<8x8xf32>, vector<8x8xf32> -> vector<8x8xf32>
    %312 = vector.extract_strided_slice %306 {offsets = [8, 0], sizes = [8, 8], strides = [1, 1]} : vector<16x8xf32> to vector<8x8xf32>
    %313 = vector.extract_strided_slice %307 {offsets = [8, 0], sizes = [8, 8], strides = [1, 1]} : vector<16x8xf32> to vector<8x8xf32>
    %cst_82 = arith.constant dense<0.000000e+00> : vector<8x8xf32>
    %314 = tpu.matmul %312, %313, %cst_82 {dimension_numbers = #tpu.dot_dimension_numbers<[1], [1], [0], [0], [0, 0, 1, 0], [], []>} : vector<8x8xf32>, vector<8x8xf32>, vector<8x8xf32> -> vector<8x8xf32>
    %315 = tpu.concatenate %311, %314 in 0 : vector<8x8xf32>, vector<8x8xf32> -> vector<16x8xf32>
    %316 = arith.addf %315, %20 : vector<16x8xf32>
    %cst_83 = arith.constant dense<0xFF800000> : vector<16xf32>
    %317 = vector.multi_reduction <maximumf>, %316, %cst_83 [1] : vector<16x8xf32> to vector<16xf32>
    %318 = vector.shape_cast %317 : vector<16xf32> to vector<16x1xf32>
    %319 = vector.broadcast %318 : vector<16x1xf32> to vector<16x8xf32>
    %320 = arith.subf %316, %319 : vector<16x8xf32>
    %321 = math.exp %320 : vector<16x8xf32>
    %cst_84 = arith.constant dense<0.000000e+00> : vector<16xf32>
    %322 = vector.multi_reduction <add>, %321, %cst_84 [1] : vector<16x8xf32> to vector<16xf32>
    %323 = vector.shape_cast %322 : vector<16xf32> to vector<16x1xf32>
    %324 = tpu.reciprocal %323 {approx = true} : vector<16x1xf32> -> vector<16x1xf32>
    %325 = vector.extract_strided_slice %321 {offsets = [0, 0], sizes = [8, 8], strides = [1, 1]} : vector<16x8xf32> to vector<8x8xf32>
    %326 = vector.extract_strided_slice %308 {offsets = [0, 0], sizes = [8, 8], strides = [1, 1]} : vector<16x8xf32> to vector<8x8xf32>
    %cst_85 = arith.constant dense<0.000000e+00> : vector<8x8xf32>
    %327 = tpu.matmul %325, %326, %cst_85 {dimension_numbers = #tpu.dot_dimension_numbers<[1], [0], [0], [1], [0, 0, 1, 1], [], []>} : vector<8x8xf32>, vector<8x8xf32>, vector<8x8xf32> -> vector<8x8xf32>
    %328 = vector.extract_strided_slice %321 {offsets = [8, 0], sizes = [8, 8], strides = [1, 1]} : vector<16x8xf32> to vector<8x8xf32>
    %329 = vector.extract_strided_slice %308 {offsets = [8, 0], sizes = [8, 8], strides = [1, 1]} : vector<16x8xf32> to vector<8x8xf32>
    %cst_86 = arith.constant dense<0.000000e+00> : vector<8x8xf32>
    %330 = tpu.matmul %328, %329, %cst_86 {dimension_numbers = #tpu.dot_dimension_numbers<[1], [0], [0], [1], [0, 0, 1, 1], [], []>} : vector<8x8xf32>, vector<8x8xf32>, vector<8x8xf32> -> vector<8x8xf32>
    %331 = tpu.concatenate %327, %330 in 0 : vector<8x8xf32>, vector<8x8xf32> -> vector<16x8xf32>
    %332 = vector.broadcast %324 : vector<16x1xf32> to vector<16x8xf32>
    %333 = arith.mulf %331, %332 : vector<16x8xf32>
    %334 = tpu.concatenate %249, %277, %305, %333 in 1 : vector<16x8xf32>, vector<16x8xf32>, vector<16x8xf32>, vector<16x8xf32> -> vector<16x32xf32>
    %c4 = arith.constant 4 : index
    %c0_87 = arith.constant 0 : index
    %c0_88 = arith.constant 0 : index
    %335 = vector.load %arg5[%c4, %c0_87, %c0_88] : memref<6x32x128xbf16, #tpu.memory_space<vmem>>, vector<1x32x128xbf16>
    %336 = vector.shape_cast %335 : vector<1x32x128xbf16> to vector<32x128xbf16>
    %337 = arith.truncf %334 : vector<16x32xf32> to vector<16x32xbf16>
    %cst_89 = arith.constant dense<0.000000e+00> : vector<16x128xf32>
    %338 = tpu.matmul %337, %336, %cst_89 {dimension_numbers = #tpu.dot_dimension_numbers<[1], [0], [0], [1], [0, 0, 1, 1], [], []>} : vector<16x32xbf16>, vector<32x128xbf16>, vector<16x128xf32> -> vector<16x128xf32>
    %339 = vector.extract_strided_slice %0 {offsets = [8, 0], sizes = [1, 128], strides = [1, 1]} : vector<13x128xf32> to vector<1x128xf32>
    %340 = vector.broadcast %339 : vector<1x128xf32> to vector<16x128xf32>
    %341 = arith.addf %338, %340 : vector<16x128xf32>
    %342 = vector.extract_strided_slice %341 {offsets = [0, 0], sizes = [16, 32], strides = [1, 1]} : vector<16x128xf32> to vector<16x32xf32>
    %343 = arith.addf %178, %342 : vector<16x32xf32>
    %344 = vector.extract_strided_slice %0 {offsets = [9, 0], sizes = [1, 32], strides = [1, 1]} : vector<13x128xf32> to vector<1x32xf32>
    %345 = vector.extract_strided_slice %0 {offsets = [10, 0], sizes = [1, 32], strides = [1, 1]} : vector<13x128xf32> to vector<1x32xf32>
    %cst_90 = arith.constant dense<0.000000e+00> : vector<16xf32>
    %346 = vector.multi_reduction <add>, %343, %cst_90 [1] : vector<16x32xf32> to vector<16xf32>
    %347 = vector.shape_cast %346 : vector<16xf32> to vector<16x1xf32>
    %cst_91 = arith.constant 3.200000e+01 : f32
    %348 = vector.broadcast %cst_91 : f32 to vector<16x1xf32>
    %349 = arith.divf %347, %348 : vector<16x1xf32>
    %350 = vector.broadcast %349 : vector<16x1xf32> to vector<16x32xf32>
    %351 = arith.subf %343, %350 : vector<16x32xf32>
    %352 = arith.mulf %351, %351 : vector<16x32xf32>
    %cst_92 = arith.constant dense<0.000000e+00> : vector<16xf32>
    %353 = vector.multi_reduction <add>, %352, %cst_92 [1] : vector<16x32xf32> to vector<16xf32>
    %354 = vector.shape_cast %353 : vector<16xf32> to vector<16x1xf32>
    %cst_93 = arith.constant 3.200000e+01 : f32
    %355 = vector.broadcast %cst_93 : f32 to vector<16x1xf32>
    %356 = arith.divf %354, %355 : vector<16x1xf32>
    %357 = vector.broadcast %349 : vector<16x1xf32> to vector<16x32xf32>
    %358 = arith.subf %343, %357 : vector<16x32xf32>
    %cst_94 = arith.constant 9.99999974E-6 : f32
    %359 = vector.broadcast %cst_94 : f32 to vector<16x1xf32>
    %360 = arith.addf %356, %359 : vector<16x1xf32>
    %361 = math.rsqrt %360 : vector<16x1xf32>
    %362 = vector.broadcast %361 : vector<16x1xf32> to vector<16x32xf32>
    %363 = arith.mulf %358, %362 : vector<16x32xf32>
    %364 = vector.broadcast %344 : vector<1x32xf32> to vector<16x32xf32>
    %365 = arith.mulf %363, %364 : vector<16x32xf32>
    %366 = vector.broadcast %345 : vector<1x32xf32> to vector<16x32xf32>
    %367 = arith.addf %365, %366 : vector<16x32xf32>
    %c5 = arith.constant 5 : index
    %c0_95 = arith.constant 0 : index
    %c0_96 = arith.constant 0 : index
    %368 = vector.load %arg5[%c5, %c0_95, %c0_96] : memref<6x32x128xbf16, #tpu.memory_space<vmem>>, vector<1x32x128xbf16>
    %369 = vector.shape_cast %368 : vector<1x32x128xbf16> to vector<32x128xbf16>
    %370 = arith.truncf %367 : vector<16x32xf32> to vector<16x32xbf16>
    %cst_97 = arith.constant dense<0.000000e+00> : vector<16x128xf32>
    %371 = tpu.matmul %370, %369, %cst_97 {dimension_numbers = #tpu.dot_dimension_numbers<[1], [0], [0], [1], [0, 0, 1, 1], [], []>} : vector<16x32xbf16>, vector<32x128xbf16>, vector<16x128xf32> -> vector<16x128xf32>
    %372 = vector.extract_strided_slice %0 {offsets = [11, 0], sizes = [1, 128], strides = [1, 1]} : vector<13x128xf32> to vector<1x128xf32>
    %373 = vector.broadcast %372 : vector<1x128xf32> to vector<16x128xf32>
    %374 = arith.addf %371, %373 : vector<16x128xf32>
    %cst_98 = arith.constant 0.000000e+00 : f32
    %375 = vector.broadcast %cst_98 : f32 to vector<16x128xf32>
    %376 = arith.maximumf %374, %375 : vector<16x128xf32>
    %c0_99 = arith.constant 0 : index
    %c0_100 = arith.constant 0 : index
    %377 = vector.load %arg6[%c0_99, %c0_100] : memref<128x32xbf16, #tpu.memory_space<vmem>>, vector<128x32xbf16>
    %378 = arith.truncf %376 : vector<16x128xf32> to vector<16x128xbf16>
    %cst_101 = arith.constant dense<0.000000e+00> : vector<16x32xf32>
    %379 = tpu.matmul %378, %377, %cst_101 {dimension_numbers = #tpu.dot_dimension_numbers<[1], [0], [0], [1], [0, 0, 1, 1], [], []>} : vector<16x128xbf16>, vector<128x32xbf16>, vector<16x32xf32> -> vector<16x32xf32>
    %380 = arith.addf %343, %379 : vector<16x32xf32>
    %381 = vector.extract_strided_slice %0 {offsets = [12, 0], sizes = [1, 32], strides = [1, 1]} : vector<13x128xf32> to vector<1x32xf32>
    %382 = vector.broadcast %381 : vector<1x32xf32> to vector<16x32xf32>
    %383 = arith.addf %380, %382 : vector<16x32xf32>
    %384 = vector.shape_cast %383 : vector<16x32xf32> to vector<2x8x32xf32>
    %c0_102 = arith.constant 0 : index
    %c0_103 = arith.constant 0 : index
    %c0_104 = arith.constant 0 : index
    %385 = vector.load %arg8[%c0_102, %c0_103, %c0_104] : memref<2x8x32xf32, #tpu.memory_space<vmem>>, vector<2x8x32xf32>
    tpu.vector_store %arg8[%c0_102, %c0_103, %c0_104], %384 {strides = array<i32>} : memref<2x8x32xf32, #tpu.memory_space<vmem>>, vector<2x8x32xf32>,
    return
  }
  func.func @transform_0(%arg0: i32) -> (i32, i32, i32) {
    %c0_i32 = arith.constant 0 : i32
    %c0_i32_0 = arith.constant 0 : i32
    %c0_i32_1 = arith.constant 0 : i32
    return %arg0, %c0_i32, %c0_i32_0 : i32, i32, i32
  }
  func.func @transform_1(%arg0: i32) -> (i32, i32, i32) {
    %c0_i32 = arith.constant 0 : i32
    %c0_i32_0 = arith.constant 0 : i32
    %c0_i32_1 = arith.constant 0 : i32
    return %arg0, %c0_i32, %c0_i32_0 : i32, i32, i32
  }
  func.func @transform_2(%arg0: i32) -> (i32, i32, i32) {
    %c0_i32 = arith.constant 0 : i32
    %c0_i32_0 = arith.constant 0 : i32
    %c0_i32_1 = arith.constant 0 : i32
    return %arg0, %c0_i32, %c0_i32_0 : i32, i32, i32
  }
  func.func @transform_3(%arg0: i32) -> (i32, i32, i32) {
    %c0_i32 = arith.constant 0 : i32
    %c0_i32_0 = arith.constant 0 : i32
    %c0_i32_1 = arith.constant 0 : i32
    return %arg0, %c0_i32, %c0_i32_0 : i32, i32, i32
  }
  func.func @transform_4(%arg0: i32) -> (i32, i32, i32) {
    %c0_i32 = arith.constant 0 : i32
    %c0_i32_0 = arith.constant 0 : i32
    %c0_i32_1 = arith.constant 0 : i32
    %c0_i32_2 = arith.constant 0 : i32
    return %c0_i32, %c0_i32_0, %c0_i32_1 : i32, i32, i32
  }
  func.func @transform_5(%arg0: i32) -> (i32, i32) {
    %c0_i32 = arith.constant 0 : i32
    %c0_i32_0 = arith.constant 0 : i32
    %c0_i32_1 = arith.constant 0 : i32
    return %c0_i32, %c0_i32_0 : i32, i32
  }
  func.func @transform_6(%arg0: i32) -> (i32, i32) {
    %c0_i32 = arith.constant 0 : i32
    %c0_i32_0 = arith.constant 0 : i32
    %c0_i32_1 = arith.constant 0 : i32
    return %c0_i32, %c0_i32_0 : i32, i32
  }
  func.func @transform_7(%arg0: i32) -> (i32, i32, i32) {
    %c0_i32 = arith.constant 0 : i32
    %c0_i32_0 = arith.constant 0 : i32
    %c0_i32_1 = arith.constant 0 : i32
    return %arg0, %c0_i32, %c0_i32_0 : i32, i32, i32
  }
}

</mosaic_0001>

<llo_original>
// kernel: tpu_custom_call.1
$region0: #{tpu_custom_call.1}
  #allocation0 [shape = 'u32[]', space=smem, size = 0x4, offset = 0x4, fixed_abs, tag = 'smem constant byte address 0x4 - core index']
  #allocation1 [shape = 'u32[144,128]{1,0:T(1,128)}', space=vmem, size = 0x12000, scoped, tag = 'internal scratch']
  %s0 = inlined_call_operand.vmem [shape: f32[2,8,32], index: 0, kind: input, shape index: {}]
  %s1 = inlined_call_operand.vmem [shape: f32[2,8,32], index: 1, kind: input, shape index: {}]
  %s2 = inlined_call_operand.vmem [shape: f32[2,1,8], index: 2, kind: input, shape index: {}]
  %s3 = inlined_call_operand.vmem [shape: f32[2,1,8], index: 3, kind: input, shape index: {}]
  %s4 = inlined_call_operand.hbm [shape: bf16[6,32,128], index: 4, kind: input, shape index: {}]
  %s5 = inlined_call_operand.vmem [shape: bf16[128,32], index: 5, kind: input, shape index: {}]
  %s6 = inlined_call_operand.vmem [shape: f32[13,128], index: 6, kind: input, shape index: {}]
  %s7 = inlined_call_operand.hbm [shape: f32[2,8,32], index: 7, kind: output, shape index: {}]
  %s8 = sld [smem:[#allocation0]]
  $region42: #{tpu_custom_call.1} parent=0
    _
  %s10 = ssub.s32 1, %s8
  %s11 = scalar_select 0, %s10, %s8
  $region1: #{tpu_custom_call.1} parent=0
    #allocation2 [shape = 'u8[49152]{0}', space=vmem, size = 0xc000, scoped, tag = 'input window, operand 4, single buffered']
    #allocation3 [shape = 's32[1]{0}', space=sflag, size = 0x4, scoped, tag = 'scoped memory for tpu_custom_call.1']
    #allocation4 [shape = 's32[1]{0}', space=sflag, size = 0x4, scoped, tag = 'scoped memory for tpu_custom_call.1']
    #allocation5 [shape = 'u8[8192]{0}', space=vmem, size = 0x2000, scoped, tag = 'output window, operand 0, single buffered']
    %12 = vsyncpa [#allocation3], 0
    %13 = vsyncpa [#allocation4], 0
    // Predicated region
    $region2: #{tpu_custom_call.1} parent=1 // pred_check
      _
    $region3: #{tpu_custom_call.1} parent=1 // pred_check_branch
      %15 = sbr.rel (0) target = $region5
    $region4: #{tpu_custom_call.1} parent=1 // pred_region
      _
    $region5: #{tpu_custom_call.1} parent=1 // pred_fallthru
      _
    // Predicated region
    $region6: #{tpu_custom_call.1} parent=1 // pred_check
      _
    $region7: #{tpu_custom_call.1} parent=1 // pred_check_branch
      %17 = sbr.rel (0) target = $region9
    $region8: #{tpu_custom_call.1} parent=1 // pred_region
      _
    $region9: #{tpu_custom_call.1} parent=1 // pred_fallthru
      _
    // Predicated region
    $region10: #{tpu_custom_call.1} parent=1 // pred_check
      _
    $region11: #{tpu_custom_call.1} parent=1 // pred_check_branch
      %19 = sbr.rel (0) target = $region13
    $region12: #{tpu_custom_call.1} parent=1 // pred_region
      _
    $region13: #{tpu_custom_call.1} parent=1 // pred_fallthru
      _
    // Predicated region
    $region14: #{tpu_custom_call.1} parent=1 // pred_check
      _
    $region15: #{tpu_custom_call.1} parent=1 // pred_check_branch
      %21 = sbr.rel (0) target = $region17
    $region16: #{tpu_custom_call.1} parent=1 // pred_region
      _
    $region17: #{tpu_custom_call.1} parent=1 // pred_fallthru
      _
    // Predicated region
    $region18: #{tpu_custom_call.1} parent=1 // pred_check
      _
    $region19: #{tpu_custom_call.1} parent=1 // pred_check_branch
      %23 = sbr.rel (0) target = $region21
    $region20: #{tpu_custom_call.1} parent=1 // pred_region
      %s25 = ssub.s32 1536, 1536
      %26 = vsyncadd [#allocation3], %s25
      %s27 = sshll.u32 [#allocation2], 4
      %s28 = int_to_ptr.vmem [resolvable:$true] %s27
      %33 = dma.hbm_to_vmem [thread:$0]  %s4, 1536, %s28, [#allocation3], 64, 64, 4
    $region21: #{tpu_custom_call.1} parent=1 // pred_fallthru
      _
    // Predicated region
    $region22: #{tpu_custom_call.1} parent=1 // pred_check
      _
    $region23: #{tpu_custom_call.1} parent=1 // pred_check_branch
      %35 = sbr.rel (0) target = $region25
    $region24: #{tpu_custom_call.1} parent=1 // pred_region
      _
    $region25: #{tpu_custom_call.1} parent=1 // pred_fallthru
      _
    // Predicated region
    $region26: #{tpu_custom_call.1} parent=1 // pred_check
      _
    $region27: #{tpu_custom_call.1} parent=1 // pred_check_branch
      %37 = sbr.rel (0) target = $region29
    $region28: #{tpu_custom_call.1} parent=1 // pred_region
      _
    $region29: #{tpu_custom_call.1} parent=1 // pred_fallthru
      _
    // Predicated region
    $region30: #{tpu_custom_call.1} parent=1 // pred_check
      _
    $region31: #{tpu_custom_call.1} parent=1 // pred_check_branch
      %39 = sbr.rel (0) target = $region33
    $region32: #{tpu_custom_call.1} parent=1 // pred_region
      %40 = dma.done [#allocation3], 1536
    $region33: #{tpu_custom_call.1} parent=1 // pred_fallthru
      _
    %v42 = vld [vmem:[%s6] sm:$0xff]
    %v43 = vld [vmem:[%s6 + $0x8] sm:$0x1f]
    %v44 = vld [vmem:[%s0] sm:$0xff]
    %v45 = vld [vmem:[%s0 + $0x8] sm:$0xff]
    %v46 = vld [vmem:[%s1] sm:$0xff]
    %v47 = vld [vmem:[%s1 + $0x8] sm:$0xff]
    %v48 = vlaneseq
    %v49 = vshrl.u32 %v48, 7
    %v50 = vlaneseq
    %v51 = vand.u32 %v50, 127
    %vm52 = vcmp.gt.s32.totalorder %v51, %v49
    %v53 = vsel %vm52, -1e+09, 0.0
    %v54 = vld [vmem:[%s2] sm:$0x1]
    %v55 = vld [vmem:[%s2 + $0x1] sm:$0x1]
    %v58 = vlaneseq
    %v59 = vshrl.u32 %v58, 7
    %v60 = vsub.s32 0, %v59
    %v61 = vrot.slane %v54, %v60
    %v62 = vlaneseq
    %v63 = vshrl.u32 %v62, 7
    %v64 = vsub.s32 0, %v63
    %v65 = vrot.slane %v55, %v64
    %v68 = vadd.f32 %v53, %v61
    %v69 = vadd.f32 %v53, %v65
    %v70 = vld [vmem:[%s3] sm:$0x1]
    %v71 = vld [vmem:[%s3 + $0x1] sm:$0x1]
    %v74 = vlaneseq
    %v75 = vshrl.u32 %v74, 7
    %v76 = vsub.s32 0, %v75
    %v77 = vrot.slane %v70, %v76
    %v78 = vlaneseq
    %v79 = vshrl.u32 %v78, 7
    %v80 = vsub.s32 0, %v79
    %v81 = vrot.slane %v71, %v80
    %vm84 = vcmask 261120
    %v85 = vsel %vm84, %v44, 0.0
    %86 = vadd.xlane.f32.xlu0 %v85
    %v87 = vpop.xlane.xlu0 %86
    %v88 = vsel %vm84, %v45, 0.0
    %89 = vadd.xlane.f32.xlu0 %v88
    %v90 = vpop.xlane.xlu0 %89
    %v91 = vrcp.pop 32.0
    %v92 = vmul.f32 %v87, %v91
    %v93 = vmul.f32 %v90, %v91
    %v94 = vsub.f32 %v44, %v92
    %v95 = vsub.f32 %v45, %v93
    %v96 = vmul.f32 %v94, %v94
    %v97 = vmul.f32 %v95, %v95
    %v98 = vsel %vm84, %v96, 0.0
    %99 = vadd.xlane.f32.xlu0 %v98
    %v100 = vpop.xlane.xlu0 %99
    %v101 = vsel %vm84, %v97, 0.0
    %102 = vadd.xlane.f32.xlu0 %v101
    %v103 = vpop.xlane.xlu0 %102
    %v104 = vmul.f32 %v100, %v91
    %v105 = vmul.f32 %v103, %v91
    %v106 = vadd.f32 %v104, 1e-05
    %v107 = vadd.f32 %v105, 1e-05
    %v108 = vrsqrt.pop %v106
    %v109 = vrsqrt.pop %v107
    %v110 = vmul.f32 %v94, %v108
    %v111 = vmul.f32 %v95, %v109
    %v112 = vlaneseq
    %v113 = vshrl.u32 %v112, 7
    %v114 = vsub.s32 0, %v113
    %v115 = vrot.slane %v42, %v114
    %v116 = vmul.f32 %v110, %v115
    %v117 = vmul.f32 %v111, %v115
    %v118 = vlaneseq
    %v119 = vshrl.u32 %v118, 7
    %v120 = vsub.s32 1, %v119
    %v121 = vrot.slane %v42, %v120
    %v122 = vadd.f32 %v116, %v121
    %v123 = vadd.f32 %v117, %v121
    %v124 = vld [vmem:[#allocation2] sm:$0xf]
    %v125 = vld [vmem:[#allocation2 + $0x4] sm:$0xf]
    %v126 = vld [vmem:[#allocation2 + $0x8] sm:$0xf]
    %v127 = vld [vmem:[#allocation2 + $0xc] sm:$0xf]
    %v128 = vpack.c.bf16 %v123, %v122
    %v129 = vlaneseq
    %v130 = vshrl.u32 %v129, 7
    %v131 = vsub.s32 2, %v130
    %v132 = vrot.slane %v42, %v131
    %v137 = vunpack.c.l.b16 %v124
    %v138 = vunpack.c.l.b16 %v125
    %v139 = vunpack.c.l.b16 %v126
    %v140 = vunpack.c.l.b16 %v127
    %v141 = vpack.c.b16 %v138, %v137
    %v142 = vpack.c.b16 %v140, %v139
    %v146 = vsel %vm84, %v128, 0
    %148 = vmatprep.subr.bf16.mxu0 0
    %149 = vmatpush1.bf16.msra.mxu0 %v141
    %150 = vmatprep.subr.bf16.mxu0 0
    %151 = vmatpush1.bf16.msra.mxu0 %v142
    %152 = vmatprep.subr.bf16.mxu0 0
    %153 = vmatpush1.bf16.msra.mxu0 0
    %154 = vmatprep.subr.bf16.mxu0 0
    %155 = vmatpush1.bf16.msra.mxu0 0
    %156 = vmatprep.subr.bf16.mxu0 0
    %157 = vmatpush1.bf16.msra.mxu0 0
    %158 = vmatprep.subr.bf16.mxu0 0
    %159 = vmatpush1.bf16.msra.mxu0 0
    %160 = vmatprep.subr.bf16.mxu0 0
    %161 = vmatpush1.bf16.msra.mxu0 0
    %162 = vmatprep.subr.bf16.mxu0 0
    %163 = vmatpush1.bf16.msra.mxu0 0
    %164 = vmatprep.subr.bf16.mxu0 0
    %165 = vmatpush1.bf16.msra.mxu0 0
    %166 = vmatprep.subr.bf16.mxu0 0
    %167 = vmatpush1.bf16.msra.mxu0 0
    %168 = vmatprep.subr.bf16.mxu0 0
    %169 = vmatpush1.bf16.msra.mxu0 0
    %170 = vmatprep.subr.bf16.mxu0 0
    %171 = vmatpush1.bf16.msra.mxu0 0
    %172 = vmatprep.subr.bf16.mxu0 0
    %173 = vmatpush1.bf16.msra.mxu0 0
    %174 = vmatprep.subr.bf16.mxu0 0
    %175 = vmatpush1.bf16.msra.mxu0 0
    %176 = vmatprep.subr.bf16.mxu0 0
    %177 = vmatpush1.bf16.msra.mxu0 0
    %178 = vmatprep.subr.bf16.mxu0 0
    %179 = vmatpush1.bf16.msra.mxu0 0
    %180 = vmatprep.mubr.bf16.mxu0 0
    %181 = vmatmul.mubr.bf16.gmra.mrb[0].mxu0 %v146
    %v182 = vpop.f32.mrb[0].mxu0
    %v183 = vadd.f32 %v132, %v182
    %v184 = vpop.f32.mrb[0].mxu0
    %v185 = vpop.f32.mrb[0].mxu0
    %v186 = vadd.f32 %v132, %v185
    %v187 = vpop.f32.mrb[0].mxu0
    %188 = vdwg.mxu0
    %v189 = vmul.f32 %v183, 0.35355338
    %v190 = vmul.f32 %v186, 0.35355338
    %192 = vrot.lane.b32.xlu0 %v183, 96
    %v193 = vpop.permute.xlu0 %192
    %vm194 = vcmask 64512
    %v196 = vsel %vm194, %v189, 0
    %v198 = vsel %vm194, %v193, 0
    %200 = vmatprep.subr.mxu0 0.0
    %201 = vmatpush1.xpose.msra.mxu0 %v198
    %202 = vmatprep.subr.mxu0 0.0
    %203 = vmatpush1.xpose.msra.mxu0 0.0
    %204 = vmatprep.subr.mxu0 0.0
    %205 = vmatpush1.xpose.msra.mxu0 0.0
    %206 = vmatprep.subr.mxu0 0.0
    %207 = vmatpush1.xpose.msra.mxu0 0.0
    %208 = vmatprep.subr.mxu0 0.0
    %209 = vmatpush1.xpose.msra.mxu0 0.0
    %210 = vmatprep.subr.mxu0 0.0
    %211 = vmatpush1.xpose.msra.mxu0 0.0
    %212 = vmatprep.subr.mxu0 0.0
    %213 = vmatpush1.xpose.msra.mxu0 0.0
    %214 = vmatprep.subr.mxu0 0.0
    %215 = vmatpush1.xpose.msra.mxu0 0.0
    %216 = vmatprep.subr.mxu0 0.0
    %217 = vmatpush1.xpose.msra.mxu0 0.0
    %218 = vmatprep.subr.mxu0 0.0
    %219 = vmatpush1.xpose.msra.mxu0 0.0
    %220 = vmatprep.subr.mxu0 0.0
    %221 = vmatpush1.xpose.msra.mxu0 0.0
    %222 = vmatprep.subr.mxu0 0.0
    %223 = vmatpush1.xpose.msra.mxu0 0.0
    %224 = vmatprep.subr.mxu0 0.0
    %225 = vmatpush1.xpose.msra.mxu0 0.0
    %226 = vmatprep.subr.mxu0 0.0
    %227 = vmatpush1.xpose.msra.mxu0 0.0
    %228 = vmatprep.subr.mxu0 0.0
    %229 = vmatpush1.xpose.msra.mxu0 0.0
    %230 = vmatprep.subr.mxu0 0.0
    %231 = vmatpush1.xpose.msra.mxu0 0.0
    %232 = vmatprep.subr.mxu0 0.0
    %233 = vmatpush1.xpose.msra.mxu0 0.0
    %234 = vmatprep.subr.mxu0 0.0
    %235 = vmatpush1.xpose.msra.mxu0 0.0
    %236 = vmatprep.subr.mxu0 0.0
    %237 = vmatpush1.xpose.msra.mxu0 0.0
    %238 = vmatprep.subr.mxu0 0.0
    %239 = vmatpush1.xpose.msra.mxu0 0.0
    %240 = vmatprep.subr.mxu0 0.0
    %241 = vmatpush1.xpose.msra.mxu0 0.0
    %242 = vmatprep.subr.mxu0 0.0
    %243 = vmatpush1.xpose.msra.mxu0 0.0
    %244 = vmatprep.subr.mxu0 0.0
    %245 = vmatpush1.xpose.msra.mxu0 0.0
    %246 = vmatprep.subr.mxu0 0.0
    %247 = vmatpush1.xpose.msra.mxu0 0.0
    %248 = vmatprep.subr.mxu0 0.0
    %249 = vmatpush1.xpose.msra.mxu0 0.0
    %250 = vmatprep.subr.mxu0 0.0
    %251 = vmatpush1.xpose.msra.mxu0 0.0
    %252 = vmatprep.subr.mxu0 0.0
    %253 = vmatpush1.xpose.msra.mxu0 0.0
    %254 = vmatprep.subr.mxu0 0.0
    %255 = vmatpush1.xpose.msra.mxu0 0.0
    %256 = vmatprep.subr.mxu0 0.0
    %257 = vmatpush1.xpose.msra.mxu0 0.0
    %258 = vmatprep.subr.mxu0 0.0
    %259 = vmatpush1.xpose.msra.mxu0 0.0
    %260 = vmatprep.subr.mxu0 0.0
    %261 = vmatpush1.xpose.msra.mxu0 0.0
    %262 = vmatprep.subr.mxu0 0.0
    %263 = vmatpush1.xpose.msra.mxu0 0.0
    %264 = vmatprep.mubr.f32.mxu0 0.0
    %265 = vmatmul.mubr.f32.gmra.mrb[0].mxu0 %v196
    %v266 = vpop.f32.mrb[0].mxu0
    %v267 = vadd.f32 0.0, %v266
    %v268 = vpop.f32.mrb[0].mxu0
    %269 = vdwg.mxu0
    %271 = vrot.lane.b32.xlu0 %v186, 96
    %v272 = vpop.permute.xlu0 %271
    %v274 = vsel %vm194, %v190, 0
    %v276 = vsel %vm194, %v272, 0
    %278 = vmatprep.subr.mxu0 0.0
    %279 = vmatpush1.xpose.msra.mxu0 %v276
    %280 = vmatprep.subr.mxu0 0.0
    %281 = vmatpush1.xpose.msra.mxu0 0.0
    %282 = vmatprep.subr.mxu0 0.0
    %283 = vmatpush1.xpose.msra.mxu0 0.0
    %284 = vmatprep.subr.mxu0 0.0
    %285 = vmatpush1.xpose.msra.mxu0 0.0
    %286 = vmatprep.subr.mxu0 0.0
    %287 = vmatpush1.xpose.msra.mxu0 0.0
    %288 = vmatprep.subr.mxu0 0.0
    %289 = vmatpush1.xpose.msra.mxu0 0.0
    %290 = vmatprep.subr.mxu0 0.0
    %291 = vmatpush1.xpose.msra.mxu0 0.0
    %292 = vmatprep.subr.mxu0 0.0
    %293 = vmatpush1.xpose.msra.mxu0 0.0
    %294 = vmatprep.subr.mxu0 0.0
    %295 = vmatpush1.xpose.msra.mxu0 0.0
    %296 = vmatprep.subr.mxu0 0.0
    %297 = vmatpush1.xpose.msra.mxu0 0.0
    %298 = vmatprep.subr.mxu0 0.0
    %299 = vmatpush1.xpose.msra.mxu0 0.0
    %300 = vmatprep.subr.mxu0 0.0
    %301 = vmatpush1.xpose.msra.mxu0 0.0
    %302 = vmatprep.subr.mxu0 0.0
    %303 = vmatpush1.xpose.msra.mxu0 0.0
    %304 = vmatprep.subr.mxu0 0.0
    %305 = vmatpush1.xpose.msra.mxu0 0.0
    %306 = vmatprep.subr.mxu0 0.0
    %307 = vmatpush1.xpose.msra.mxu0 0.0
    %308 = vmatprep.subr.mxu0 0.0
    %309 = vmatpush1.xpose.msra.mxu0 0.0
    %310 = vmatprep.subr.mxu0 0.0
    %311 = vmatpush1.xpose.msra.mxu0 0.0
    %312 = vmatprep.subr.mxu0 0.0
    %313 = vmatpush1.xpose.msra.mxu0 0.0
    %314 = vmatprep.subr.mxu0 0.0
    %315 = vmatpush1.xpose.msra.mxu0 0.0
    %316 = vmatprep.subr.mxu0 0.0
    %317 = vmatpush1.xpose.msra.mxu0 0.0
    %318 = vmatprep.subr.mxu0 0.0
    %319 = vmatpush1.xpose.msra.mxu0 0.0
    %320 = vmatprep.subr.mxu0 0.0
    %321 = vmatpush1.xpose.msra.mxu0 0.0
    %322 = vmatprep.subr.mxu0 0.0
    %323 = vmatpush1.xpose.msra.mxu0 0.0
    %324 = vmatprep.subr.mxu0 0.0
    %325 = vmatpush1.xpose.msra.mxu0 0.0
    %326 = vmatprep.subr.mxu0 0.0
    %327 = vmatpush1.xpose.msra.mxu0 0.0
    %328 = vmatprep.subr.mxu0 0.0
    %329 = vmatpush1.xpose.msra.mxu0 0.0
    %330 = vmatprep.subr.mxu0 0.0
    %331 = vmatpush1.xpose.msra.mxu0 0.0
    %332 = vmatprep.subr.mxu0 0.0
    %333 = vmatpush1.xpose.msra.mxu0 0.0
    %334 = vmatprep.subr.mxu0 0.0
    %335 = vmatpush1.xpose.msra.mxu0 0.0
    %336 = vmatprep.subr.mxu0 0.0
    %337 = vmatpush1.xpose.msra.mxu0 0.0
    %338 = vmatprep.subr.mxu0 0.0
    %339 = vmatpush1.xpose.msra.mxu0 0.0
    %340 = vmatprep.subr.mxu0 0.0
    %341 = vmatpush1.xpose.msra.mxu0 0.0
    %342 = vmatprep.mubr.f32.mxu0 0.0
    %343 = vmatmul.mubr.f32.gmra.mrb[0].mxu0 %v274
    %v344 = vpop.f32.mrb[0].mxu0
    %v345 = vadd.f32 0.0, %v344
    %v346 = vpop.f32.mrb[0].mxu0
    %347 = vdwg.mxu0
    %v348 = vadd.f32 %v267, %v68
    %v349 = vadd.f32 %v345, %v69
    %v350 = vsel %vm194, %v348, -inf
    %351 = vmax.xlane.f32.xlu0 %v350
    %v352 = vpop.xlane.xlu0 %351
    %v353 = vsel %vm194, %v349, -inf
    %354 = vmax.xlane.f32.xlu0 %v353
    %v355 = vpop.xlane.xlu0 %354
    %v356 = vsub.f32 %v348, %v352
    %v357 = vsub.f32 %v349, %v355
    %v358 = vmul.f32 %v356, 1.442695
    %v359 = vpow.pop %v358
    %v360 = vmul.f32 %v357, 1.442695
    %v361 = vpow.pop %v360
    %v362 = vsel %vm194, %v359, 0.0
    %363 = vadd.xlane.f32.xlu0 %v362
    %v364 = vpop.xlane.xlu0 %363
    %v365 = vsel %vm194, %v361, 0.0
    %366 = vadd.xlane.f32.xlu0 %v365
    %v367 = vpop.xlane.xlu0 %366
    %v368 = vrcp.pop %v364
    %v369 = vrcp.pop %v367
    %370 = vrot.lane.b32.xlu0 %v183, 64
    %v371 = vpop.permute.xlu0 %370
    %v374 = vsel %vm194, %v359, 0
    %376 = vmatprep.subr.mxu0 0.0
    %377 = vmatpush1.msra.mxu0 %v371
    %378 = vmatprep.subr.mxu0 0.0
    %379 = vmatpush1.msra.mxu0 0.0
    %380 = vmatprep.subr.mxu0 0.0
    %381 = vmatpush1.msra.mxu0 0.0
    %382 = vmatprep.subr.mxu0 0.0
    %383 = vmatpush1.msra.mxu0 0.0
    %384 = vmatprep.subr.mxu0 0.0
    %385 = vmatpush1.msra.mxu0 0.0
    %386 = vmatprep.subr.mxu0 0.0
    %387 = vmatpush1.msra.mxu0 0.0
    %388 = vmatprep.subr.mxu0 0.0
    %389 = vmatpush1.msra.mxu0 0.0
    %390 = vmatprep.subr.mxu0 0.0
    %391 = vmatpush1.msra.mxu0 0.0
    %392 = vmatprep.subr.mxu0 0.0
    %393 = vmatpush1.msra.mxu0 0.0
    %394 = vmatprep.subr.mxu0 0.0
    %395 = vmatpush1.msra.mxu0 0.0
    %396 = vmatprep.subr.mxu0 0.0
    %397 = vmatpush1.msra.mxu0 0.0
    %398 = vmatprep.subr.mxu0 0.0
    %399 = vmatpush1.msra.mxu0 0.0
    %400 = vmatprep.subr.mxu0 0.0
    %401 = vmatpush1.msra.mxu0 0.0
    %402 = vmatprep.subr.mxu0 0.0
    %403 = vmatpush1.msra.mxu0 0.0
    %404 = vmatprep.subr.mxu0 0.0
    %405 = vmatpush1.msra.mxu0 0.0
    %406 = vmatprep.subr.mxu0 0.0
    %407 = vmatpush1.msra.mxu0 0.0
    %408 = vmatprep.subr.mxu0 0.0
    %409 = vmatpush1.msra.mxu0 0.0
    %410 = vmatprep.subr.mxu0 0.0
    %411 = vmatpush1.msra.mxu0 0.0
    %412 = vmatprep.subr.mxu0 0.0
    %413 = vmatpush1.msra.mxu0 0.0
    %414 = vmatprep.subr.mxu0 0.0
    %415 = vmatpush1.msra.mxu0 0.0
    %416 = vmatprep.subr.mxu0 0.0
    %417 = vmatpush1.msra.mxu0 0.0
    %418 = vmatprep.subr.mxu0 0.0
    %419 = vmatpush1.msra.mxu0 0.0
    %420 = vmatprep.subr.mxu0 0.0
    %421 = vmatpush1.msra.mxu0 0.0
    %422 = vmatprep.subr.mxu0 0.0
    %423 = vmatpush1.msra.mxu0 0.0
    %424 = vmatprep.subr.mxu0 0.0
    %425 = vmatpush1.msra.mxu0 0.0
    %426 = vmatprep.subr.mxu0 0.0
    %427 = vmatpush1.msra.mxu0 0.0
    %428 = vmatprep.subr.mxu0 0.0
    %429 = vmatpush1.msra.mxu0 0.0
    %430 = vmatprep.subr.mxu0 0.0
    %431 = vmatpush1.msra.mxu0 0.0
    %432 = vmatprep.subr.mxu0 0.0
    %433 = vmatpush1.msra.mxu0 0.0
    %434 = vmatprep.subr.mxu0 0.0
    %435 = vmatpush1.msra.mxu0 0.0
    %436 = vmatprep.subr.mxu0 0.0
    %437 = vmatpush1.msra.mxu0 0.0
    %438 = vmatprep.subr.mxu0 0.0
    %439 = vmatpush1.msra.mxu0 0.0
    %440 = vmatprep.mubr.f32.mxu0 0.0
    %441 = vmatmul.mubr.f32.gmra.mrb[0].mxu0 %v374
    %v442 = vpop.f32.mrb[0].mxu0
    %v443 = vadd.f32 0.0, %v442
    %v444 = vpop.f32.mrb[0].mxu0
    %445 = vdwg.mxu0
    %446 = vrot.lane.b32.xlu0 %v186, 64
    %v447 = vpop.permute.xlu0 %446
    %v450 = vsel %vm194, %v361, 0
    %452 = vmatprep.subr.mxu0 0.0
    %453 = vmatpush1.msra.mxu0 %v447
    %454 = vmatprep.subr.mxu0 0.0
    %455 = vmatpush1.msra.mxu0 0.0
    %456 = vmatprep.subr.mxu0 0.0
    %457 = vmatpush1.msra.mxu0 0.0
    %458 = vmatprep.subr.mxu0 0.0
    %459 = vmatpush1.msra.mxu0 0.0
    %460 = vmatprep.subr.mxu0 0.0
    %461 = vmatpush1.msra.mxu0 0.0
    %462 = vmatprep.subr.mxu0 0.0
    %463 = vmatpush1.msra.mxu0 0.0
    %464 = vmatprep.subr.mxu0 0.0
    %465 = vmatpush1.msra.mxu0 0.0
    %466 = vmatprep.subr.mxu0 0.0
    %467 = vmatpush1.msra.mxu0 0.0
    %468 = vmatprep.subr.mxu0 0.0
    %469 = vmatpush1.msra.mxu0 0.0
    %470 = vmatprep.subr.mxu0 0.0
    %471 = vmatpush1.msra.mxu0 0.0
    %472 = vmatprep.subr.mxu0 0.0
    %473 = vmatpush1.msra.mxu0 0.0
    %474 = vmatprep.subr.mxu0 0.0
    %475 = vmatpush1.msra.mxu0 0.0
    %476 = vmatprep.subr.mxu0 0.0
    %477 = vmatpush1.msra.mxu0 0.0
    %478 = vmatprep.subr.mxu0 0.0
    %479 = vmatpush1.msra.mxu0 0.0
    %480 = vmatprep.subr.mxu0 0.0
    %481 = vmatpush1.msra.mxu0 0.0
    %482 = vmatprep.subr.mxu0 0.0
    %483 = vmatpush1.msra.mxu0 0.0
    %484 = vmatprep.subr.mxu0 0.0
    %485 = vmatpush1.msra.mxu0 0.0
    %486 = vmatprep.subr.mxu0 0.0
    %487 = vmatpush1.msra.mxu0 0.0
    %488 = vmatprep.subr.mxu0 0.0
    %489 = vmatpush1.msra.mxu0 0.0
    %490 = vmatprep.subr.mxu0 0.0
    %491 = vmatpush1.msra.mxu0 0.0
    %492 = vmatprep.subr.mxu0 0.0
    %493 = vmatpush1.msra.mxu0 0.0
    %494 = vmatprep.subr.mxu0 0.0
    %495 = vmatpush1.msra.mxu0 0.0
    %496 = vmatprep.subr.mxu0 0.0
    %497 = vmatpush1.msra.mxu0 0.0
    %498 = vmatprep.subr.mxu0 0.0
    %499 = vmatpush1.msra.mxu0 0.0
    %500 = vmatprep.subr.mxu0 0.0
    %501 = vmatpush1.msra.mxu0 0.0
    %502 = vmatprep.subr.mxu0 0.0
    %503 = vmatpush1.msra.mxu0 0.0
    %504 = vmatprep.subr.mxu0 0.0
    %505 = vmatpush1.msra.mxu0 0.0
    %506 = vmatprep.subr.mxu0 0.0
    %507 = vmatpush1.msra.mxu0 0.0
    %508 = vmatprep.subr.mxu0 0.0
    %509 = vmatpush1.msra.mxu0 0.0
    %510 = vmatprep.subr.mxu0 0.0
    %511 = vmatpush1.msra.mxu0 0.0
    %512 = vmatprep.subr.mxu0 0.0
    %513 = vmatpush1.msra.mxu0 0.0
    %514 = vmatprep.subr.mxu0 0.0
    %515 = vmatpush1.msra.mxu0 0.0
    %516 = vmatprep.mubr.f32.mxu0 0.0
    %517 = vmatmul.mubr.f32.gmra.mrb[0].mxu0 %v450
    %v518 = vpop.f32.mrb[0].mxu0
    %v519 = vadd.f32 0.0, %v518
    %v520 = vpop.f32.mrb[0].mxu0
    %521 = vdwg.mxu0
    %v522 = vmul.f32 %v443, %v368
    %v523 = vmul.f32 %v519, %v369
    %524 = vrot.lane.b32.xlu0 %v189, 120
    %v525 = vpop.permute.xlu0 %524
    %526 = vrot.lane.b32.xlu0 %v183, 88
    %v527 = vpop.permute.xlu0 %526
    %v528 = vsel %vm194, %v525, 0
    %v530 = vsel %vm194, %v527, 0
    %532 = vmatprep.subr.mxu0 0.0
    %533 = vmatpush1.xpose.msra.mxu0 %v530
    %534 = vmatprep.subr.mxu0 0.0
    %535 = vmatpush1.xpose.msra.mxu0 0.0
    %536 = vmatprep.subr.mxu0 0.0
    %537 = vmatpush1.xpose.msra.mxu0 0.0
    %538 = vmatprep.subr.mxu0 0.0
    %539 = vmatpush1.xpose.msra.mxu0 0.0
    %540 = vmatprep.subr.mxu0 0.0
    %541 = vmatpush1.xpose.msra.mxu0 0.0
    %542 = vmatprep.subr.mxu0 0.0
    %543 = vmatpush1.xpose.msra.mxu0 0.0
    %544 = vmatprep.subr.mxu0 0.0
    %545 = vmatpush1.xpose.msra.mxu0 0.0
    %546 = vmatprep.subr.mxu0 0.0
    %547 = vmatpush1.xpose.msra.mxu0 0.0
    %548 = vmatprep.subr.mxu0 0.0
    %549 = vmatpush1.xpose.msra.mxu0 0.0
    %550 = vmatprep.subr.mxu0 0.0
    %551 = vmatpush1.xpose.msra.mxu0 0.0
    %552 = vmatprep.subr.mxu0 0.0
    %553 = vmatpush1.xpose.msra.mxu0 0.0
    %554 = vmatprep.subr.mxu0 0.0
    %555 = vmatpush1.xpose.msra.mxu0 0.0
    %556 = vmatprep.subr.mxu0 0.0
    %557 = vmatpush1.xpose.msra.mxu0 0.0
    %558 = vmatprep.subr.mxu0 0.0
    %559 = vmatpush1.xpose.msra.mxu0 0.0
    %560 = vmatprep.subr.mxu0 0.0
    %561 = vmatpush1.xpose.msra.mxu0 0.0
    %562 = vmatprep.subr.mxu0 0.0
    %563 = vmatpush1.xpose.msra.mxu0 0.0
    %564 = vmatprep.subr.mxu0 0.0
    %565 = vmatpush1.xpose.msra.mxu0 0.0
    %566 = vmatprep.subr.mxu0 0.0
    %567 = vmatpush1.xpose.msra.mxu0 0.0
    %568 = vmatprep.subr.mxu0 0.0
    %569 = vmatpush1.xpose.msra.mxu0 0.0
    %570 = vmatprep.subr.mxu0 0.0
    %571 = vmatpush1.xpose.msra.mxu0 0.0
    %572 = vmatprep.subr.mxu0 0.0
    %573 = vmatpush1.xpose.msra.mxu0 0.0
    %574 = vmatprep.subr.mxu0 0.0
    %575 = vmatpush1.xpose.msra.mxu0 0.0
    %576 = vmatprep.subr.mxu0 0.0
    %577 = vmatpush1.xpose.msra.mxu0 0.0
    %578 = vmatprep.subr.mxu0 0.0
    %579 = vmatpush1.xpose.msra.mxu0 0.0
    %580 = vmatprep.subr.mxu0 0.0
    %581 = vmatpush1.xpose.msra.mxu0 0.0
    %582 = vmatprep.subr.mxu0 0.0
    %583 = vmatpush1.xpose.msra.mxu0 0.0
    %584 = vmatprep.subr.mxu0 0.0
    %585 = vmatpush1.xpose.msra.mxu0 0.0
    %586 = vmatprep.subr.mxu0 0.0
    %587 = vmatpush1.xpose.msra.mxu0 0.0
    %588 = vmatprep.subr.mxu0 0.0
    %589 = vmatpush1.xpose.msra.mxu0 0.0
    %590 = vmatprep.subr.mxu0 0.0
    %591 = vmatpush1.xpose.msra.mxu0 0.0
    %592 = vmatprep.subr.mxu0 0.0
    %593 = vmatpush1.xpose.msra.mxu0 0.0
    %594 = vmatprep.subr.mxu0 0.0
    %595 = vmatpush1.xpose.msra.mxu0 0.0
    %596 = vmatprep.mubr.f32.mxu0 0.0
    %597 = vmatmul.mubr.f32.gmra.mrb[0].mxu0 %v528
    %v598 = vpop.f32.mrb[0].mxu0
    %v599 = vadd.f32 0.0, %v598
    %v600 = vpop.f32.mrb[0].mxu0
    %601 = vdwg.mxu0
    %602 = vrot.lane.b32.xlu0 %v190, 120
    %v603 = vpop.permute.xlu0 %602
    %604 = vrot.lane.b32.xlu0 %v186, 88
    %v605 = vpop.permute.xlu0 %604
    %v606 = vsel %vm194, %v603, 0
    %v608 = vsel %vm194, %v605, 0
    %610 = vmatprep.subr.mxu0 0.0
    %611 = vmatpush1.xpose.msra.mxu0 %v608
    %612 = vmatprep.subr.mxu0 0.0
    %613 = vmatpush1.xpose.msra.mxu0 0.0
    %614 = vmatprep.subr.mxu0 0.0
    %615 = vmatpush1.xpose.msra.mxu0 0.0
    %616 = vmatprep.subr.mxu0 0.0
    %617 = vmatpush1.xpose.msra.mxu0 0.0
    %618 = vmatprep.subr.mxu0 0.0
    %619 = vmatpush1.xpose.msra.mxu0 0.0
    %620 = vmatprep.subr.mxu0 0.0
    %621 = vmatpush1.xpose.msra.mxu0 0.0
    %622 = vmatprep.subr.mxu0 0.0
    %623 = vmatpush1.xpose.msra.mxu0 0.0
    %624 = vmatprep.subr.mxu0 0.0
    %625 = vmatpush1.xpose.msra.mxu0 0.0
    %626 = vmatprep.subr.mxu0 0.0
    %627 = vmatpush1.xpose.msra.mxu0 0.0
    %628 = vmatprep.subr.mxu0 0.0
    %629 = vmatpush1.xpose.msra.mxu0 0.0
    %630 = vmatprep.subr.mxu0 0.0
    %631 = vmatpush1.xpose.msra.mxu0 0.0
    %632 = vmatprep.subr.mxu0 0.0
    %633 = vmatpush1.xpose.msra.mxu0 0.0
    %634 = vmatprep.subr.mxu0 0.0
    %635 = vmatpush1.xpose.msra.mxu0 0.0
    %636 = vmatprep.subr.mxu0 0.0
    %637 = vmatpush1.xpose.msra.mxu0 0.0
    %638 = vmatprep.subr.mxu0 0.0
    %639 = vmatpush1.xpose.msra.mxu0 0.0
    %640 = vmatprep.subr.mxu0 0.0
    %641 = vmatpush1.xpose.msra.mxu0 0.0
    %642 = vmatprep.subr.mxu0 0.0
    %643 = vmatpush1.xpose.msra.mxu0 0.0
    %644 = vmatprep.subr.mxu0 0.0
    %645 = vmatpush1.xpose.msra.mxu0 0.0
    %646 = vmatprep.subr.mxu0 0.0
    %647 = vmatpush1.xpose.msra.mxu0 0.0
    %648 = vmatprep.subr.mxu0 0.0
    %649 = vmatpush1.xpose.msra.mxu0 0.0
    %650 = vmatprep.subr.mxu0 0.0
    %651 = vmatpush1.xpose.msra.mxu0 0.0
    %652 = vmatprep.subr.mxu0 0.0
    %653 = vmatpush1.xpose.msra.mxu0 0.0
    %654 = vmatprep.subr.mxu0 0.0
    %655 = vmatpush1.xpose.msra.mxu0 0.0
    %656 = vmatprep.subr.mxu0 0.0
    %657 = vmatpush1.xpose.msra.mxu0 0.0
    %658 = vmatprep.subr.mxu0 0.0
    %659 = vmatpush1.xpose.msra.mxu0 0.0
    %660 = vmatprep.subr.mxu0 0.0
    %661 = vmatpush1.xpose.msra.mxu0 0.0
    %662 = vmatprep.subr.mxu0 0.0
    %663 = vmatpush1.xpose.msra.mxu0 0.0
    %664 = vmatprep.subr.mxu0 0.0
    %665 = vmatpush1.xpose.msra.mxu0 0.0
    %666 = vmatprep.subr.mxu0 0.0
    %667 = vmatpush1.xpose.msra.mxu0 0.0
    %668 = vmatprep.subr.mxu0 0.0
    %669 = vmatpush1.xpose.msra.mxu0 0.0
    %670 = vmatprep.subr.mxu0 0.0
    %671 = vmatpush1.xpose.msra.mxu0 0.0
    %672 = vmatprep.subr.mxu0 0.0
    %673 = vmatpush1.xpose.msra.mxu0 0.0
    %674 = vmatprep.mubr.f32.mxu0 0.0
    %675 = vmatmul.mubr.f32.gmra.mrb[0].mxu0 %v606
    %v676 = vpop.f32.mrb[0].mxu0
    %v677 = vadd.f32 0.0, %v676
    %v678 = vpop.f32.mrb[0].mxu0
    %679 = vdwg.mxu0
    %v680 = vadd.f32 %v599, %v68
    %v681 = vadd.f32 %v677, %v69
    %v682 = vsel %vm194, %v680, -inf
    %683 = vmax.xlane.f32.xlu0 %v682
    %v684 = vpop.xlane.xlu0 %683
    %v685 = vsel %vm194, %v681, -inf
    %686 = vmax.xlane.f32.xlu0 %v685
    %v687 = vpop.xlane.xlu0 %686
    %v688 = vsub.f32 %v680, %v684
    %v689 = vsub.f32 %v681, %v687
    %v690 = vmul.f32 %v688, 1.442695
    %v691 = vpow.pop %v690
    %v692 = vmul.f32 %v689, 1.442695
    %v693 = vpow.pop %v692
    %v694 = vsel %vm194, %v691, 0.0
    %695 = vadd.xlane.f32.xlu0 %v694
    %v696 = vpop.xlane.xlu0 %695
    %v697 = vsel %vm194, %v693, 0.0
    %698 = vadd.xlane.f32.xlu0 %v697
    %v699 = vpop.xlane.xlu0 %698
    %v700 = vrcp.pop %v696
    %v701 = vrcp.pop %v699
    %702 = vrot.lane.b32.xlu0 %v183, 56
    %v703 = vpop.permute.xlu0 %702
    %v706 = vsel %vm194, %v691, 0
    %708 = vmatprep.subr.mxu0 0.0
    %709 = vmatpush1.msra.mxu0 %v703
    %710 = vmatprep.subr.mxu0 0.0
    %711 = vmatpush1.msra.mxu0 0.0
    %712 = vmatprep.subr.mxu0 0.0
    %713 = vmatpush1.msra.mxu0 0.0
    %714 = vmatprep.subr.mxu0 0.0
    %715 = vmatpush1.msra.mxu0 0.0
    %716 = vmatprep.subr.mxu0 0.0
    %717 = vmatpush1.msra.mxu0 0.0
    %718 = vmatprep.subr.mxu0 0.0
    %719 = vmatpush1.msra.mxu0 0.0
    %720 = vmatprep.subr.mxu0 0.0
    %721 = vmatpush1.msra.mxu0 0.0
    %722 = vmatprep.subr.mxu0 0.0
    %723 = vmatpush1.msra.mxu0 0.0
    %724 = vmatprep.subr.mxu0 0.0
    %725 = vmatpush1.msra.mxu0 0.0
    %726 = vmatprep.subr.mxu0 0.0
    %727 = vmatpush1.msra.mxu0 0.0
    %728 = vmatprep.subr.mxu0 0.0
    %729 = vmatpush1.msra.mxu0 0.0
    %730 = vmatprep.subr.mxu0 0.0
    %731 = vmatpush1.msra.mxu0 0.0
    %732 = vmatprep.subr.mxu0 0.0
    %733 = vmatpush1.msra.mxu0 0.0
    %734 = vmatprep.subr.mxu0 0.0
    %735 = vmatpush1.msra.mxu0 0.0
    %736 = vmatprep.subr.mxu0 0.0
    %737 = vmatpush1.msra.mxu0 0.0
    %738 = vmatprep.subr.mxu0 0.0
    %739 = vmatpush1.msra.mxu0 0.0
    %740 = vmatprep.subr.mxu0 0.0
    %741 = vmatpush1.msra.mxu0 0.0
    %742 = vmatprep.subr.mxu0 0.0
    %743 = vmatpush1.msra.mxu0 0.0
    %744 = vmatprep.subr.mxu0 0.0
    %745 = vmatpush1.msra.mxu0 0.0
    %746 = vmatprep.subr.mxu0 0.0
    %747 = vmatpush1.msra.mxu0 0.0
    %748 = vmatprep.subr.mxu0 0.0
    %749 = vmatpush1.msra.mxu0 0.0
    %750 = vmatprep.subr.mxu0 0.0
    %751 = vmatpush1.msra.mxu0 0.0
    %752 = vmatprep.subr.mxu0 0.0
    %753 = vmatpush1.msra.mxu0 0.0
    %754 = vmatprep.subr.mxu0 0.0
    %755 = vmatpush1.msra.mxu0 0.0
    %756 = vmatprep.subr.mxu0 0.0
    %757 = vmatpush1.msra.mxu0 0.0
    %758 = vmatprep.subr.mxu0 0.0
    %759 = vmatpush1.msra.mxu0 0.0
    %760 = vmatprep.subr.mxu0 0.0
    %761 = vmatpush1.msra.mxu0 0.0
    %762 = vmatprep.subr.mxu0 0.0
    %763 = vmatpush1.msra.mxu0 0.0
    %764 = vmatprep.subr.mxu0 0.0
    %765 = vmatpush1.msra.mxu0 0.0
    %766 = vmatprep.subr.mxu0 0.0
    %767 = vmatpush1.msra.mxu0 0.0
    %768 = vmatprep.subr.mxu0 0.0
    %769 = vmatpush1.msra.mxu0 0.0
    %770 = vmatprep.subr.mxu0 0.0
    %771 = vmatpush1.msra.mxu0 0.0
    %772 = vmatprep.mubr.f32.mxu0 0.0
    %773 = vmatmul.mubr.f32.gmra.mrb[0].mxu0 %v706
    %v774 = vpop.f32.mrb[0].mxu0
    %v775 = vadd.f32 0.0, %v774
    %v776 = vpop.f32.mrb[0].mxu0
    %777 = vdwg.mxu0
    %778 = vrot.lane.b32.xlu0 %v186, 56
    %v779 = vpop.permute.xlu0 %778
    %v782 = vsel %vm194, %v693, 0
    %784 = vmatprep.subr.mxu0 0.0
    %785 = vmatpush1.msra.mxu0 %v779
    %786 = vmatprep.subr.mxu0 0.0
    %787 = vmatpush1.msra.mxu0 0.0
    %788 = vmatprep.subr.mxu0 0.0
    %789 = vmatpush1.msra.mxu0 0.0
    %790 = vmatprep.subr.mxu0 0.0
    %791 = vmatpush1.msra.mxu0 0.0
    %792 = vmatprep.subr.mxu0 0.0
    %793 = vmatpush1.msra.mxu0 0.0
    %794 = vmatprep.subr.mxu0 0.0
    %795 = vmatpush1.msra.mxu0 0.0
    %796 = vmatprep.subr.mxu0 0.0
    %797 = vmatpush1.msra.mxu0 0.0
    %798 = vmatprep.subr.mxu0 0.0
    %799 = vmatpush1.msra.mxu0 0.0
    %800 = vmatprep.subr.mxu0 0.0
    %801 = vmatpush1.msra.mxu0 0.0
    %802 = vmatprep.subr.mxu0 0.0
    %803 = vmatpush1.msra.mxu0 0.0
    %804 = vmatprep.subr.mxu0 0.0
    %805 = vmatpush1.msra.mxu0 0.0
    %806 = vmatprep.subr.mxu0 0.0
    %807 = vmatpush1.msra.mxu0 0.0
    %808 = vmatprep.subr.mxu0 0.0
    %809 = vmatpush1.msra.mxu0 0.0
    %810 = vmatprep.subr.mxu0 0.0
    %811 = vmatpush1.msra.mxu0 0.0
    %812 = vmatprep.subr.mxu0 0.0
    %813 = vmatpush1.msra.mxu0 0.0
    %814 = vmatprep.subr.mxu0 0.0
    %815 = vmatpush1.msra.mxu0 0.0
    %816 = vmatprep.subr.mxu0 0.0
    %817 = vmatpush1.msra.mxu0 0.0
    %818 = vmatprep.subr.mxu0 0.0
    %819 = vmatpush1.msra.mxu0 0.0
    %820 = vmatprep.subr.mxu0 0.0
    %821 = vmatpush1.msra.mxu0 0.0
    %822 = vmatprep.subr.mxu0 0.0
    %823 = vmatpush1.msra.mxu0 0.0
    %824 = vmatprep.subr.mxu0 0.0
    %825 = vmatpush1.msra.mxu0 0.0
    %826 = vmatprep.subr.mxu0 0.0
    %827 = vmatpush1.msra.mxu0 0.0
    %828 = vmatprep.subr.mxu0 0.0
    %829 = vmatpush1.msra.mxu0 0.0
    %830 = vmatprep.subr.mxu0 0.0
    %831 = vmatpush1.msra.mxu0 0.0
    %832 = vmatprep.subr.mxu0 0.0
    %833 = vmatpush1.msra.mxu0 0.0
    %834 = vmatprep.subr.mxu0 0.0
    %835 = vmatpush1.msra.mxu0 0.0
    %836 = vmatprep.subr.mxu0 0.0
    %837 = vmatpush1.msra.mxu0 0.0
    %838 = vmatprep.subr.mxu0 0.0
    %839 = vmatpush1.msra.mxu0 0.0
    %840 = vmatprep.subr.mxu0 0.0
    %841 = vmatpush1.msra.mxu0 0.0
    %842 = vmatprep.subr.mxu0 0.0
    %843 = vmatpush1.msra.mxu0 0.0
    %844 = vmatprep.subr.mxu0 0.0
    %845 = vmatpush1.msra.mxu0 0.0
    %846 = vmatprep.subr.mxu0 0.0
    %847 = vmatpush1.msra.mxu0 0.0
    %848 = vmatprep.mubr.f32.mxu0 0.0
    %849 = vmatmul.mubr.f32.gmra.mrb[0].mxu0 %v782
    %v850 = vpop.f32.mrb[0].mxu0
    %v851 = vadd.f32 0.0, %v850
    %v852 = vpop.f32.mrb[0].mxu0
    %853 = vdwg.mxu0
    %v854 = vmul.f32 %v775, %v700
    %v855 = vmul.f32 %v851, %v701
    %856 = vrot.lane.b32.xlu0 %v189, 112
    %v857 = vpop.permute.xlu0 %856
    %858 = vrot.lane.b32.xlu0 %v183, 80
    %v859 = vpop.permute.xlu0 %858
    %v860 = vsel %vm194, %v857, 0
    %v862 = vsel %vm194, %v859, 0
    %864 = vmatprep.subr.mxu0 0.0
    %865 = vmatpush1.xpose.msra.mxu0 %v862
    %866 = vmatprep.subr.mxu0 0.0
    %867 = vmatpush1.xpose.msra.mxu0 0.0
    %868 = vmatprep.subr.mxu0 0.0
    %869 = vmatpush1.xpose.msra.mxu0 0.0
    %870 = vmatprep.subr.mxu0 0.0
    %871 = vmatpush1.xpose.msra.mxu0 0.0
    %872 = vmatprep.subr.mxu0 0.0
    %873 = vmatpush1.xpose.msra.mxu0 0.0
    %874 = vmatprep.subr.mxu0 0.0
    %875 = vmatpush1.xpose.msra.mxu0 0.0
    %876 = vmatprep.subr.mxu0 0.0
    %877 = vmatpush1.xpose.msra.mxu0 0.0
    %878 = vmatprep.subr.mxu0 0.0
    %879 = vmatpush1.xpose.msra.mxu0 0.0
    %880 = vmatprep.subr.mxu0 0.0
    %881 = vmatpush1.xpose.msra.mxu0 0.0
    %882 = vmatprep.subr.mxu0 0.0
    %883 = vmatpush1.xpose.msra.mxu0 0.0
    %884 = vmatprep.subr.mxu0 0.0
    %885 = vmatpush1.xpose.msra.mxu0 0.0
    %886 = vmatprep.subr.mxu0 0.0
    %887 = vmatpush1.xpose.msra.mxu0 0.0
    %888 = vmatprep.subr.mxu0 0.0
    %889 = vmatpush1.xpose.msra.mxu0 0.0
    %890 = vmatprep.subr.mxu0 0.0
    %891 = vmatpush1.xpose.msra.mxu0 0.0
    %892 = vmatprep.subr.mxu0 0.0
    %893 = vmatpush1.xpose.msra.mxu0 0.0
    %894 = vmatprep.subr.mxu0 0.0
    %895 = vmatpush1.xpose.msra.mxu0 0.0
    %896 = vmatprep.subr.mxu0 0.0
    %897 = vmatpush1.xpose.msra.mxu0 0.0
    %898 = vmatprep.subr.mxu0 0.0
    %899 = vmatpush1.xpose.msra.mxu0 0.0
    %900 = vmatprep.subr.mxu0 0.0
    %901 = vmatpush1.xpose.msra.mxu0 0.0
    %902 = vmatprep.subr.mxu0 0.0
    %903 = vmatpush1.xpose.msra.mxu0 0.0
    %904 = vmatprep.subr.mxu0 0.0
    %905 = vmatpush1.xpose.msra.mxu0 0.0
    %906 = vmatprep.subr.mxu0 0.0
    %907 = vmatpush1.xpose.msra.mxu0 0.0
    %908 = vmatprep.subr.mxu0 0.0
    %909 = vmatpush1.xpose.msra.mxu0 0.0
    %910 = vmatprep.subr.mxu0 0.0
    %911 = vmatpush1.xpose.msra.mxu0 0.0
    %912 = vmatprep.subr.mxu0 0.0
    %913 = vmatpush1.xpose.msra.mxu0 0.0
    %914 = vmatprep.subr.mxu0 0.0
    %915 = vmatpush1.xpose.msra.mxu0 0.0
    %916 = vmatprep.subr.mxu0 0.0
    %917 = vmatpush1.xpose.msra.mxu0 0.0
    %918 = vmatprep.subr.mxu0 0.0
    %919 = vmatpush1.xpose.msra.mxu0 0.0
    %920 = vmatprep.subr.mxu0 0.0
    %921 = vmatpush1.xpose.msra.mxu0 0.0
    %922 = vmatprep.subr.mxu0 0.0
    %923 = vmatpush1.xpose.msra.mxu0 0.0
    %924 = vmatprep.subr.mxu0 0.0
    %925 = vmatpush1.xpose.msra.mxu0 0.0
    %926 = vmatprep.subr.mxu0 0.0
    %927 = vmatpush1.xpose.msra.mxu0 0.0
    %928 = vmatprep.mubr.f32.mxu0 0.0
    %929 = vmatmul.mubr.f32.gmra.mrb[0].mxu0 %v860
    %v930 = vpop.f32.mrb[0].mxu0
    %v931 = vadd.f32 0.0, %v930
    %v932 = vpop.f32.mrb[0].mxu0
    %933 = vdwg.mxu0
    %934 = vrot.lane.b32.xlu0 %v190, 112
    %v935 = vpop.permute.xlu0 %934
    %936 = vrot.lane.b32.xlu0 %v186, 80
    %v937 = vpop.permute.xlu0 %936
    %v938 = vsel %vm194, %v935, 0
    %v940 = vsel %vm194, %v937, 0
    %942 = vmatprep.subr.mxu0 0.0
    %943 = vmatpush1.xpose.msra.mxu0 %v940
    %944 = vmatprep.subr.mxu0 0.0
    %945 = vmatpush1.xpose.msra.mxu0 0.0
    %946 = vmatprep.subr.mxu0 0.0
    %947 = vmatpush1.xpose.msra.mxu0 0.0
    %948 = vmatprep.subr.mxu0 0.0
    %949 = vmatpush1.xpose.msra.mxu0 0.0
    %950 = vmatprep.subr.mxu0 0.0
    %951 = vmatpush1.xpose.msra.mxu0 0.0
    %952 = vmatprep.subr.mxu0 0.0
    %953 = vmatpush1.xpose.msra.mxu0 0.0
    %954 = vmatprep.subr.mxu0 0.0
    %955 = vmatpush1.xpose.msra.mxu0 0.0
    %956 = vmatprep.subr.mxu0 0.0
    %957 = vmatpush1.xpose.msra.mxu0 0.0
    %958 = vmatprep.subr.mxu0 0.0
    %959 = vmatpush1.xpose.msra.mxu0 0.0
    %960 = vmatprep.subr.mxu0 0.0
    %961 = vmatpush1.xpose.msra.mxu0 0.0
    %962 = vmatprep.subr.mxu0 0.0
    %963 = vmatpush1.xpose.msra.mxu0 0.0
    %964 = vmatprep.subr.mxu0 0.0
    %965 = vmatpush1.xpose.msra.mxu0 0.0
    %966 = vmatprep.subr.mxu0 0.0
    %967 = vmatpush1.xpose.msra.mxu0 0.0
    %968 = vmatprep.subr.mxu0 0.0
    %969 = vmatpush1.xpose.msra.mxu0 0.0
    %970 = vmatprep.subr.mxu0 0.0
    %971 = vmatpush1.xpose.msra.mxu0 0.0
    %972 = vmatprep.subr.mxu0 0.0
    %973 = vmatpush1.xpose.msra.mxu0 0.0
    %974 = vmatprep.subr.mxu0 0.0
    %975 = vmatpush1.xpose.msra.mxu0 0.0
    %976 = vmatprep.subr.mxu0 0.0
    %977 = vmatpush1.xpose.msra.mxu0 0.0
    %978 = vmatprep.subr.mxu0 0.0
    %979 = vmatpush1.xpose.msra.mxu0 0.0
    %980 = vmatprep.subr.mxu0 0.0
    %981 = vmatpush1.xpose.msra.mxu0 0.0
    %982 = vmatprep.subr.mxu0 0.0
    %983 = vmatpush1.xpose.msra.mxu0 0.0
    %984 = vmatprep.subr.mxu0 0.0
    %985 = vmatpush1.xpose.msra.mxu0 0.0
    %986 = vmatprep.subr.mxu0 0.0
    %987 = vmatpush1.xpose.msra.mxu0 0.0
    %988 = vmatprep.subr.mxu0 0.0
    %989 = vmatpush1.xpose.msra.mxu0 0.0
    %990 = vmatprep.subr.mxu0 0.0
    %991 = vmatpush1.xpose.msra.mxu0 0.0
    %992 = vmatprep.subr.mxu0 0.0
    %993 = vmatpush1.xpose.msra.mxu0 0.0
    %994 = vmatprep.subr.mxu0 0.0
    %995 = vmatpush1.xpose.msra.mxu0 0.0
    %996 = vmatprep.subr.mxu0 0.0
    %997 = vmatpush1.xpose.msra.mxu0 0.0
    %998 = vmatprep.subr.mxu0 0.0
    %999 = vmatpush1.xpose.msra.mxu0 0.0
    %1000 = vmatprep.subr.mxu0 0.0
    %1001 = vmatpush1.xpose.msra.mxu0 0.0
    %1002 = vmatprep.subr.mxu0 0.0
    %1003 = vmatpush1.xpose.msra.mxu0 0.0
    %1004 = vmatprep.subr.mxu0 0.0
    %1005 = vmatpush1.xpose.msra.mxu0 0.0
    %1006 = vmatprep.mubr.f32.mxu0 0.0
    %1007 = vmatmul.mubr.f32.gmra.mrb[0].mxu0 %v938
    %v1008 = vpop.f32.mrb[0].mxu0
    %v1009 = vadd.f32 0.0, %v1008
    %v1010 = vpop.f32.mrb[0].mxu0
    %1011 = vdwg.mxu0
    %v1012 = vadd.f32 %v931, %v68
    %v1013 = vadd.f32 %v1009, %v69
    %v1014 = vsel %vm194, %v1012, -inf
    %1015 = vmax.xlane.f32.xlu0 %v1014
    %v1016 = vpop.xlane.xlu0 %1015
    %v1017 = vsel %vm194, %v1013, -inf
    %1018 = vmax.xlane.f32.xlu0 %v1017
    %v1019 = vpop.xlane.xlu0 %1018
    %v1020 = vsub.f32 %v1012, %v1016
    %v1021 = vsub.f32 %v1013, %v1019
    %v1022 = vmul.f32 %v1020, 1.442695
    %v1023 = vpow.pop %v1022
    %v1024 = vmul.f32 %v1021, 1.442695
    %v1025 = vpow.pop %v1024
    %v1026 = vsel %vm194, %v1023, 0.0
    %1027 = vadd.xlane.f32.xlu0 %v1026
    %v1028 = vpop.xlane.xlu0 %1027
    %v1029 = vsel %vm194, %v1025, 0.0
    %1030 = vadd.xlane.f32.xlu0 %v1029
    %v1031 = vpop.xlane.xlu0 %1030
    %v1032 = vrcp.pop %v1028
    %v1033 = vrcp.pop %v1031
    %1034 = vrot.lane.b32.xlu0 %v183, 48
    %v1035 = vpop.permute.xlu0 %1034
    %v1038 = vsel %vm194, %v1023, 0
    %1040 = vmatprep.subr.mxu0 0.0
    %1041 = vmatpush1.msra.mxu0 %v1035
    %1042 = vmatprep.subr.mxu0 0.0
    %1043 = vmatpush1.msra.mxu0 0.0
    %1044 = vmatprep.subr.mxu0 0.0
    %1045 = vmatpush1.msra.mxu0 0.0
    %1046 = vmatprep.subr.mxu0 0.0
    %1047 = vmatpush1.msra.mxu0 0.0
    %1048 = vmatprep.subr.mxu0 0.0
    %1049 = vmatpush1.msra.mxu0 0.0
    %1050 = vmatprep.subr.mxu0 0.0
    %1051 = vmatpush1.msra.mxu0 0.0
    %1052 = vmatprep.subr.mxu0 0.0
    %1053 = vmatpush1.msra.mxu0 0.0
    %1054 = vmatprep.subr.mxu0 0.0
    %1055 = vmatpush1.msra.mxu0 0.0
    %1056 = vmatprep.subr.mxu0 0.0
    %1057 = vmatpush1.msra.mxu0 0.0
    %1058 = vmatprep.subr.mxu0 0.0
    %1059 = vmatpush1.msra.mxu0 0.0
    %1060 = vmatprep.subr.mxu0 0.0
    %1061 = vmatpush1.msra.mxu0 0.0
    %1062 = vmatprep.subr.mxu0 0.0
    %1063 = vmatpush1.msra.mxu0 0.0
    %1064 = vmatprep.subr.mxu0 0.0
    %1065 = vmatpush1.msra.mxu0 0.0
    %1066 = vmatprep.subr.mxu0 0.0
    %1067 = vmatpush1.msra.mxu0 0.0
    %1068 = vmatprep.subr.mxu0 0.0
    %1069 = vmatpush1.msra.mxu0 0.0
    %1070 = vmatprep.subr.mxu0 0.0
    %1071 = vmatpush1.msra.mxu0 0.0
    %1072 = vmatprep.subr.mxu0 0.0
    %1073 = vmatpush1.msra.mxu0 0.0
    %1074 = vmatprep.subr.mxu0 0.0
    %1075 = vmatpush1.msra.mxu0 0.0
    %1076 = vmatprep.subr.mxu0 0.0
    %1077 = vmatpush1.msra.mxu0 0.0
    %1078 = vmatprep.subr.mxu0 0.0
    %1079 = vmatpush1.msra.mxu0 0.0
    %1080 = vmatprep.subr.mxu0 0.0
    %1081 = vmatpush1.msra.mxu0 0.0
    %1082 = vmatprep.subr.mxu0 0.0
    %1083 = vmatpush1.msra.mxu0 0.0
    %1084 = vmatprep.subr.mxu0 0.0
    %1085 = vmatpush1.msra.mxu0 0.0
    %1086 = vmatprep.subr.mxu0 0.0
    %1087 = vmatpush1.msra.mxu0 0.0
    %1088 = vmatprep.subr.mxu0 0.0
    %1089 = vmatpush1.msra.mxu0 0.0
    %1090 = vmatprep.subr.mxu0 0.0
    %1091 = vmatpush1.msra.mxu0 0.0
    %1092 = vmatprep.subr.mxu0 0.0
    %1093 = vmatpush1.msra.mxu0 0.0
    %1094 = vmatprep.subr.mxu0 0.0
    %1095 = vmatpush1.msra.mxu0 0.0
    %1096 = vmatprep.subr.mxu0 0.0
    %1097 = vmatpush1.msra.mxu0 0.0
    %1098 = vmatprep.subr.mxu0 0.0
    %1099 = vmatpush1.msra.mxu0 0.0
    %1100 = vmatprep.subr.mxu0 0.0
    %1101 = vmatpush1.msra.mxu0 0.0
    %1102 = vmatprep.subr.mxu0 0.0
    %1103 = vmatpush1.msra.mxu0 0.0
    %1104 = vmatprep.mubr.f32.mxu0 0.0
    %1105 = vmatmul.mubr.f32.gmra.mrb[0].mxu0 %v1038
    %v1106 = vpop.f32.mrb[0].mxu0
    %v1107 = vadd.f32 0.0, %v1106
    %v1108 = vpop.f32.mrb[0].mxu0
    %1109 = vdwg.mxu0
    %1110 = vrot.lane.b32.xlu0 %v186, 48
    %v1111 = vpop.permute.xlu0 %1110
    %v1114 = vsel %vm194, %v1025, 0
    %1116 = vmatprep.subr.mxu0 0.0
    %1117 = vmatpush1.msra.mxu0 %v1111
    %1118 = vmatprep.subr.mxu0 0.0
    %1119 = vmatpush1.msra.mxu0 0.0
    %1120 = vmatprep.subr.mxu0 0.0
    %1121 = vmatpush1.msra.mxu0 0.0
    %1122 = vmatprep.subr.mxu0 0.0
    %1123 = vmatpush1.msra.mxu0 0.0
    %1124 = vmatprep.subr.mxu0 0.0
    %1125 = vmatpush1.msra.mxu0 0.0
    %1126 = vmatprep.subr.mxu0 0.0
    %1127 = vmatpush1.msra.mxu0 0.0
    %1128 = vmatprep.subr.mxu0 0.0
    %1129 = vmatpush1.msra.mxu0 0.0
    %1130 = vmatprep.subr.mxu0 0.0
    %1131 = vmatpush1.msra.mxu0 0.0
    %1132 = vmatprep.subr.mxu0 0.0
    %1133 = vmatpush1.msra.mxu0 0.0
    %1134 = vmatprep.subr.mxu0 0.0
    %1135 = vmatpush1.msra.mxu0 0.0
    %1136 = vmatprep.subr.mxu0 0.0
    %1137 = vmatpush1.msra.mxu0 0.0
    %1138 = vmatprep.subr.mxu0 0.0
    %1139 = vmatpush1.msra.mxu0 0.0
    %1140 = vmatprep.subr.mxu0 0.0
    %1141 = vmatpush1.msra.mxu0 0.0
    %1142 = vmatprep.subr.mxu0 0.0
    %1143 = vmatpush1.msra.mxu0 0.0
    %1144 = vmatprep.subr.mxu0 0.0
    %1145 = vmatpush1.msra.mxu0 0.0
    %1146 = vmatprep.subr.mxu0 0.0
    %1147 = vmatpush1.msra.mxu0 0.0
    %1148 = vmatprep.subr.mxu0 0.0
    %1149 = vmatpush1.msra.mxu0 0.0
    %1150 = vmatprep.subr.mxu0 0.0
    %1151 = vmatpush1.msra.mxu0 0.0
    %1152 = vmatprep.subr.mxu0 0.0
    %1153 = vmatpush1.msra.mxu0 0.0
    %1154 = vmatprep.subr.mxu0 0.0
    %1155 = vmatpush1.msra.mxu0 0.0
    %1156 = vmatprep.subr.mxu0 0.0
    %1157 = vmatpush1.msra.mxu0 0.0
    %1158 = vmatprep.subr.mxu0 0.0
    %1159 = vmatpush1.msra.mxu0 0.0
    %1160 = vmatprep.subr.mxu0 0.0
    %1161 = vmatpush1.msra.mxu0 0.0
    %1162 = vmatprep.subr.mxu0 0.0
    %1163 = vmatpush1.msra.mxu0 0.0
    %1164 = vmatprep.subr.mxu0 0.0
    %1165 = vmatpush1.msra.mxu0 0.0
    %1166 = vmatprep.subr.mxu0 0.0
    %1167 = vmatpush1.msra.mxu0 0.0
    %1168 = vmatprep.subr.mxu0 0.0
    %1169 = vmatpush1.msra.mxu0 0.0
    %1170 = vmatprep.subr.mxu0 0.0
    %1171 = vmatpush1.msra.mxu0 0.0
    %1172 = vmatprep.subr.mxu0 0.0
    %1173 = vmatpush1.msra.mxu0 0.0
    %1174 = vmatprep.subr.mxu0 0.0
    %1175 = vmatpush1.msra.mxu0 0.0
    %1176 = vmatprep.subr.mxu0 0.0
    %1177 = vmatpush1.msra.mxu0 0.0
    %1178 = vmatprep.subr.mxu0 0.0
    %1179 = vmatpush1.msra.mxu0 0.0
    %1180 = vmatprep.mubr.f32.mxu0 0.0
    %1181 = vmatmul.mubr.f32.gmra.mrb[0].mxu0 %v1114
    %v1182 = vpop.f32.mrb[0].mxu0
    %v1183 = vadd.f32 0.0, %v1182
    %v1184 = vpop.f32.mrb[0].mxu0
    %1185 = vdwg.mxu0
    %v1186 = vmul.f32 %v1107, %v1032
    %v1187 = vmul.f32 %v1183, %v1033
    %1188 = vrot.lane.b32.xlu0 %v189, 104
    %v1189 = vpop.permute.xlu0 %1188
    %1190 = vrot.lane.b32.xlu0 %v183, 72
    %v1191 = vpop.permute.xlu0 %1190
    %v1192 = vsel %vm194, %v1189, 0
    %v1194 = vsel %vm194, %v1191, 0
    %1196 = vmatprep.subr.mxu0 0.0
    %1197 = vmatpush1.xpose.msra.mxu0 %v1194
    %1198 = vmatprep.subr.mxu0 0.0
    %1199 = vmatpush1.xpose.msra.mxu0 0.0
    %1200 = vmatprep.subr.mxu0 0.0
    %1201 = vmatpush1.xpose.msra.mxu0 0.0
    %1202 = vmatprep.subr.mxu0 0.0
    %1203 = vmatpush1.xpose.msra.mxu0 0.0
    %1204 = vmatprep.subr.mxu0 0.0
    %1205 = vmatpush1.xpose.msra.mxu0 0.0
    %1206 = vmatprep.subr.mxu0 0.0
    %1207 = vmatpush1.xpose.msra.mxu0 0.0
    %1208 = vmatprep.subr.mxu0 0.0
    %1209 = vmatpush1.xpose.msra.mxu0 0.0
    %1210 = vmatprep.subr.mxu0 0.0
    %1211 = vmatpush1.xpose.msra.mxu0 0.0
    %1212 = vmatprep.subr.mxu0 0.0
    %1213 = vmatpush1.xpose.msra.mxu0 0.0
    %1214 = vmatprep.subr.mxu0 0.0
    %1215 = vmatpush1.xpose.msra.mxu0 0.0
    %1216 = vmatprep.subr.mxu0 0.0
    %1217 = vmatpush1.xpose.msra.mxu0 0.0
    %1218 = vmatprep.subr.mxu0 0.0
    %1219 = vmatpush1.xpose.msra.mxu0 0.0
    %1220 = vmatprep.subr.mxu0 0.0
    %1221 = vmatpush1.xpose.msra.mxu0 0.0
    %1222 = vmatprep.subr.mxu0 0.0
    %1223 = vmatpush1.xpose.msra.mxu0 0.0
    %1224 = vmatprep.subr.mxu0 0.0
    %1225 = vmatpush1.xpose.msra.mxu0 0.0
    %1226 = vmatprep.subr.mxu0 0.0
    %1227 = vmatpush1.xpose.msra.mxu0 0.0
    %1228 = vmatprep.subr.mxu0 0.0
    %1229 = vmatpush1.xpose.msra.mxu0 0.0
    %1230 = vmatprep.subr.mxu0 0.0
    %1231 = vmatpush1.xpose.msra.mxu0 0.0
    %1232 = vmatprep.subr.mxu0 0.0
    %1233 = vmatpush1.xpose.msra.mxu0 0.0
    %1234 = vmatprep.subr.mxu0 0.0
    %1235 = vmatpush1.xpose.msra.mxu0 0.0
    %1236 = vmatprep.subr.mxu0 0.0
    %1237 = vmatpush1.xpose.msra.mxu0 0.0
    %1238 = vmatprep.subr.mxu0 0.0
    %1239 = vmatpush1.xpose.msra.mxu0 0.0
    %1240 = vmatprep.subr.mxu0 0.0
    %1241 = vmatpush1.xpose.msra.mxu0 0.0
    %1242 = vmatprep.subr.mxu0 0.0
    %1243 = vmatpush1.xpose.msra.mxu0 0.0
    %1244 = vmatprep.subr.mxu0 0.0
    %1245 = vmatpush1.xpose.msra.mxu0 0.0
    %1246 = vmatprep.subr.mxu0 0.0
    %1247 = vmatpush1.xpose.msra.mxu0 0.0
    %1248 = vmatprep.subr.mxu0 0.0
    %1249 = vmatpush1.xpose.msra.mxu0 0.0
    %1250 = vmatprep.subr.mxu0 0.0
    %1251 = vmatpush1.xpose.msra.mxu0 0.0
    %1252 = vmatprep.subr.mxu0 0.0
    %1253 = vmatpush1.xpose.msra.mxu0 0.0
    %1254 = vmatprep.subr.mxu0 0.0
    %1255 = vmatpush1.xpose.msra.mxu0 0.0
    %1256 = vmatprep.subr.mxu0 0.0
    %1257 = vmatpush1.xpose.msra.mxu0 0.0
    %1258 = vmatprep.subr.mxu0 0.0
    %1259 = vmatpush1.xpose.msra.mxu0 0.0
    %1260 = vmatprep.mubr.f32.mxu0 0.0
    %1261 = vmatmul.mubr.f32.gmra.mrb[0].mxu0 %v1192
    %v1262 = vpop.f32.mrb[0].mxu0
    %v1263 = vadd.f32 0.0, %v1262
    %v1264 = vpop.f32.mrb[0].mxu0
    %1265 = vdwg.mxu0
    %1266 = vrot.lane.b32.xlu0 %v190, 104
    %v1267 = vpop.permute.xlu0 %1266
    %1268 = vrot.lane.b32.xlu0 %v186, 72
    %v1269 = vpop.permute.xlu0 %1268
    %v1270 = vsel %vm194, %v1267, 0
    %v1272 = vsel %vm194, %v1269, 0
    %1274 = vmatprep.subr.mxu0 0.0
    %1275 = vmatpush1.xpose.msra.mxu0 %v1272
    %1276 = vmatprep.subr.mxu0 0.0
    %1277 = vmatpush1.xpose.msra.mxu0 0.0
    %1278 = vmatprep.subr.mxu0 0.0
    %1279 = vmatpush1.xpose.msra.mxu0 0.0
    %1280 = vmatprep.subr.mxu0 0.0
    %1281 = vmatpush1.xpose.msra.mxu0 0.0
    %1282 = vmatprep.subr.mxu0 0.0
    %1283 = vmatpush1.xpose.msra.mxu0 0.0
    %1284 = vmatprep.subr.mxu0 0.0
    %1285 = vmatpush1.xpose.msra.mxu0 0.0
    %1286 = vmatprep.subr.mxu0 0.0
    %1287 = vmatpush1.xpose.msra.mxu0 0.0
    %1288 = vmatprep.subr.mxu0 0.0
    %1289 = vmatpush1.xpose.msra.mxu0 0.0
    %1290 = vmatprep.subr.mxu0 0.0
    %1291 = vmatpush1.xpose.msra.mxu0 0.0
    %1292 = vmatprep.subr.mxu0 0.0
    %1293 = vmatpush1.xpose.msra.mxu0 0.0
    %1294 = vmatprep.subr.mxu0 0.0
    %1295 = vmatpush1.xpose.msra.mxu0 0.0
    %1296 = vmatprep.subr.mxu0 0.0
    %1297 = vmatpush1.xpose.msra.mxu0 0.0
    %1298 = vmatprep.subr.mxu0 0.0
    %1299 = vmatpush1.xpose.msra.mxu0 0.0
    %1300 = vmatprep.subr.mxu0 0.0
    %1301 = vmatpush1.xpose.msra.mxu0 0.0
    %1302 = vmatprep.subr.mxu0 0.0
    %1303 = vmatpush1.xpose.msra.mxu0 0.0
    %1304 = vmatprep.subr.mxu0 0.0
    %1305 = vmatpush1.xpose.msra.mxu0 0.0
    %1306 = vmatprep.subr.mxu0 0.0
    %1307 = vmatpush1.xpose.msra.mxu0 0.0
    %1308 = vmatprep.subr.mxu0 0.0
    %1309 = vmatpush1.xpose.msra.mxu0 0.0
    %1310 = vmatprep.subr.mxu0 0.0
    %1311 = vmatpush1.xpose.msra.mxu0 0.0
    %1312 = vmatprep.subr.mxu0 0.0
    %1313 = vmatpush1.xpose.msra.mxu0 0.0
    %1314 = vmatprep.subr.mxu0 0.0
    %1315 = vmatpush1.xpose.msra.mxu0 0.0
    %1316 = vmatprep.subr.mxu0 0.0
    %1317 = vmatpush1.xpose.msra.mxu0 0.0
    %1318 = vmatprep.subr.mxu0 0.0
    %1319 = vmatpush1.xpose.msra.mxu0 0.0
    %1320 = vmatprep.subr.mxu0 0.0
    %1321 = vmatpush1.xpose.msra.mxu0 0.0
    %1322 = vmatprep.subr.mxu0 0.0
    %1323 = vmatpush1.xpose.msra.mxu0 0.0
    %1324 = vmatprep.subr.mxu0 0.0
    %1325 = vmatpush1.xpose.msra.mxu0 0.0
    %1326 = vmatprep.subr.mxu0 0.0
    %1327 = vmatpush1.xpose.msra.mxu0 0.0
    %1328 = vmatprep.subr.mxu0 0.0
    %1329 = vmatpush1.xpose.msra.mxu0 0.0
    %1330 = vmatprep.subr.mxu0 0.0
    %1331 = vmatpush1.xpose.msra.mxu0 0.0
    %1332 = vmatprep.subr.mxu0 0.0
    %1333 = vmatpush1.xpose.msra.mxu0 0.0
    %1334 = vmatprep.subr.mxu0 0.0
    %1335 = vmatpush1.xpose.msra.mxu0 0.0
    %1336 = vmatprep.subr.mxu0 0.0
    %1337 = vmatpush1.xpose.msra.mxu0 0.0
    %1338 = vmatprep.mubr.f32.mxu0 0.0
    %1339 = vmatmul.mubr.f32.gmra.mrb[0].mxu0 %v1270
    %v1340 = vpop.f32.mrb[0].mxu0
    %v1341 = vadd.f32 0.0, %v1340
    %v1342 = vpop.f32.mrb[0].mxu0
    %1343 = vdwg.mxu0
    %v1344 = vadd.f32 %v1263, %v68
    %v1345 = vadd.f32 %v1341, %v69
    %v1346 = vsel %vm194, %v1344, -inf
    %1347 = vmax.xlane.f32.xlu0 %v1346
    %v1348 = vpop.xlane.xlu0 %1347
    %v1349 = vsel %vm194, %v1345, -inf
    %1350 = vmax.xlane.f32.xlu0 %v1349
    %v1351 = vpop.xlane.xlu0 %1350
    %v1352 = vsub.f32 %v1344, %v1348
    %v1353 = vsub.f32 %v1345, %v1351
    %v1354 = vmul.f32 %v1352, 1.442695
    %v1355 = vpow.pop %v1354
    %v1356 = vmul.f32 %v1353, 1.442695
    %v1357 = vpow.pop %v1356
    %v1358 = vsel %vm194, %v1355, 0.0
    %1359 = vadd.xlane.f32.xlu0 %v1358
    %v1360 = vpop.xlane.xlu0 %1359
    %v1361 = vsel %vm194, %v1357, 0.0
    %1362 = vadd.xlane.f32.xlu0 %v1361
    %v1363 = vpop.xlane.xlu0 %1362
    %v1364 = vrcp.pop %v1360
    %v1365 = vrcp.pop %v1363
    %1366 = vrot.lane.b32.xlu0 %v183, 40
    %v1367 = vpop.permute.xlu0 %1366
    %v1370 = vsel %vm194, %v1355, 0
    %1372 = vmatprep.subr.mxu0 0.0
    %1373 = vmatpush1.msra.mxu0 %v1367
    %1374 = vmatprep.subr.mxu0 0.0
    %1375 = vmatpush1.msra.mxu0 0.0
    %1376 = vmatprep.subr.mxu0 0.0
    %1377 = vmatpush1.msra.mxu0 0.0
    %1378 = vmatprep.subr.mxu0 0.0
    %1379 = vmatpush1.msra.mxu0 0.0
    %1380 = vmatprep.subr.mxu0 0.0
    %1381 = vmatpush1.msra.mxu0 0.0
    %1382 = vmatprep.subr.mxu0 0.0
    %1383 = vmatpush1.msra.mxu0 0.0
    %1384 = vmatprep.subr.mxu0 0.0
    %1385 = vmatpush1.msra.mxu0 0.0
    %1386 = vmatprep.subr.mxu0 0.0
    %1387 = vmatpush1.msra.mxu0 0.0
    %1388 = vmatprep.subr.mxu0 0.0
    %1389 = vmatpush1.msra.mxu0 0.0
    %1390 = vmatprep.subr.mxu0 0.0
    %1391 = vmatpush1.msra.mxu0 0.0
    %1392 = vmatprep.subr.mxu0 0.0
    %1393 = vmatpush1.msra.mxu0 0.0
    %1394 = vmatprep.subr.mxu0 0.0
    %1395 = vmatpush1.msra.mxu0 0.0
    %1396 = vmatprep.subr.mxu0 0.0
    %1397 = vmatpush1.msra.mxu0 0.0
    %1398 = vmatprep.subr.mxu0 0.0
    %1399 = vmatpush1.msra.mxu0 0.0
    %1400 = vmatprep.subr.mxu0 0.0
    %1401 = vmatpush1.msra.mxu0 0.0
    %1402 = vmatprep.subr.mxu0 0.0
    %1403 = vmatpush1.msra.mxu0 0.0
    %1404 = vmatprep.subr.mxu0 0.0
    %1405 = vmatpush1.msra.mxu0 0.0
    %1406 = vmatprep.subr.mxu0 0.0
    %1407 = vmatpush1.msra.mxu0 0.0
    %1408 = vmatprep.subr.mxu0 0.0
    %1409 = vmatpush1.msra.mxu0 0.0
    %1410 = vmatprep.subr.mxu0 0.0
    %1411 = vmatpush1.msra.mxu0 0.0
    %1412 = vmatprep.subr.mxu0 0.0
    %1413 = vmatpush1.msra.mxu0 0.0
    %1414 = vmatprep.subr.mxu0 0.0
    %1415 = vmatpush1.msra.mxu0 0.0
    %1416 = vmatprep.subr.mxu0 0.0
    %1417 = vmatpush1.msra.mxu0 0.0
    %1418 = vmatprep.subr.mxu0 0.0
    %1419 = vmatpush1.msra.mxu0 0.0
    %1420 = vmatprep.subr.mxu0 0.0
    %1421 = vmatpush1.msra.mxu0 0.0
    %1422 = vmatprep.subr.mxu0 0.0
    %1423 = vmatpush1.msra.mxu0 0.0
    %1424 = vmatprep.subr.mxu0 0.0
    %1425 = vmatpush1.msra.mxu0 0.0
    %1426 = vmatprep.subr.mxu0 0.0
    %1427 = vmatpush1.msra.mxu0 0.0
    %1428 = vmatprep.subr.mxu0 0.0
    %1429 = vmatpush1.msra.mxu0 0.0
    %1430 = vmatprep.subr.mxu0 0.0
    %1431 = vmatpush1.msra.mxu0 0.0
    %1432 = vmatprep.subr.mxu0 0.0
    %1433 = vmatpush1.msra.mxu0 0.0
    %1434 = vmatprep.subr.mxu0 0.0
    %1435 = vmatpush1.msra.mxu0 0.0
    %1436 = vmatprep.mubr.f32.mxu0 0.0
    %1437 = vmatmul.mubr.f32.gmra.mrb[0].mxu0 %v1370
    %v1438 = vpop.f32.mrb[0].mxu0
    %v1439 = vadd.f32 0.0, %v1438
    %v1440 = vpop.f32.mrb[0].mxu0
    %1441 = vdwg.mxu0
    %1442 = vrot.lane.b32.xlu0 %v186, 40
    %v1443 = vpop.permute.xlu0 %1442
    %v1446 = vsel %vm194, %v1357, 0
    %1448 = vmatprep.subr.mxu0 0.0
    %1449 = vmatpush1.msra.mxu0 %v1443
    %1450 = vmatprep.subr.mxu0 0.0
    %1451 = vmatpush1.msra.mxu0 0.0
    %1452 = vmatprep.subr.mxu0 0.0
    %1453 = vmatpush1.msra.mxu0 0.0
    %1454 = vmatprep.subr.mxu0 0.0
    %1455 = vmatpush1.msra.mxu0 0.0
    %1456 = vmatprep.subr.mxu0 0.0
    %1457 = vmatpush1.msra.mxu0 0.0
    %1458 = vmatprep.subr.mxu0 0.0
    %1459 = vmatpush1.msra.mxu0 0.0
    %1460 = vmatprep.subr.mxu0 0.0
    %1461 = vmatpush1.msra.mxu0 0.0
    %1462 = vmatprep.subr.mxu0 0.0
    %1463 = vmatpush1.msra.mxu0 0.0
    %1464 = vmatprep.subr.mxu0 0.0
    %1465 = vmatpush1.msra.mxu0 0.0
    %1466 = vmatprep.subr.mxu0 0.0
    %1467 = vmatpush1.msra.mxu0 0.0
    %1468 = vmatprep.subr.mxu0 0.0
    %1469 = vmatpush1.msra.mxu0 0.0
    %1470 = vmatprep.subr.mxu0 0.0
    %1471 = vmatpush1.msra.mxu0 0.0
    %1472 = vmatprep.subr.mxu0 0.0
    %1473 = vmatpush1.msra.mxu0 0.0
    %1474 = vmatprep.subr.mxu0 0.0
    %1475 = vmatpush1.msra.mxu0 0.0
    %1476 = vmatprep.subr.mxu0 0.0
    %1477 = vmatpush1.msra.mxu0 0.0
    %1478 = vmatprep.subr.mxu0 0.0
    %1479 = vmatpush1.msra.mxu0 0.0
    %1480 = vmatprep.subr.mxu0 0.0
    %1481 = vmatpush1.msra.mxu0 0.0
    %1482 = vmatprep.subr.mxu0 0.0
    %1483 = vmatpush1.msra.mxu0 0.0
    %1484 = vmatprep.subr.mxu0 0.0
    %1485 = vmatpush1.msra.mxu0 0.0
    %1486 = vmatprep.subr.mxu0 0.0
    %1487 = vmatpush1.msra.mxu0 0.0
    %1488 = vmatprep.subr.mxu0 0.0
    %1489 = vmatpush1.msra.mxu0 0.0
    %1490 = vmatprep.subr.mxu0 0.0
    %1491 = vmatpush1.msra.mxu0 0.0
    %1492 = vmatprep.subr.mxu0 0.0
    %1493 = vmatpush1.msra.mxu0 0.0
    %1494 = vmatprep.subr.mxu0 0.0
    %1495 = vmatpush1.msra.mxu0 0.0
    %1496 = vmatprep.subr.mxu0 0.0
    %1497 = vmatpush1.msra.mxu0 0.0
    %1498 = vmatprep.subr.mxu0 0.0
    %1499 = vmatpush1.msra.mxu0 0.0
    %1500 = vmatprep.subr.mxu0 0.0
    %1501 = vmatpush1.msra.mxu0 0.0
    %1502 = vmatprep.subr.mxu0 0.0
    %1503 = vmatpush1.msra.mxu0 0.0
    %1504 = vmatprep.subr.mxu0 0.0
    %1505 = vmatpush1.msra.mxu0 0.0
    %1506 = vmatprep.subr.mxu0 0.0
    %1507 = vmatpush1.msra.mxu0 0.0
    %1508 = vmatprep.subr.mxu0 0.0
    %1509 = vmatpush1.msra.mxu0 0.0
    %1510 = vmatprep.subr.mxu0 0.0
    %1511 = vmatpush1.msra.mxu0 0.0
    %1512 = vmatprep.mubr.f32.mxu0 0.0
    %1513 = vmatmul.mubr.f32.gmra.mrb[0].mxu0 %v1446
    %v1514 = vpop.f32.mrb[0].mxu0
    %v1515 = vadd.f32 0.0, %v1514
    %v1516 = vpop.f32.mrb[0].mxu0
    %1517 = vdwg.mxu0
    %v1518 = vmul.f32 %v1439, %v1364
    %v1519 = vmul.f32 %v1515, %v1365
    %1522 = vrot.lane.b32.xlu0 %v854, 8
    %v1523 = vpop.permute.xlu0 %1522
    %1524 = vrot.lane.b32.xlu0 %v855, 8
    %v1525 = vpop.permute.xlu0 %1524
    %1530 = vrot.lane.b32.xlu0 %v1186, 16
    %v1531 = vpop.permute.xlu0 %1530
    %1532 = vrot.lane.b32.xlu0 %v1187, 16
    %v1533 = vpop.permute.xlu0 %1532
    %1538 = vrot.lane.b32.xlu0 %v1518, 24
    %v1539 = vpop.permute.xlu0 %1538
    %1540 = vrot.lane.b32.xlu0 %v1519, 24
    %v1541 = vpop.permute.xlu0 %1540
    %v1544 = vsel %vm194, %v522, %v1523
    %v1545 = vsel %vm194, %v523, %v1525
    %vm1546 = vcmask 130048
    %v1547 = vsel %vm1546, %v1544, %v1531
    %v1548 = vsel %vm1546, %v1545, %v1533
    %vm1549 = vcmask 195584
    %v1550 = vsel %vm1549, %v1547, %v1539
    %v1551 = vsel %vm1549, %v1548, %v1541
    %s1552 = scalar_lea.vmem [#allocation2], 16
    %v1553 = vld [vmem:[%s1552] sm:$0xf]
    %v1554 = vld [vmem:[%s1552 + $0x4] sm:$0xf]
    %v1555 = vld [vmem:[%s1552 + $0x8] sm:$0xf]
    %v1556 = vld [vmem:[%s1552 + $0xc] sm:$0xf]
    %v1557 = vpack.c.bf16 %v1551, %v1550
    %v1558 = vlaneseq
    %v1559 = vshrl.u32 %v1558, 7
    %v1560 = vsub.s32 3, %v1559
    %v1561 = vrot.slane %v42, %v1560
    %v1566 = vunpack.c.l.b16 %v1553
    %v1567 = vunpack.c.l.b16 %v1554
    %v1568 = vunpack.c.l.b16 %v1555
    %v1569 = vunpack.c.l.b16 %v1556
    %v1570 = vpack.c.b16 %v1567, %v1566
    %v1571 = vpack.c.b16 %v1569, %v1568
    %v1575 = vsel %vm84, %v1557, 0
    %1577 = vmatprep.subr.bf16.mxu0 0
    %1578 = vmatpush1.bf16.msra.mxu0 %v1570
    %1579 = vmatprep.subr.bf16.mxu0 0
    %1580 = vmatpush1.bf16.msra.mxu0 %v1571
    %1581 = vmatprep.subr.bf16.mxu0 0
    %1582 = vmatpush1.bf16.msra.mxu0 0
    %1583 = vmatprep.subr.bf16.mxu0 0
    %1584 = vmatpush1.bf16.msra.mxu0 0
    %1585 = vmatprep.subr.bf16.mxu0 0
    %1586 = vmatpush1.bf16.msra.mxu0 0
    %1587 = vmatprep.subr.bf16.mxu0 0
    %1588 = vmatpush1.bf16.msra.mxu0 0
    %1589 = vmatprep.subr.bf16.mxu0 0
    %1590 = vmatpush1.bf16.msra.mxu0 0
    %1591 = vmatprep.subr.bf16.mxu0 0
    %1592 = vmatpush1.bf16.msra.mxu0 0
    %1593 = vmatprep.subr.bf16.mxu0 0
    %1594 = vmatpush1.bf16.msra.mxu0 0
    %1595 = vmatprep.subr.bf16.mxu0 0
    %1596 = vmatpush1.bf16.msra.mxu0 0
    %1597 = vmatprep.subr.bf16.mxu0 0
    %1598 = vmatpush1.bf16.msra.mxu0 0
    %1599 = vmatprep.subr.bf16.mxu0 0
    %1600 = vmatpush1.bf16.msra.mxu0 0
    %1601 = vmatprep.subr.bf16.mxu0 0
    %1602 = vmatpush1.bf16.msra.mxu0 0
    %1603 = vmatprep.subr.bf16.mxu0 0
    %1604 = vmatpush1.bf16.msra.mxu0 0
    %1605 = vmatprep.subr.bf16.mxu0 0
    %1606 = vmatpush1.bf16.msra.mxu0 0
    %1607 = vmatprep.subr.bf16.mxu0 0
    %1608 = vmatpush1.bf16.msra.mxu0 0
    %1609 = vmatprep.mubr.bf16.mxu0 0
    %1610 = vmatmul.mubr.bf16.gmra.mrb[0].mxu0 %v1575
    %v1611 = vpop.f32.mrb[0].mxu0
    %v1612 = vadd.f32 %v1561, %v1611
    %v1613 = vpop.f32.mrb[0].mxu0
    %v1614 = vpop.f32.mrb[0].mxu0
    %v1615 = vadd.f32 %v1561, %v1614
    %v1616 = vpop.f32.mrb[0].mxu0
    %1617 = vdwg.mxu0
    %v1618 = vadd.f32 %v44, %v1612
    %v1619 = vadd.f32 %v45, %v1615
    %v1620 = vsel %vm84, %v1618, 0.0
    %1621 = vadd.xlane.f32.xlu0 %v1620
    %v1622 = vpop.xlane.xlu0 %1621
    %v1623 = vsel %vm84, %v1619, 0.0
    %1624 = vadd.xlane.f32.xlu0 %v1623
    %v1625 = vpop.xlane.xlu0 %1624
    %v1626 = vmul.f32 %v1622, %v91
    %v1627 = vmul.f32 %v1625, %v91
    %v1628 = vsub.f32 %v1618, %v1626
    %v1629 = vsub.f32 %v1619, %v1627
    %v1630 = vmul.f32 %v1628, %v1628
    %v1631 = vmul.f32 %v1629, %v1629
    %v1632 = vsel %vm84, %v1630, 0.0
    %1633 = vadd.xlane.f32.xlu0 %v1632
    %v1634 = vpop.xlane.xlu0 %1633
    %v1635 = vsel %vm84, %v1631, 0.0
    %1636 = vadd.xlane.f32.xlu0 %v1635
    %v1637 = vpop.xlane.xlu0 %1636
    %v1638 = vmul.f32 %v1634, %v91
    %v1639 = vmul.f32 %v1637, %v91
    %v1640 = vadd.f32 %v1638, 1e-05
    %v1641 = vadd.f32 %v1639, 1e-05
    %v1642 = vrsqrt.pop %v1640
    %v1643 = vrsqrt.pop %v1641
    %v1644 = vmul.f32 %v1628, %v1642
    %v1645 = vmul.f32 %v1629, %v1643
    %v1646 = vlaneseq
    %v1647 = vshrl.u32 %v1646, 7
    %v1648 = vsub.s32 4, %v1647
    %v1649 = vrot.slane %v42, %v1648
    %v1650 = vmul.f32 %v1644, %v1649
    %v1651 = vmul.f32 %v1645, %v1649
    %v1652 = vlaneseq
    %v1653 = vshrl.u32 %v1652, 7
    %v1654 = vsub.s32 5, %v1653
    %v1655 = vrot.slane %v42, %v1654
    %v1656 = vadd.f32 %v1650, %v1655
    %v1657 = vadd.f32 %v1651, %v1655
    %s1658 = scalar_lea.vmem [#allocation2], 32
    %v1659 = vld [vmem:[%s1658] sm:$0xf]
    %v1660 = vld [vmem:[%s1658 + $0x4] sm:$0xf]
    %v1661 = vld [vmem:[%s1658 + $0x8] sm:$0xf]
    %v1662 = vld [vmem:[%s1658 + $0xc] sm:$0xf]
    %v1663 = vpack.c.bf16 %v1657, %v1656
    %v1664 = vlaneseq
    %v1665 = vshrl.u32 %v1664, 7
    %v1666 = vsub.s32 6, %v1665
    %v1667 = vrot.slane %v42, %v1666
    %v1672 = vunpack.c.l.b16 %v1659
    %v1673 = vunpack.c.l.b16 %v1660
    %v1674 = vunpack.c.l.b16 %v1661
    %v1675 = vunpack.c.l.b16 %v1662
    %v1676 = vpack.c.b16 %v1673, %v1672
    %v1677 = vpack.c.b16 %v1675, %v1674
    %v1681 = vsel %vm84, %v1663, 0
    %1683 = vmatprep.subr.bf16.mxu0 0
    %1684 = vmatpush1.bf16.msra.mxu0 %v1676
    %1685 = vmatprep.subr.bf16.mxu0 0
    %1686 = vmatpush1.bf16.msra.mxu0 %v1677
    %1687 = vmatprep.subr.bf16.mxu0 0
    %1688 = vmatpush1.bf16.msra.mxu0 0
    %1689 = vmatprep.subr.bf16.mxu0 0
    %1690 = vmatpush1.bf16.msra.mxu0 0
    %1691 = vmatprep.subr.bf16.mxu0 0
    %1692 = vmatpush1.bf16.msra.mxu0 0
    %1693 = vmatprep.subr.bf16.mxu0 0
    %1694 = vmatpush1.bf16.msra.mxu0 0
    %1695 = vmatprep.subr.bf16.mxu0 0
    %1696 = vmatpush1.bf16.msra.mxu0 0
    %1697 = vmatprep.subr.bf16.mxu0 0
    %1698 = vmatpush1.bf16.msra.mxu0 0
    %1699 = vmatprep.subr.bf16.mxu0 0
    %1700 = vmatpush1.bf16.msra.mxu0 0
    %1701 = vmatprep.subr.bf16.mxu0 0
    %1702 = vmatpush1.bf16.msra.mxu0 0
    %1703 = vmatprep.subr.bf16.mxu0 0
    %1704 = vmatpush1.bf16.msra.mxu0 0
    %1705 = vmatprep.subr.bf16.mxu0 0
    %1706 = vmatpush1.bf16.msra.mxu0 0
    %1707 = vmatprep.subr.bf16.mxu0 0
    %1708 = vmatpush1.bf16.msra.mxu0 0
    %1709 = vmatprep.subr.bf16.mxu0 0
    %1710 = vmatpush1.bf16.msra.mxu0 0
    %1711 = vmatprep.subr.bf16.mxu0 0
    %1712 = vmatpush1.bf16.msra.mxu0 0
    %1713 = vmatprep.subr.bf16.mxu0 0
    %1714 = vmatpush1.bf16.msra.mxu0 0
    %1715 = vmatprep.mubr.bf16.mxu0 0
    %1716 = vmatmul.mubr.bf16.gmra.mrb[0].mxu0 %v1681
    %v1717 = vpop.f32.mrb[0].mxu0
    %v1718 = vadd.f32 %v1667, %v1717
    %v1719 = vpop.f32.mrb[0].mxu0
    %v1720 = vpop.f32.mrb[0].mxu0
    %v1721 = vadd.f32 %v1667, %v1720
    %v1722 = vpop.f32.mrb[0].mxu0
    %1723 = vdwg.mxu0
    %v1724 = vmul.f32 %v1718, 0.35355338
    %v1725 = vmul.f32 %v1721, 0.35355338
    %s1726 = scalar_lea.vmem [#allocation2], 48
    %v1727 = vld [vmem:[%s1726] sm:$0xf]
    %v1728 = vld [vmem:[%s1726 + $0x4] sm:$0xf]
    %v1729 = vld [vmem:[%s1726 + $0x8] sm:$0xf]
    %v1730 = vld [vmem:[%s1726 + $0xc] sm:$0xf]
    %v1731 = vpack.c.bf16 %v47, %v46
    %v1732 = vlaneseq
    %v1733 = vshrl.u32 %v1732, 7
    %v1734 = vsub.s32 7, %v1733
    %v1735 = vrot.slane %v42, %v1734
    %v1740 = vunpack.c.l.b16 %v1727
    %v1741 = vunpack.c.l.b16 %v1728
    %v1742 = vunpack.c.l.b16 %v1729
    %v1743 = vunpack.c.l.b16 %v1730
    %v1744 = vpack.c.b16 %v1741, %v1740
    %v1745 = vpack.c.b16 %v1743, %v1742
    %v1749 = vsel %vm84, %v1731, 0
    %1751 = vmatprep.subr.bf16.mxu0 0
    %1752 = vmatpush1.bf16.msra.mxu0 %v1744
    %1753 = vmatprep.subr.bf16.mxu0 0
    %1754 = vmatpush1.bf16.msra.mxu0 %v1745
    %1755 = vmatprep.subr.bf16.mxu0 0
    %1756 = vmatpush1.bf16.msra.mxu0 0
    %1757 = vmatprep.subr.bf16.mxu0 0
    %1758 = vmatpush1.bf16.msra.mxu0 0
    %1759 = vmatprep.subr.bf16.mxu0 0
    %1760 = vmatpush1.bf16.msra.mxu0 0
    %1761 = vmatprep.subr.bf16.mxu0 0
    %1762 = vmatpush1.bf16.msra.mxu0 0
    %1763 = vmatprep.subr.bf16.mxu0 0
    %1764 = vmatpush1.bf16.msra.mxu0 0
    %1765 = vmatprep.subr.bf16.mxu0 0
    %1766 = vmatpush1.bf16.msra.mxu0 0
    %1767 = vmatprep.subr.bf16.mxu0 0
    %1768 = vmatpush1.bf16.msra.mxu0 0
    %1769 = vmatprep.subr.bf16.mxu0 0
    %1770 = vmatpush1.bf16.msra.mxu0 0
    %1771 = vmatprep.subr.bf16.mxu0 0
    %1772 = vmatpush1.bf16.msra.mxu0 0
    %1773 = vmatprep.subr.bf16.mxu0 0
    %1774 = vmatpush1.bf16.msra.mxu0 0
    %1775 = vmatprep.subr.bf16.mxu0 0
    %1776 = vmatpush1.bf16.msra.mxu0 0
    %1777 = vmatprep.subr.bf16.mxu0 0
    %1778 = vmatpush1.bf16.msra.mxu0 0
    %1779 = vmatprep.subr.bf16.mxu0 0
    %1780 = vmatpush1.bf16.msra.mxu0 0
    %1781 = vmatprep.subr.bf16.mxu0 0
    %1782 = vmatpush1.bf16.msra.mxu0 0
    %1783 = vmatprep.mubr.bf16.mxu0 0
    %1784 = vmatmul.mubr.bf16.gmra.mrb[0].mxu0 %v1749
    %v1785 = vpop.f32.mrb[0].mxu0
    %v1786 = vadd.f32 %v1735, %v1785
    %v1787 = vpop.f32.mrb[0].mxu0
    %v1788 = vpop.f32.mrb[0].mxu0
    %v1789 = vadd.f32 %v1735, %v1788
    %v1790 = vpop.f32.mrb[0].mxu0
    %1791 = vdwg.mxu0
    %v1793 = vsel %vm194, %v1724, 0
    %v1796 = vsel %vm194, %v1786, 0
    %1798 = vmatprep.subr.mxu0 0.0
    %1799 = vmatpush1.xpose.msra.mxu0 %v1796
    %1800 = vmatprep.subr.mxu0 0.0
    %1801 = vmatpush1.xpose.msra.mxu0 0.0
    %1802 = vmatprep.subr.mxu0 0.0
    %1803 = vmatpush1.xpose.msra.mxu0 0.0
    %1804 = vmatprep.subr.mxu0 0.0
    %1805 = vmatpush1.xpose.msra.mxu0 0.0
    %1806 = vmatprep.subr.mxu0 0.0
    %1807 = vmatpush1.xpose.msra.mxu0 0.0
    %1808 = vmatprep.subr.mxu0 0.0
    %1809 = vmatpush1.xpose.msra.mxu0 0.0
    %1810 = vmatprep.subr.mxu0 0.0
    %1811 = vmatpush1.xpose.msra.mxu0 0.0
    %1812 = vmatprep.subr.mxu0 0.0
    %1813 = vmatpush1.xpose.msra.mxu0 0.0
    %1814 = vmatprep.subr.mxu0 0.0
    %1815 = vmatpush1.xpose.msra.mxu0 0.0
    %1816 = vmatprep.subr.mxu0 0.0
    %1817 = vmatpush1.xpose.msra.mxu0 0.0
    %1818 = vmatprep.subr.mxu0 0.0
    %1819 = vmatpush1.xpose.msra.mxu0 0.0
    %1820 = vmatprep.subr.mxu0 0.0
    %1821 = vmatpush1.xpose.msra.mxu0 0.0
    %1822 = vmatprep.subr.mxu0 0.0
    %1823 = vmatpush1.xpose.msra.mxu0 0.0
    %1824 = vmatprep.subr.mxu0 0.0
    %1825 = vmatpush1.xpose.msra.mxu0 0.0
    %1826 = vmatprep.subr.mxu0 0.0
    %1827 = vmatpush1.xpose.msra.mxu0 0.0
    %1828 = vmatprep.subr.mxu0 0.0
    %1829 = vmatpush1.xpose.msra.mxu0 0.0
    %1830 = vmatprep.subr.mxu0 0.0
    %1831 = vmatpush1.xpose.msra.mxu0 0.0
    %1832 = vmatprep.subr.mxu0 0.0
    %1833 = vmatpush1.xpose.msra.mxu0 0.0
    %1834 = vmatprep.subr.mxu0 0.0
    %1835 = vmatpush1.xpose.msra.mxu0 0.0
    %1836 = vmatprep.subr.mxu0 0.0
    %1837 = vmatpush1.xpose.msra.mxu0 0.0
    %1838 = vmatprep.subr.mxu0 0.0
    %1839 = vmatpush1.xpose.msra.mxu0 0.0
    %1840 = vmatprep.subr.mxu0 0.0
    %1841 = vmatpush1.xpose.msra.mxu0 0.0
    %1842 = vmatprep.subr.mxu0 0.0
    %1843 = vmatpush1.xpose.msra.mxu0 0.0
    %1844 = vmatprep.subr.mxu0 0.0
    %1845 = vmatpush1.xpose.msra.mxu0 0.0
    %1846 = vmatprep.subr.mxu0 0.0
    %1847 = vmatpush1.xpose.msra.mxu0 0.0
    %1848 = vmatprep.subr.mxu0 0.0
    %1849 = vmatpush1.xpose.msra.mxu0 0.0
    %1850 = vmatprep.subr.mxu0 0.0
    %1851 = vmatpush1.xpose.msra.mxu0 0.0
    %1852 = vmatprep.subr.mxu0 0.0
    %1853 = vmatpush1.xpose.msra.mxu0 0.0
    %1854 = vmatprep.subr.mxu0 0.0
    %1855 = vmatpush1.xpose.msra.mxu0 0.0
    %1856 = vmatprep.subr.mxu0 0.0
    %1857 = vmatpush1.xpose.msra.mxu0 0.0
    %1858 = vmatprep.subr.mxu0 0.0
    %1859 = vmatpush1.xpose.msra.mxu0 0.0
    %1860 = vmatprep.subr.mxu0 0.0
    %1861 = vmatpush1.xpose.msra.mxu0 0.0
    %1862 = vmatprep.mubr.f32.mxu0 0.0
    %1863 = vmatmul.mubr.f32.gmra.mrb[0].mxu0 %v1793
    %v1864 = vpop.f32.mrb[0].mxu0
    %v1865 = vadd.f32 0.0, %v1864
    %v1866 = vpop.f32.mrb[0].mxu0
    %1867 = vdwg.mxu0
    %v1869 = vsel %vm194, %v1725, 0
    %v1872 = vsel %vm194, %v1789, 0
    %1874 = vmatprep.subr.mxu0 0.0
    %1875 = vmatpush1.xpose.msra.mxu0 %v1872
    %1876 = vmatprep.subr.mxu0 0.0
    %1877 = vmatpush1.xpose.msra.mxu0 0.0
    %1878 = vmatprep.subr.mxu0 0.0
    %1879 = vmatpush1.xpose.msra.mxu0 0.0
    %1880 = vmatprep.subr.mxu0 0.0
    %1881 = vmatpush1.xpose.msra.mxu0 0.0
    %1882 = vmatprep.subr.mxu0 0.0
    %1883 = vmatpush1.xpose.msra.mxu0 0.0
    %1884 = vmatprep.subr.mxu0 0.0
    %1885 = vmatpush1.xpose.msra.mxu0 0.0
    %1886 = vmatprep.subr.mxu0 0.0
    %1887 = vmatpush1.xpose.msra.mxu0 0.0
    %1888 = vmatprep.subr.mxu0 0.0
    %1889 = vmatpush1.xpose.msra.mxu0 0.0
    %1890 = vmatprep.subr.mxu0 0.0
    %1891 = vmatpush1.xpose.msra.mxu0 0.0
    %1892 = vmatprep.subr.mxu0 0.0
    %1893 = vmatpush1.xpose.msra.mxu0 0.0
    %1894 = vmatprep.subr.mxu0 0.0
    %1895 = vmatpush1.xpose.msra.mxu0 0.0
    %1896 = vmatprep.subr.mxu0 0.0
    %1897 = vmatpush1.xpose.msra.mxu0 0.0
    %1898 = vmatprep.subr.mxu0 0.0
    %1899 = vmatpush1.xpose.msra.mxu0 0.0
    %1900 = vmatprep.subr.mxu0 0.0
    %1901 = vmatpush1.xpose.msra.mxu0 0.0
    %1902 = vmatprep.subr.mxu0 0.0
    %1903 = vmatpush1.xpose.msra.mxu0 0.0
    %1904 = vmatprep.subr.mxu0 0.0
    %1905 = vmatpush1.xpose.msra.mxu0 0.0
    %1906 = vmatprep.subr.mxu0 0.0
    %1907 = vmatpush1.xpose.msra.mxu0 0.0
    %1908 = vmatprep.subr.mxu0 0.0
    %1909 = vmatpush1.xpose.msra.mxu0 0.0
    %1910 = vmatprep.subr.mxu0 0.0
    %1911 = vmatpush1.xpose.msra.mxu0 0.0
    %1912 = vmatprep.subr.mxu0 0.0
    %1913 = vmatpush1.xpose.msra.mxu0 0.0
    %1914 = vmatprep.subr.mxu0 0.0
    %1915 = vmatpush1.xpose.msra.mxu0 0.0
    %1916 = vmatprep.subr.mxu0 0.0
    %1917 = vmatpush1.xpose.msra.mxu0 0.0
    %1918 = vmatprep.subr.mxu0 0.0
    %1919 = vmatpush1.xpose.msra.mxu0 0.0
    %1920 = vmatprep.subr.mxu0 0.0
    %1921 = vmatpush1.xpose.msra.mxu0 0.0
    %1922 = vmatprep.subr.mxu0 0.0
    %1923 = vmatpush1.xpose.msra.mxu0 0.0
    %1924 = vmatprep.subr.mxu0 0.0
    %1925 = vmatpush1.xpose.msra.mxu0 0.0
    %1926 = vmatprep.subr.mxu0 0.0
    %1927 = vmatpush1.xpose.msra.mxu0 0.0
    %1928 = vmatprep.subr.mxu0 0.0
    %1929 = vmatpush1.xpose.msra.mxu0 0.0
    %1930 = vmatprep.subr.mxu0 0.0
    %1931 = vmatpush1.xpose.msra.mxu0 0.0
    %1932 = vmatprep.subr.mxu0 0.0
    %1933 = vmatpush1.xpose.msra.mxu0 0.0
    %1934 = vmatprep.subr.mxu0 0.0
    %1935 = vmatpush1.xpose.msra.mxu0 0.0
    %1936 = vmatprep.subr.mxu0 0.0
    %1937 = vmatpush1.xpose.msra.mxu0 0.0
    %1938 = vmatprep.mubr.f32.mxu0 0.0
    %1939 = vmatmul.mubr.f32.gmra.mrb[0].mxu0 %v1869
    %v1940 = vpop.f32.mrb[0].mxu0
    %v1941 = vadd.f32 0.0, %v1940
    %v1942 = vpop.f32.mrb[0].mxu0
    %1943 = vdwg.mxu0
    %v1944 = vadd.f32 %v1865, %v77
    %v1945 = vadd.f32 %v1941, %v81
    %v1946 = vsel %vm194, %v1944, -inf
    %1947 = vmax.xlane.f32.xlu0 %v1946
    %v1948 = vpop.xlane.xlu0 %1947
    %v1949 = vsel %vm194, %v1945, -inf
    %1950 = vmax.xlane.f32.xlu0 %v1949
    %v1951 = vpop.xlane.xlu0 %1950
    %v1952 = vsub.f32 %v1944, %v1948
    %v1953 = vsub.f32 %v1945, %v1951
    %v1954 = vmul.f32 %v1952, 1.442695
    %v1955 = vpow.pop %v1954
    %v1956 = vmul.f32 %v1953, 1.442695
    %v1957 = vpow.pop %v1956
    %v1958 = vsel %vm194, %v1955, 0.0
    %1959 = vadd.xlane.f32.xlu0 %v1958
    %v1960 = vpop.xlane.xlu0 %1959
    %v1961 = vsel %vm194, %v1957, 0.0
    %1962 = vadd.xlane.f32.xlu0 %v1961
    %v1963 = vpop.xlane.xlu0 %1962
    %v1964 = vrcp.pop %v1960
    %v1965 = vrcp.pop %v1963
    %1966 = vrot.lane.b32.xlu0 %v1786, 96
    %v1967 = vpop.permute.xlu0 %1966
    %v1970 = vsel %vm194, %v1955, 0
    %1972 = vmatprep.subr.mxu0 0.0
    %1973 = vmatpush1.msra.mxu0 %v1967
    %1974 = vmatprep.subr.mxu0 0.0
    %1975 = vmatpush1.msra.mxu0 0.0
    %1976 = vmatprep.subr.mxu0 0.0
    %1977 = vmatpush1.msra.mxu0 0.0
    %1978 = vmatprep.subr.mxu0 0.0
    %1979 = vmatpush1.msra.mxu0 0.0
    %1980 = vmatprep.subr.mxu0 0.0
    %1981 = vmatpush1.msra.mxu0 0.0
    %1982 = vmatprep.subr.mxu0 0.0
    %1983 = vmatpush1.msra.mxu0 0.0
    %1984 = vmatprep.subr.mxu0 0.0
    %1985 = vmatpush1.msra.mxu0 0.0
    %1986 = vmatprep.subr.mxu0 0.0
    %1987 = vmatpush1.msra.mxu0 0.0
    %1988 = vmatprep.subr.mxu0 0.0
    %1989 = vmatpush1.msra.mxu0 0.0
    %1990 = vmatprep.subr.mxu0 0.0
    %1991 = vmatpush1.msra.mxu0 0.0
    %1992 = vmatprep.subr.mxu0 0.0
    %1993 = vmatpush1.msra.mxu0 0.0
    %1994 = vmatprep.subr.mxu0 0.0
    %1995 = vmatpush1.msra.mxu0 0.0
    %1996 = vmatprep.subr.mxu0 0.0
    %1997 = vmatpush1.msra.mxu0 0.0
    %1998 = vmatprep.subr.mxu0 0.0
    %1999 = vmatpush1.msra.mxu0 0.0
    %2000 = vmatprep.subr.mxu0 0.0
    %2001 = vmatpush1.msra.mxu0 0.0
    %2002 = vmatprep.subr.mxu0 0.0
    %2003 = vmatpush1.msra.mxu0 0.0
    %2004 = vmatprep.subr.mxu0 0.0
    %2005 = vmatpush1.msra.mxu0 0.0
    %2006 = vmatprep.subr.mxu0 0.0
    %2007 = vmatpush1.msra.mxu0 0.0
    %2008 = vmatprep.subr.mxu0 0.0
    %2009 = vmatpush1.msra.mxu0 0.0
    %2010 = vmatprep.subr.mxu0 0.0
    %2011 = vmatpush1.msra.mxu0 0.0
    %2012 = vmatprep.subr.mxu0 0.0
    %2013 = vmatpush1.msra.mxu0 0.0
    %2014 = vmatprep.subr.mxu0 0.0
    %2015 = vmatpush1.msra.mxu0 0.0
    %2016 = vmatprep.subr.mxu0 0.0
    %2017 = vmatpush1.msra.mxu0 0.0
    %2018 = vmatprep.subr.mxu0 0.0
    %2019 = vmatpush1.msra.mxu0 0.0
    %2020 = vmatprep.subr.mxu0 0.0
    %2021 = vmatpush1.msra.mxu0 0.0
    %2022 = vmatprep.subr.mxu0 0.0
    %2023 = vmatpush1.msra.mxu0 0.0
    %2024 = vmatprep.subr.mxu0 0.0
    %2025 = vmatpush1.msra.mxu0 0.0
    %2026 = vmatprep.subr.mxu0 0.0
    %2027 = vmatpush1.msra.mxu0 0.0
    %2028 = vmatprep.subr.mxu0 0.0
    %2029 = vmatpush1.msra.mxu0 0.0
    %2030 = vmatprep.subr.mxu0 0.0
    %2031 = vmatpush1.msra.mxu0 0.0
    %2032 = vmatprep.subr.mxu0 0.0
    %2033 = vmatpush1.msra.mxu0 0.0
    %2034 = vmatprep.subr.mxu0 0.0
    %2035 = vmatpush1.msra.mxu0 0.0
    %2036 = vmatprep.mubr.f32.mxu0 0.0
    %2037 = vmatmul.mubr.f32.gmra.mrb[0].mxu0 %v1970
    %v2038 = vpop.f32.mrb[0].mxu0
    %v2039 = vadd.f32 0.0, %v2038
    %v2040 = vpop.f32.mrb[0].mxu0
    %2041 = vdwg.mxu0
    %2042 = vrot.lane.b32.xlu0 %v1789, 96
    %v2043 = vpop.permute.xlu0 %2042
    %v2046 = vsel %vm194, %v1957, 0
    %2048 = vmatprep.subr.mxu0 0.0
    %2049 = vmatpush1.msra.mxu0 %v2043
    %2050 = vmatprep.subr.mxu0 0.0
    %2051 = vmatpush1.msra.mxu0 0.0
    %2052 = vmatprep.subr.mxu0 0.0
    %2053 = vmatpush1.msra.mxu0 0.0
    %2054 = vmatprep.subr.mxu0 0.0
    %2055 = vmatpush1.msra.mxu0 0.0
    %2056 = vmatprep.subr.mxu0 0.0
    %2057 = vmatpush1.msra.mxu0 0.0
    %2058 = vmatprep.subr.mxu0 0.0
    %2059 = vmatpush1.msra.mxu0 0.0
    %2060 = vmatprep.subr.mxu0 0.0
    %2061 = vmatpush1.msra.mxu0 0.0
    %2062 = vmatprep.subr.mxu0 0.0
    %2063 = vmatpush1.msra.mxu0 0.0
    %2064 = vmatprep.subr.mxu0 0.0
    %2065 = vmatpush1.msra.mxu0 0.0
    %2066 = vmatprep.subr.mxu0 0.0
    %2067 = vmatpush1.msra.mxu0 0.0
    %2068 = vmatprep.subr.mxu0 0.0
    %2069 = vmatpush1.msra.mxu0 0.0
    %2070 = vmatprep.subr.mxu0 0.0
    %2071 = vmatpush1.msra.mxu0 0.0
    %2072 = vmatprep.subr.mxu0 0.0
    %2073 = vmatpush1.msra.mxu0 0.0
    %2074 = vmatprep.subr.mxu0 0.0
    %2075 = vmatpush1.msra.mxu0 0.0
    %2076 = vmatprep.subr.mxu0 0.0
    %2077 = vmatpush1.msra.mxu0 0.0
    %2078 = vmatprep.subr.mxu0 0.0
    %2079 = vmatpush1.msra.mxu0 0.0
    %2080 = vmatprep.subr.mxu0 0.0
    %2081 = vmatpush1.msra.mxu0 0.0
    %2082 = vmatprep.subr.mxu0 0.0
    %2083 = vmatpush1.msra.mxu0 0.0
    %2084 = vmatprep.subr.mxu0 0.0
    %2085 = vmatpush1.msra.mxu0 0.0
    %2086 = vmatprep.subr.mxu0 0.0
    %2087 = vmatpush1.msra.mxu0 0.0
    %2088 = vmatprep.subr.mxu0 0.0
    %2089 = vmatpush1.msra.mxu0 0.0
    %2090 = vmatprep.subr.mxu0 0.0
    %2091 = vmatpush1.msra.mxu0 0.0
    %2092 = vmatprep.subr.mxu0 0.0
    %2093 = vmatpush1.msra.mxu0 0.0
    %2094 = vmatprep.subr.mxu0 0.0
    %2095 = vmatpush1.msra.mxu0 0.0
    %2096 = vmatprep.subr.mxu0 0.0
    %2097 = vmatpush1.msra.mxu0 0.0
    %2098 = vmatprep.subr.mxu0 0.0
    %2099 = vmatpush1.msra.mxu0 0.0
    %2100 = vmatprep.subr.mxu0 0.0
    %2101 = vmatpush1.msra.mxu0 0.0
    %2102 = vmatprep.subr.mxu0 0.0
    %2103 = vmatpush1.msra.mxu0 0.0
    %2104 = vmatprep.subr.mxu0 0.0
    %2105 = vmatpush1.msra.mxu0 0.0
    %2106 = vmatprep.subr.mxu0 0.0
    %2107 = vmatpush1.msra.mxu0 0.0
    %2108 = vmatprep.subr.mxu0 0.0
    %2109 = vmatpush1.msra.mxu0 0.0
    %2110 = vmatprep.subr.mxu0 0.0
    %2111 = vmatpush1.msra.mxu0 0.0
    %2112 = vmatprep.mubr.f32.mxu0 0.0
    %2113 = vmatmul.mubr.f32.gmra.mrb[0].mxu0 %v2046
    %v2114 = vpop.f32.mrb[0].mxu0
    %v2115 = vadd.f32 0.0, %v2114
    %v2116 = vpop.f32.mrb[0].mxu0
    %2117 = vdwg.mxu0
    %v2118 = vmul.f32 %v2039, %v1964
    %v2119 = vmul.f32 %v2115, %v1965
    %2120 = vrot.lane.b32.xlu0 %v1724, 120
    %v2121 = vpop.permute.xlu0 %2120
    %2122 = vrot.lane.b32.xlu0 %v1786, 120
    %v2123 = vpop.permute.xlu0 %2122
    %v2124 = vsel %vm194, %v2121, 0
    %v2126 = vsel %vm194, %v2123, 0
    %2128 = vmatprep.subr.mxu0 0.0
    %2129 = vmatpush1.xpose.msra.mxu0 %v2126
    %2130 = vmatprep.subr.mxu0 0.0
    %2131 = vmatpush1.xpose.msra.mxu0 0.0
    %2132 = vmatprep.subr.mxu0 0.0
    %2133 = vmatpush1.xpose.msra.mxu0 0.0
    %2134 = vmatprep.subr.mxu0 0.0
    %2135 = vmatpush1.xpose.msra.mxu0 0.0
    %2136 = vmatprep.subr.mxu0 0.0
    %2137 = vmatpush1.xpose.msra.mxu0 0.0
    %2138 = vmatprep.subr.mxu0 0.0
    %2139 = vmatpush1.xpose.msra.mxu0 0.0
    %2140 = vmatprep.subr.mxu0 0.0
    %2141 = vmatpush1.xpose.msra.mxu0 0.0
    %2142 = vmatprep.subr.mxu0 0.0
    %2143 = vmatpush1.xpose.msra.mxu0 0.0
    %2144 = vmatprep.subr.mxu0 0.0
    %2145 = vmatpush1.xpose.msra.mxu0 0.0
    %2146 = vmatprep.subr.mxu0 0.0
    %2147 = vmatpush1.xpose.msra.mxu0 0.0
    %2148 = vmatprep.subr.mxu0 0.0
    %2149 = vmatpush1.xpose.msra.mxu0 0.0
    %2150 = vmatprep.subr.mxu0 0.0
    %2151 = vmatpush1.xpose.msra.mxu0 0.0
    %2152 = vmatprep.subr.mxu0 0.0
    %2153 = vmatpush1.xpose.msra.mxu0 0.0
    %2154 = vmatprep.subr.mxu0 0.0
    %2155 = vmatpush1.xpose.msra.mxu0 0.0
    %2156 = vmatprep.subr.mxu0 0.0
    %2157 = vmatpush1.xpose.msra.mxu0 0.0
    %2158 = vmatprep.subr.mxu0 0.0
    %2159 = vmatpush1.xpose.msra.mxu0 0.0
    %2160 = vmatprep.subr.mxu0 0.0
    %2161 = vmatpush1.xpose.msra.mxu0 0.0
    %2162 = vmatprep.subr.mxu0 0.0
    %2163 = vmatpush1.xpose.msra.mxu0 0.0
    %2164 = vmatprep.subr.mxu0 0.0
    %2165 = vmatpush1.xpose.msra.mxu0 0.0
    %2166 = vmatprep.subr.mxu0 0.0
    %2167 = vmatpush1.xpose.msra.mxu0 0.0
    %2168 = vmatprep.subr.mxu0 0.0
    %2169 = vmatpush1.xpose.msra.mxu0 0.0
    %2170 = vmatprep.subr.mxu0 0.0
    %2171 = vmatpush1.xpose.msra.mxu0 0.0
    %2172 = vmatprep.subr.mxu0 0.0
    %2173 = vmatpush1.xpose.msra.mxu0 0.0
    %2174 = vmatprep.subr.mxu0 0.0
    %2175 = vmatpush1.xpose.msra.mxu0 0.0
    %2176 = vmatprep.subr.mxu0 0.0
    %2177 = vmatpush1.xpose.msra.mxu0 0.0
    %2178 = vmatprep.subr.mxu0 0.0
    %2179 = vmatpush1.xpose.msra.mxu0 0.0
    %2180 = vmatprep.subr.mxu0 0.0
    %2181 = vmatpush1.xpose.msra.mxu0 0.0
    %2182 = vmatprep.subr.mxu0 0.0
    %2183 = vmatpush1.xpose.msra.mxu0 0.0
    %2184 = vmatprep.subr.mxu0 0.0
    %2185 = vmatpush1.xpose.msra.mxu0 0.0
    %2186 = vmatprep.subr.mxu0 0.0
    %2187 = vmatpush1.xpose.msra.mxu0 0.0
    %2188 = vmatprep.subr.mxu0 0.0
    %2189 = vmatpush1.xpose.msra.mxu0 0.0
    %2190 = vmatprep.subr.mxu0 0.0
    %2191 = vmatpush1.xpose.msra.mxu0 0.0
    %2192 = vmatprep.mubr.f32.mxu0 0.0
    %2193 = vmatmul.mubr.f32.gmra.mrb[0].mxu0 %v2124
    %v2194 = vpop.f32.mrb[0].mxu0
    %v2195 = vadd.f32 0.0, %v2194
    %v2196 = vpop.f32.mrb[0].mxu0
    %2197 = vdwg.mxu0
    %2198 = vrot.lane.b32.xlu0 %v1725, 120
    %v2199 = vpop.permute.xlu0 %2198
    %2200 = vrot.lane.b32.xlu0 %v1789, 120
    %v2201 = vpop.permute.xlu0 %2200
    %v2202 = vsel %vm194, %v2199, 0
    %v2204 = vsel %vm194, %v2201, 0
    %2206 = vmatprep.subr.mxu0 0.0
    %2207 = vmatpush1.xpose.msra.mxu0 %v2204
    %2208 = vmatprep.subr.mxu0 0.0
    %2209 = vmatpush1.xpose.msra.mxu0 0.0
    %2210 = vmatprep.subr.mxu0 0.0
    %2211 = vmatpush1.xpose.msra.mxu0 0.0
    %2212 = vmatprep.subr.mxu0 0.0
    %2213 = vmatpush1.xpose.msra.mxu0 0.0
    %2214 = vmatprep.subr.mxu0 0.0
    %2215 = vmatpush1.xpose.msra.mxu0 0.0
    %2216 = vmatprep.subr.mxu0 0.0
    %2217 = vmatpush1.xpose.msra.mxu0 0.0
    %2218 = vmatprep.subr.mxu0 0.0
    %2219 = vmatpush1.xpose.msra.mxu0 0.0
    %2220 = vmatprep.subr.mxu0 0.0
    %2221 = vmatpush1.xpose.msra.mxu0 0.0
    %2222 = vmatprep.subr.mxu0 0.0
    %2223 = vmatpush1.xpose.msra.mxu0 0.0
    %2224 = vmatprep.subr.mxu0 0.0
    %2225 = vmatpush1.xpose.msra.mxu0 0.0
    %2226 = vmatprep.subr.mxu0 0.0
    %2227 = vmatpush1.xpose.msra.mxu0 0.0
    %2228 = vmatprep.subr.mxu0 0.0
    %2229 = vmatpush1.xpose.msra.mxu0 0.0
    %2230 = vmatprep.subr.mxu0 0.0
    %2231 = vmatpush1.xpose.msra.mxu0 0.0
    %2232 = vmatprep.subr.mxu0 0.0
    %2233 = vmatpush1.xpose.msra.mxu0 0.0
    %2234 = vmatprep.subr.mxu0 0.0
    %2235 = vmatpush1.xpose.msra.mxu0 0.0
    %2236 = vmatprep.subr.mxu0 0.0
    %2237 = vmatpush1.xpose.msra.mxu0 0.0
    %2238 = vmatprep.subr.mxu0 0.0
    %2239 = vmatpush1.xpose.msra.mxu0 0.0
    %2240 = vmatprep.subr.mxu0 0.0
    %2241 = vmatpush1.xpose.msra.mxu0 0.0
    %2242 = vmatprep.subr.mxu0 0.0
    %2243 = vmatpush1.xpose.msra.mxu0 0.0
    %2244 = vmatprep.subr.mxu0 0.0
    %2245 = vmatpush1.xpose.msra.mxu0 0.0
    %2246 = vmatprep.subr.mxu0 0.0
    %2247 = vmatpush1.xpose.msra.mxu0 0.0
    %2248 = vmatprep.subr.mxu0 0.0
    %2249 = vmatpush1.xpose.msra.mxu0 0.0
    %2250 = vmatprep.subr.mxu0 0.0
    %2251 = vmatpush1.xpose.msra.mxu0 0.0
    %2252 = vmatprep.subr.mxu0 0.0
    %2253 = vmatpush1.xpose.msra.mxu0 0.0
    %2254 = vmatprep.subr.mxu0 0.0
    %2255 = vmatpush1.xpose.msra.mxu0 0.0
    %2256 = vmatprep.subr.mxu0 0.0
    %2257 = vmatpush1.xpose.msra.mxu0 0.0
    %2258 = vmatprep.subr.mxu0 0.0
    %2259 = vmatpush1.xpose.msra.mxu0 0.0
    %2260 = vmatprep.subr.mxu0 0.0
    %2261 = vmatpush1.xpose.msra.mxu0 0.0
    %2262 = vmatprep.subr.mxu0 0.0
    %2263 = vmatpush1.xpose.msra.mxu0 0.0
    %2264 = vmatprep.subr.mxu0 0.0
    %2265 = vmatpush1.xpose.msra.mxu0 0.0
    %2266 = vmatprep.subr.mxu0 0.0
    %2267 = vmatpush1.xpose.msra.mxu0 0.0
    %2268 = vmatprep.subr.mxu0 0.0
    %2269 = vmatpush1.xpose.msra.mxu0 0.0
    %2270 = vmatprep.mubr.f32.mxu0 0.0
    %2271 = vmatmul.mubr.f32.gmra.mrb[0].mxu0 %v2202
    %v2272 = vpop.f32.mrb[0].mxu0
    %v2273 = vadd.f32 0.0, %v2272
    %v2274 = vpop.f32.mrb[0].mxu0
    %2275 = vdwg.mxu0
    %v2276 = vadd.f32 %v2195, %v77
    %v2277 = vadd.f32 %v2273, %v81
    %v2278 = vsel %vm194, %v2276, -inf
    %2279 = vmax.xlane.f32.xlu0 %v2278
    %v2280 = vpop.xlane.xlu0 %2279
    %v2281 = vsel %vm194, %v2277, -inf
    %2282 = vmax.xlane.f32.xlu0 %v2281
    %v2283 = vpop.xlane.xlu0 %2282
    %v2284 = vsub.f32 %v2276, %v2280
    %v2285 = vsub.f32 %v2277, %v2283
    %v2286 = vmul.f32 %v2284, 1.442695
    %v2287 = vpow.pop %v2286
    %v2288 = vmul.f32 %v2285, 1.442695
    %v2289 = vpow.pop %v2288
    %v2290 = vsel %vm194, %v2287, 0.0
    %2291 = vadd.xlane.f32.xlu0 %v2290
    %v2292 = vpop.xlane.xlu0 %2291
    %v2293 = vsel %vm194, %v2289, 0.0
    %2294 = vadd.xlane.f32.xlu0 %v2293
    %v2295 = vpop.xlane.xlu0 %2294
    %v2296 = vrcp.pop %v2292
    %v2297 = vrcp.pop %v2295
    %2298 = vrot.lane.b32.xlu0 %v1786, 88
    %v2299 = vpop.permute.xlu0 %2298
    %v2302 = vsel %vm194, %v2287, 0
    %2304 = vmatprep.subr.mxu0 0.0
    %2305 = vmatpush1.msra.mxu0 %v2299
    %2306 = vmatprep.subr.mxu0 0.0
    %2307 = vmatpush1.msra.mxu0 0.0
    %2308 = vmatprep.subr.mxu0 0.0
    %2309 = vmatpush1.msra.mxu0 0.0
    %2310 = vmatprep.subr.mxu0 0.0
    %2311 = vmatpush1.msra.mxu0 0.0
    %2312 = vmatprep.subr.mxu0 0.0
    %2313 = vmatpush1.msra.mxu0 0.0
    %2314 = vmatprep.subr.mxu0 0.0
    %2315 = vmatpush1.msra.mxu0 0.0
    %2316 = vmatprep.subr.mxu0 0.0
    %2317 = vmatpush1.msra.mxu0 0.0
    %2318 = vmatprep.subr.mxu0 0.0
    %2319 = vmatpush1.msra.mxu0 0.0
    %2320 = vmatprep.subr.mxu0 0.0
    %2321 = vmatpush1.msra.mxu0 0.0
    %2322 = vmatprep.subr.mxu0 0.0
    %2323 = vmatpush1.msra.mxu0 0.0
    %2324 = vmatprep.subr.mxu0 0.0
    %2325 = vmatpush1.msra.mxu0 0.0
    %2326 = vmatprep.subr.mxu0 0.0
    %2327 = vmatpush1.msra.mxu0 0.0
    %2328 = vmatprep.subr.mxu0 0.0
    %2329 = vmatpush1.msra.mxu0 0.0
    %2330 = vmatprep.subr.mxu0 0.0
    %2331 = vmatpush1.msra.mxu0 0.0
    %2332 = vmatprep.subr.mxu0 0.0
    %2333 = vmatpush1.msra.mxu0 0.0
    %2334 = vmatprep.subr.mxu0 0.0
    %2335 = vmatpush1.msra.mxu0 0.0
    %2336 = vmatprep.subr.mxu0 0.0
    %2337 = vmatpush1.msra.mxu0 0.0
    %2338 = vmatprep.subr.mxu0 0.0
    %2339 = vmatpush1.msra.mxu0 0.0
    %2340 = vmatprep.subr.mxu0 0.0
    %2341 = vmatpush1.msra.mxu0 0.0
    %2342 = vmatprep.subr.mxu0 0.0
    %2343 = vmatpush1.msra.mxu0 0.0
    %2344 = vmatprep.subr.mxu0 0.0
    %2345 = vmatpush1.msra.mxu0 0.0
    %2346 = vmatprep.subr.mxu0 0.0
    %2347 = vmatpush1.msra.mxu0 0.0
    %2348 = vmatprep.subr.mxu0 0.0
    %2349 = vmatpush1.msra.mxu0 0.0
    %2350 = vmatprep.subr.mxu0 0.0
    %2351 = vmatpush1.msra.mxu0 0.0
    %2352 = vmatprep.subr.mxu0 0.0
    %2353 = vmatpush1.msra.mxu0 0.0
    %2354 = vmatprep.subr.mxu0 0.0
    %2355 = vmatpush1.msra.mxu0 0.0
    %2356 = vmatprep.subr.mxu0 0.0
    %2357 = vmatpush1.msra.mxu0 0.0
    %2358 = vmatprep.subr.mxu0 0.0
    %2359 = vmatpush1.msra.mxu0 0.0
    %2360 = vmatprep.subr.mxu0 0.0
    %2361 = vmatpush1.msra.mxu0 0.0
    %2362 = vmatprep.subr.mxu0 0.0
    %2363 = vmatpush1.msra.mxu0 0.0
    %2364 = vmatprep.subr.mxu0 0.0
    %2365 = vmatpush1.msra.mxu0 0.0
    %2366 = vmatprep.subr.mxu0 0.0
    %2367 = vmatpush1.msra.mxu0 0.0
    %2368 = vmatprep.mubr.f32.mxu0 0.0
    %2369 = vmatmul.mubr.f32.gmra.mrb[0].mxu0 %v2302
    %v2370 = vpop.f32.mrb[0].mxu0
    %v2371 = vadd.f32 0.0, %v2370
    %v2372 = vpop.f32.mrb[0].mxu0
    %2373 = vdwg.mxu0
    %2374 = vrot.lane.b32.xlu0 %v1789, 88
    %v2375 = vpop.permute.xlu0 %2374
    %v2378 = vsel %vm194, %v2289, 0
    %2380 = vmatprep.subr.mxu0 0.0
    %2381 = vmatpush1.msra.mxu0 %v2375
    %2382 = vmatprep.subr.mxu0 0.0
    %2383 = vmatpush1.msra.mxu0 0.0
    %2384 = vmatprep.subr.mxu0 0.0
    %2385 = vmatpush1.msra.mxu0 0.0
    %2386 = vmatprep.subr.mxu0 0.0
    %2387 = vmatpush1.msra.mxu0 0.0
    %2388 = vmatprep.subr.mxu0 0.0
    %2389 = vmatpush1.msra.mxu0 0.0
    %2390 = vmatprep.subr.mxu0 0.0
    %2391 = vmatpush1.msra.mxu0 0.0
    %2392 = vmatprep.subr.mxu0 0.0
    %2393 = vmatpush1.msra.mxu0 0.0
    %2394 = vmatprep.subr.mxu0 0.0
    %2395 = vmatpush1.msra.mxu0 0.0
    %2396 = vmatprep.subr.mxu0 0.0
    %2397 = vmatpush1.msra.mxu0 0.0
    %2398 = vmatprep.subr.mxu0 0.0
    %2399 = vmatpush1.msra.mxu0 0.0
    %2400 = vmatprep.subr.mxu0 0.0
    %2401 = vmatpush1.msra.mxu0 0.0
    %2402 = vmatprep.subr.mxu0 0.0
    %2403 = vmatpush1.msra.mxu0 0.0
    %2404 = vmatprep.subr.mxu0 0.0
    %2405 = vmatpush1.msra.mxu0 0.0
    %2406 = vmatprep.subr.mxu0 0.0
    %2407 = vmatpush1.msra.mxu0 0.0
    %2408 = vmatprep.subr.mxu0 0.0
    %2409 = vmatpush1.msra.mxu0 0.0
    %2410 = vmatprep.subr.mxu0 0.0
    %2411 = vmatpush1.msra.mxu0 0.0
    %2412 = vmatprep.subr.mxu0 0.0
    %2413 = vmatpush1.msra.mxu0 0.0
    %2414 = vmatprep.subr.mxu0 0.0
    %2415 = vmatpush1.msra.mxu0 0.0
    %2416 = vmatprep.subr.mxu0 0.0
    %2417 = vmatpush1.msra.mxu0 0.0
    %2418 = vmatprep.subr.mxu0 0.0
    %2419 = vmatpush1.msra.mxu0 0.0
    %2420 = vmatprep.subr.mxu0 0.0
    %2421 = vmatpush1.msra.mxu0 0.0
    %2422 = vmatprep.subr.mxu0 0.0
    %2423 = vmatpush1.msra.mxu0 0.0
    %2424 = vmatprep.subr.mxu0 0.0
    %2425 = vmatpush1.msra.mxu0 0.0
    %2426 = vmatprep.subr.mxu0 0.0
    %2427 = vmatpush1.msra.mxu0 0.0
    %2428 = vmatprep.subr.mxu0 0.0
    %2429 = vmatpush1.msra.mxu0 0.0
    %2430 = vmatprep.subr.mxu0 0.0
    %2431 = vmatpush1.msra.mxu0 0.0
    %2432 = vmatprep.subr.mxu0 0.0
    %2433 = vmatpush1.msra.mxu0 0.0
    %2434 = vmatprep.subr.mxu0 0.0
    %2435 = vmatpush1.msra.mxu0 0.0
    %2436 = vmatprep.subr.mxu0 0.0
    %2437 = vmatpush1.msra.mxu0 0.0
    %2438 = vmatprep.subr.mxu0 0.0
    %2439 = vmatpush1.msra.mxu0 0.0
    %2440 = vmatprep.subr.mxu0 0.0
    %2441 = vmatpush1.msra.mxu0 0.0
    %2442 = vmatprep.subr.mxu0 0.0
    %2443 = vmatpush1.msra.mxu0 0.0
    %2444 = vmatprep.mubr.f32.mxu0 0.0
    %2445 = vmatmul.mubr.f32.gmra.mrb[0].mxu0 %v2378
    %v2446 = vpop.f32.mrb[0].mxu0
    %v2447 = vadd.f32 0.0, %v2446
    %v2448 = vpop.f32.mrb[0].mxu0
    %2449 = vdwg.mxu0
    %v2450 = vmul.f32 %v2371, %v2296
    %v2451 = vmul.f32 %v2447, %v2297
    %2452 = vrot.lane.b32.xlu0 %v1724, 112
    %v2453 = vpop.permute.xlu0 %2452
    %2454 = vrot.lane.b32.xlu0 %v1786, 112
    %v2455 = vpop.permute.xlu0 %2454
    %v2456 = vsel %vm194, %v2453, 0
    %v2458 = vsel %vm194, %v2455, 0
    %2460 = vmatprep.subr.mxu0 0.0
    %2461 = vmatpush1.xpose.msra.mxu0 %v2458
    %2462 = vmatprep.subr.mxu0 0.0
    %2463 = vmatpush1.xpose.msra.mxu0 0.0
    %2464 = vmatprep.subr.mxu0 0.0
    %2465 = vmatpush1.xpose.msra.mxu0 0.0
    %2466 = vmatprep.subr.mxu0 0.0
    %2467 = vmatpush1.xpose.msra.mxu0 0.0
    %2468 = vmatprep.subr.mxu0 0.0
    %2469 = vmatpush1.xpose.msra.mxu0 0.0
    %2470 = vmatprep.subr.mxu0 0.0
    %2471 = vmatpush1.xpose.msra.mxu0 0.0
    %2472 = vmatprep.subr.mxu0 0.0
    %2473 = vmatpush1.xpose.msra.mxu0 0.0
    %2474 = vmatprep.subr.mxu0 0.0
    %2475 = vmatpush1.xpose.msra.mxu0 0.0
    %2476 = vmatprep.subr.mxu0 0.0
    %2477 = vmatpush1.xpose.msra.mxu0 0.0
    %2478 = vmatprep.subr.mxu0 0.0
    %2479 = vmatpush1.xpose.msra.mxu0 0.0
    %2480 = vmatprep.subr.mxu0 0.0
    %2481 = vmatpush1.xpose.msra.mxu0 0.0
    %2482 = vmatprep.subr.mxu0 0.0
    %2483 = vmatpush1.xpose.msra.mxu0 0.0
    %2484 = vmatprep.subr.mxu0 0.0
    %2485 = vmatpush1.xpose.msra.mxu0 0.0
    %2486 = vmatprep.subr.mxu0 0.0
    %2487 = vmatpush1.xpose.msra.mxu0 0.0
    %2488 = vmatprep.subr.mxu0 0.0
    %2489 = vmatpush1.xpose.msra.mxu0 0.0
    %2490 = vmatprep.subr.mxu0 0.0
    %2491 = vmatpush1.xpose.msra.mxu0 0.0
    %2492 = vmatprep.subr.mxu0 0.0
    %2493 = vmatpush1.xpose.msra.mxu0 0.0
    %2494 = vmatprep.subr.mxu0 0.0
    %2495 = vmatpush1.xpose.msra.mxu0 0.0
    %2496 = vmatprep.subr.mxu0 0.0
    %2497 = vmatpush1.xpose.msra.mxu0 0.0
    %2498 = vmatprep.subr.mxu0 0.0
    %2499 = vmatpush1.xpose.msra.mxu0 0.0
    %2500 = vmatprep.subr.mxu0 0.0
    %2501 = vmatpush1.xpose.msra.mxu0 0.0
    %2502 = vmatprep.subr.mxu0 0.0
    %2503 = vmatpush1.xpose.msra.mxu0 0.0
    %2504 = vmatprep.subr.mxu0 0.0
    %2505 = vmatpush1.xpose.msra.mxu0 0.0
    %2506 = vmatprep.subr.mxu0 0.0
    %2507 = vmatpush1.xpose.msra.mxu0 0.0
    %2508 = vmatprep.subr.mxu0 0.0
    %2509 = vmatpush1.xpose.msra.mxu0 0.0
    %2510 = vmatprep.subr.mxu0 0.0
    %2511 = vmatpush1.xpose.msra.mxu0 0.0
    %2512 = vmatprep.subr.mxu0 0.0
    %2513 = vmatpush1.xpose.msra.mxu0 0.0
    %2514 = vmatprep.subr.mxu0 0.0
    %2515 = vmatpush1.xpose.msra.mxu0 0.0
    %2516 = vmatprep.subr.mxu0 0.0
    %2517 = vmatpush1.xpose.msra.mxu0 0.0
    %2518 = vmatprep.subr.mxu0 0.0
    %2519 = vmatpush1.xpose.msra.mxu0 0.0
    %2520 = vmatprep.subr.mxu0 0.0
    %2521 = vmatpush1.xpose.msra.mxu0 0.0
    %2522 = vmatprep.subr.mxu0 0.0
    %2523 = vmatpush1.xpose.msra.mxu0 0.0
    %2524 = vmatprep.mubr.f32.mxu0 0.0
    %2525 = vmatmul.mubr.f32.gmra.mrb[0].mxu0 %v2456
    %v2526 = vpop.f32.mrb[0].mxu0
    %v2527 = vadd.f32 0.0, %v2526
    %v2528 = vpop.f32.mrb[0].mxu0
    %2529 = vdwg.mxu0
    %2530 = vrot.lane.b32.xlu0 %v1725, 112
    %v2531 = vpop.permute.xlu0 %2530
    %2532 = vrot.lane.b32.xlu0 %v1789, 112
    %v2533 = vpop.permute.xlu0 %2532
    %v2534 = vsel %vm194, %v2531, 0
    %v2536 = vsel %vm194, %v2533, 0
    %2538 = vmatprep.subr.mxu0 0.0
    %2539 = vmatpush1.xpose.msra.mxu0 %v2536
    %2540 = vmatprep.subr.mxu0 0.0
    %2541 = vmatpush1.xpose.msra.mxu0 0.0
    %2542 = vmatprep.subr.mxu0 0.0
    %2543 = vmatpush1.xpose.msra.mxu0 0.0
    %2544 = vmatprep.subr.mxu0 0.0
    %2545 = vmatpush1.xpose.msra.mxu0 0.0
    %2546 = vmatprep.subr.mxu0 0.0
    %2547 = vmatpush1.xpose.msra.mxu0 0.0
    %2548 = vmatprep.subr.mxu0 0.0
    %2549 = vmatpush1.xpose.msra.mxu0 0.0
    %2550 = vmatprep.subr.mxu0 0.0
    %2551 = vmatpush1.xpose.msra.mxu0 0.0
    %2552 = vmatprep.subr.mxu0 0.0
    %2553 = vmatpush1.xpose.msra.mxu0 0.0
    %2554 = vmatprep.subr.mxu0 0.0
    %2555 = vmatpush1.xpose.msra.mxu0 0.0
    %2556 = vmatprep.subr.mxu0 0.0
    %2557 = vmatpush1.xpose.msra.mxu0 0.0
    %2558 = vmatprep.subr.mxu0 0.0
    %2559 = vmatpush1.xpose.msra.mxu0 0.0
    %2560 = vmatprep.subr.mxu0 0.0
    %2561 = vmatpush1.xpose.msra.mxu0 0.0
    %2562 = vmatprep.subr.mxu0 0.0
    %2563 = vmatpush1.xpose.msra.mxu0 0.0
    %2564 = vmatprep.subr.mxu0 0.0
    %2565 = vmatpush1.xpose.msra.mxu0 0.0
    %2566 = vmatprep.subr.mxu0 0.0
    %2567 = vmatpush1.xpose.msra.mxu0 0.0
    %2568 = vmatprep.subr.mxu0 0.0
    %2569 = vmatpush1.xpose.msra.mxu0 0.0
    %2570 = vmatprep.subr.mxu0 0.0
    %2571 = vmatpush1.xpose.msra.mxu0 0.0
    %2572 = vmatprep.subr.mxu0 0.0
    %2573 = vmatpush1.xpose.msra.mxu0 0.0
    %2574 = vmatprep.subr.mxu0 0.0
    %2575 = vmatpush1.xpose.msra.mxu0 0.0
    %2576 = vmatprep.subr.mxu0 0.0
    %2577 = vmatpush1.xpose.msra.mxu0 0.0
    %2578 = vmatprep.subr.mxu0 0.0
    %2579 = vmatpush1.xpose.msra.mxu0 0.0
    %2580 = vmatprep.subr.mxu0 0.0
    %2581 = vmatpush1.xpose.msra.mxu0 0.0
    %2582 = vmatprep.subr.mxu0 0.0
    %2583 = vmatpush1.xpose.msra.mxu0 0.0
    %2584 = vmatprep.subr.mxu0 0.0
    %2585 = vmatpush1.xpose.msra.mxu0 0.0
    %2586 = vmatprep.subr.mxu0 0.0
    %2587 = vmatpush1.xpose.msra.mxu0 0.0
    %2588 = vmatprep.subr.mxu0 0.0
    %2589 = vmatpush1.xpose.msra.mxu0 0.0
    %2590 = vmatprep.subr.mxu0 0.0
    %2591 = vmatpush1.xpose.msra.mxu0 0.0
    %2592 = vmatprep.subr.mxu0 0.0
    %2593 = vmatpush1.xpose.msra.mxu0 0.0
    %2594 = vmatprep.subr.mxu0 0.0
    %2595 = vmatpush1.xpose.msra.mxu0 0.0
    %2596 = vmatprep.subr.mxu0 0.0
    %2597 = vmatpush1.xpose.msra.mxu0 0.0
    %2598 = vmatprep.subr.mxu0 0.0
    %2599 = vmatpush1.xpose.msra.mxu0 0.0
    %2600 = vmatprep.subr.mxu0 0.0
    %2601 = vmatpush1.xpose.msra.mxu0 0.0
    %2602 = vmatprep.mubr.f32.mxu0 0.0
    %2603 = vmatmul.mubr.f32.gmra.mrb[0].mxu0 %v2534
    %v2604 = vpop.f32.mrb[0].mxu0
    %v2605 = vadd.f32 0.0, %v2604
    %v2606 = vpop.f32.mrb[0].mxu0
    %2607 = vdwg.mxu0
    %v2608 = vadd.f32 %v2527, %v77
    %v2609 = vadd.f32 %v2605, %v81
    %v2610 = vsel %vm194, %v2608, -inf
    %2611 = vmax.xlane.f32.xlu0 %v2610
    %v2612 = vpop.xlane.xlu0 %2611
    %v2613 = vsel %vm194, %v2609, -inf
    %2614 = vmax.xlane.f32.xlu0 %v2613
    %v2615 = vpop.xlane.xlu0 %2614
    %v2616 = vsub.f32 %v2608, %v2612
    %v2617 = vsub.f32 %v2609, %v2615
    %v2618 = vmul.f32 %v2616, 1.442695
    %v2619 = vpow.pop %v2618
    %v2620 = vmul.f32 %v2617, 1.442695
    %v2621 = vpow.pop %v2620
    %v2622 = vsel %vm194, %v2619, 0.0
    %2623 = vadd.xlane.f32.xlu0 %v2622
    %v2624 = vpop.xlane.xlu0 %2623
    %v2625 = vsel %vm194, %v2621, 0.0
    %2626 = vadd.xlane.f32.xlu0 %v2625
    %v2627 = vpop.xlane.xlu0 %2626
    %v2628 = vrcp.pop %v2624
    %v2629 = vrcp.pop %v2627
    %2630 = vrot.lane.b32.xlu0 %v1786, 80
    %v2631 = vpop.permute.xlu0 %2630
    %v2634 = vsel %vm194, %v2619, 0
    %2636 = vmatprep.subr.mxu0 0.0
    %2637 = vmatpush1.msra.mxu0 %v2631
    %2638 = vmatprep.subr.mxu0 0.0
    %2639 = vmatpush1.msra.mxu0 0.0
    %2640 = vmatprep.subr.mxu0 0.0
    %2641 = vmatpush1.msra.mxu0 0.0
    %2642 = vmatprep.subr.mxu0 0.0
    %2643 = vmatpush1.msra.mxu0 0.0
    %2644 = vmatprep.subr.mxu0 0.0
    %2645 = vmatpush1.msra.mxu0 0.0
    %2646 = vmatprep.subr.mxu0 0.0
    %2647 = vmatpush1.msra.mxu0 0.0
    %2648 = vmatprep.subr.mxu0 0.0
    %2649 = vmatpush1.msra.mxu0 0.0
    %2650 = vmatprep.subr.mxu0 0.0
    %2651 = vmatpush1.msra.mxu0 0.0
    %2652 = vmatprep.subr.mxu0 0.0
    %2653 = vmatpush1.msra.mxu0 0.0
    %2654 = vmatprep.subr.mxu0 0.0
    %2655 = vmatpush1.msra.mxu0 0.0
    %2656 = vmatprep.subr.mxu0 0.0
    %2657 = vmatpush1.msra.mxu0 0.0
    %2658 = vmatprep.subr.mxu0 0.0
    %2659 = vmatpush1.msra.mxu0 0.0
    %2660 = vmatprep.subr.mxu0 0.0
    %2661 = vmatpush1.msra.mxu0 0.0
    %2662 = vmatprep.subr.mxu0 0.0
    %2663 = vmatpush1.msra.mxu0 0.0
    %2664 = vmatprep.subr.mxu0 0.0
    %2665 = vmatpush1.msra.mxu0 0.0
    %2666 = vmatprep.subr.mxu0 0.0
    %2667 = vmatpush1.msra.mxu0 0.0
    %2668 = vmatprep.subr.mxu0 0.0
    %2669 = vmatpush1.msra.mxu0 0.0
    %2670 = vmatprep.subr.mxu0 0.0
    %2671 = vmatpush1.msra.mxu0 0.0
    %2672 = vmatprep.subr.mxu0 0.0
    %2673 = vmatpush1.msra.mxu0 0.0
    %2674 = vmatprep.subr.mxu0 0.0
    %2675 = vmatpush1.msra.mxu0 0.0
    %2676 = vmatprep.subr.mxu0 0.0
    %2677 = vmatpush1.msra.mxu0 0.0
    %2678 = vmatprep.subr.mxu0 0.0
    %2679 = vmatpush1.msra.mxu0 0.0
    %2680 = vmatprep.subr.mxu0 0.0
    %2681 = vmatpush1.msra.mxu0 0.0
    %2682 = vmatprep.subr.mxu0 0.0
    %2683 = vmatpush1.msra.mxu0 0.0
    %2684 = vmatprep.subr.mxu0 0.0
    %2685 = vmatpush1.msra.mxu0 0.0
    %2686 = vmatprep.subr.mxu0 0.0
    %2687 = vmatpush1.msra.mxu0 0.0
    %2688 = vmatprep.subr.mxu0 0.0
    %2689 = vmatpush1.msra.mxu0 0.0
    %2690 = vmatprep.subr.mxu0 0.0
    %2691 = vmatpush1.msra.mxu0 0.0
    %2692 = vmatprep.subr.mxu0 0.0
    %2693 = vmatpush1.msra.mxu0 0.0
    %2694 = vmatprep.subr.mxu0 0.0
    %2695 = vmatpush1.msra.mxu0 0.0
    %2696 = vmatprep.subr.mxu0 0.0
    %2697 = vmatpush1.msra.mxu0 0.0
    %2698 = vmatprep.subr.mxu0 0.0
    %2699 = vmatpush1.msra.mxu0 0.0
    %2700 = vmatprep.mubr.f32.mxu0 0.0
    %2701 = vmatmul.mubr.f32.gmra.mrb[0].mxu0 %v2634
    %v2702 = vpop.f32.mrb[0].mxu0
    %v2703 = vadd.f32 0.0, %v2702
    %v2704 = vpop.f32.mrb[0].mxu0
    %2705 = vdwg.mxu0
    %2706 = vrot.lane.b32.xlu0 %v1789, 80
    %v2707 = vpop.permute.xlu0 %2706
    %v2710 = vsel %vm194, %v2621, 0
    %2712 = vmatprep.subr.mxu0 0.0
    %2713 = vmatpush1.msra.mxu0 %v2707
    %2714 = vmatprep.subr.mxu0 0.0
    %2715 = vmatpush1.msra.mxu0 0.0
    %2716 = vmatprep.subr.mxu0 0.0
    %2717 = vmatpush1.msra.mxu0 0.0
    %2718 = vmatprep.subr.mxu0 0.0
    %2719 = vmatpush1.msra.mxu0 0.0
    %2720 = vmatprep.subr.mxu0 0.0
    %2721 = vmatpush1.msra.mxu0 0.0
    %2722 = vmatprep.subr.mxu0 0.0
    %2723 = vmatpush1.msra.mxu0 0.0
    %2724 = vmatprep.subr.mxu0 0.0
    %2725 = vmatpush1.msra.mxu0 0.0
    %2726 = vmatprep.subr.mxu0 0.0
    %2727 = vmatpush1.msra.mxu0 0.0
    %2728 = vmatprep.subr.mxu0 0.0
    %2729 = vmatpush1.msra.mxu0 0.0
    %2730 = vmatprep.subr.mxu0 0.0
    %2731 = vmatpush1.msra.mxu0 0.0
    %2732 = vmatprep.subr.mxu0 0.0
    %2733 = vmatpush1.msra.mxu0 0.0
    %2734 = vmatprep.subr.mxu0 0.0
    %2735 = vmatpush1.msra.mxu0 0.0
    %2736 = vmatprep.subr.mxu0 0.0
    %2737 = vmatpush1.msra.mxu0 0.0
    %2738 = vmatprep.subr.mxu0 0.0
    %2739 = vmatpush1.msra.mxu0 0.0
    %2740 = vmatprep.subr.mxu0 0.0
    %2741 = vmatpush1.msra.mxu0 0.0
    %2742 = vmatprep.subr.mxu0 0.0
    %2743 = vmatpush1.msra.mxu0 0.0
    %2744 = vmatprep.subr.mxu0 0.0
    %2745 = vmatpush1.msra.mxu0 0.0
    %2746 = vmatprep.subr.mxu0 0.0
    %2747 = vmatpush1.msra.mxu0 0.0
    %2748 = vmatprep.subr.mxu0 0.0
    %2749 = vmatpush1.msra.mxu0 0.0
    %2750 = vmatprep.subr.mxu0 0.0
    %2751 = vmatpush1.msra.mxu0 0.0
    %2752 = vmatprep.subr.mxu0 0.0
    %2753 = vmatpush1.msra.mxu0 0.0
    %2754 = vmatprep.subr.mxu0 0.0
    %2755 = vmatpush1.msra.mxu0 0.0
    %2756 = vmatprep.subr.mxu0 0.0
    %2757 = vmatpush1.msra.mxu0 0.0
    %2758 = vmatprep.subr.mxu0 0.0
    %2759 = vmatpush1.msra.mxu0 0.0
    %2760 = vmatprep.subr.mxu0 0.0
    %2761 = vmatpush1.msra.mxu0 0.0
    %2762 = vmatprep.subr.mxu0 0.0
    %2763 = vmatpush1.msra.mxu0 0.0
    %2764 = vmatprep.subr.mxu0 0.0
    %2765 = vmatpush1.msra.mxu0 0.0
    %2766 = vmatprep.subr.mxu0 0.0
    %2767 = vmatpush1.msra.mxu0 0.0
    %2768 = vmatprep.subr.mxu0 0.0
    %2769 = vmatpush1.msra.mxu0 0.0
    %2770 = vmatprep.subr.mxu0 0.0
    %2771 = vmatpush1.msra.mxu0 0.0
    %2772 = vmatprep.subr.mxu0 0.0
    %2773 = vmatpush1.msra.mxu0 0.0
    %2774 = vmatprep.subr.mxu0 0.0
    %2775 = vmatpush1.msra.mxu0 0.0
    %2776 = vmatprep.mubr.f32.mxu0 0.0
    %2777 = vmatmul.mubr.f32.gmra.mrb[0].mxu0 %v2710
    %v2778 = vpop.f32.mrb[0].mxu0
    %v2779 = vadd.f32 0.0, %v2778
    %v2780 = vpop.f32.mrb[0].mxu0
    %2781 = vdwg.mxu0
    %v2782 = vmul.f32 %v2703, %v2628
    %v2783 = vmul.f32 %v2779, %v2629
    %2784 = vrot.lane.b32.xlu0 %v1724, 104
    %v2785 = vpop.permute.xlu0 %2784
    %2786 = vrot.lane.b32.xlu0 %v1786, 104
    %v2787 = vpop.permute.xlu0 %2786
    %v2788 = vsel %vm194, %v2785, 0
    %v2790 = vsel %vm194, %v2787, 0
    %2792 = vmatprep.subr.mxu0 0.0
    %2793 = vmatpush1.xpose.msra.mxu0 %v2790
    %2794 = vmatprep.subr.mxu0 0.0
    %2795 = vmatpush1.xpose.msra.mxu0 0.0
    %2796 = vmatprep.subr.mxu0 0.0
    %2797 = vmatpush1.xpose.msra.mxu0 0.0
    %2798 = vmatprep.subr.mxu0 0.0
    %2799 = vmatpush1.xpose.msra.mxu0 0.0
    %2800 = vmatprep.subr.mxu0 0.0
    %2801 = vmatpush1.xpose.msra.mxu0 0.0
    %2802 = vmatprep.subr.mxu0 0.0
    %2803 = vmatpush1.xpose.msra.mxu0 0.0
    %2804 = vmatprep.subr.mxu0 0.0
    %2805 = vmatpush1.xpose.msra.mxu0 0.0
    %2806 = vmatprep.subr.mxu0 0.0
    %2807 = vmatpush1.xpose.msra.mxu0 0.0
    %2808 = vmatprep.subr.mxu0 0.0
    %2809 = vmatpush1.xpose.msra.mxu0 0.0
    %2810 = vmatprep.subr.mxu0 0.0
    %2811 = vmatpush1.xpose.msra.mxu0 0.0
    %2812 = vmatprep.subr.mxu0 0.0
    %2813 = vmatpush1.xpose.msra.mxu0 0.0
    %2814 = vmatprep.subr.mxu0 0.0
    %2815 = vmatpush1.xpose.msra.mxu0 0.0
    %2816 = vmatprep.subr.mxu0 0.0
    %2817 = vmatpush1.xpose.msra.mxu0 0.0
    %2818 = vmatprep.subr.mxu0 0.0
    %2819 = vmatpush1.xpose.msra.mxu0 0.0
    %2820 = vmatprep.subr.mxu0 0.0
    %2821 = vmatpush1.xpose.msra.mxu0 0.0
    %2822 = vmatprep.subr.mxu0 0.0
    %2823 = vmatpush1.xpose.msra.mxu0 0.0
    %2824 = vmatprep.subr.mxu0 0.0
    %2825 = vmatpush1.xpose.msra.mxu0 0.0
    %2826 = vmatprep.subr.mxu0 0.0
    %2827 = vmatpush1.xpose.msra.mxu0 0.0
    %2828 = vmatprep.subr.mxu0 0.0
    %2829 = vmatpush1.xpose.msra.mxu0 0.0
    %2830 = vmatprep.subr.mxu0 0.0
    %2831 = vmatpush1.xpose.msra.mxu0 0.0
    %2832 = vmatprep.subr.mxu0 0.0
    %2833 = vmatpush1.xpose.msra.mxu0 0.0
    %2834 = vmatprep.subr.mxu0 0.0
    %2835 = vmatpush1.xpose.msra.mxu0 0.0
    %2836 = vmatprep.subr.mxu0 0.0
    %2837 = vmatpush1.xpose.msra.mxu0 0.0
    %2838 = vmatprep.subr.mxu0 0.0
    %2839 = vmatpush1.xpose.msra.mxu0 0.0
    %2840 = vmatprep.subr.mxu0 0.0
    %2841 = vmatpush1.xpose.msra.mxu0 0.0
    %2842 = vmatprep.subr.mxu0 0.0
    %2843 = vmatpush1.xpose.msra.mxu0 0.0
    %2844 = vmatprep.subr.mxu0 0.0
    %2845 = vmatpush1.xpose.msra.mxu0 0.0
    %2846 = vmatprep.subr.mxu0 0.0
    %2847 = vmatpush1.xpose.msra.mxu0 0.0
    %2848 = vmatprep.subr.mxu0 0.0
    %2849 = vmatpush1.xpose.msra.mxu0 0.0
    %2850 = vmatprep.subr.mxu0 0.0
    %2851 = vmatpush1.xpose.msra.mxu0 0.0
    %2852 = vmatprep.subr.mxu0 0.0
    %2853 = vmatpush1.xpose.msra.mxu0 0.0
    %2854 = vmatprep.subr.mxu0 0.0
    %2855 = vmatpush1.xpose.msra.mxu0 0.0
    %2856 = vmatprep.mubr.f32.mxu0 0.0
    %2857 = vmatmul.mubr.f32.gmra.mrb[0].mxu0 %v2788
    %v2858 = vpop.f32.mrb[0].mxu0
    %v2859 = vadd.f32 0.0, %v2858
    %v2860 = vpop.f32.mrb[0].mxu0
    %2861 = vdwg.mxu0
    %2862 = vrot.lane.b32.xlu0 %v1725, 104
    %v2863 = vpop.permute.xlu0 %2862
    %2864 = vrot.lane.b32.xlu0 %v1789, 104
    %v2865 = vpop.permute.xlu0 %2864
    %v2866 = vsel %vm194, %v2863, 0
    %v2868 = vsel %vm194, %v2865, 0
    %2870 = vmatprep.subr.mxu0 0.0
    %2871 = vmatpush1.xpose.msra.mxu0 %v2868
    %2872 = vmatprep.subr.mxu0 0.0
    %2873 = vmatpush1.xpose.msra.mxu0 0.0
    %2874 = vmatprep.subr.mxu0 0.0
    %2875 = vmatpush1.xpose.msra.mxu0 0.0
    %2876 = vmatprep.subr.mxu0 0.0
    %2877 = vmatpush1.xpose.msra.mxu0 0.0
    %2878 = vmatprep.subr.mxu0 0.0
    %2879 = vmatpush1.xpose.msra.mxu0 0.0
    %2880 = vmatprep.subr.mxu0 0.0
    %2881 = vmatpush1.xpose.msra.mxu0 0.0
    %2882 = vmatprep.subr.mxu0 0.0
    %2883 = vmatpush1.xpose.msra.mxu0 0.0
    %2884 = vmatprep.subr.mxu0 0.0
    %2885 = vmatpush1.xpose.msra.mxu0 0.0
    %2886 = vmatprep.subr.mxu0 0.0
    %2887 = vmatpush1.xpose.msra.mxu0 0.0
    %2888 = vmatprep.subr.mxu0 0.0
    %2889 = vmatpush1.xpose.msra.mxu0 0.0
    %2890 = vmatprep.subr.mxu0 0.0
    %2891 = vmatpush1.xpose.msra.mxu0 0.0
    %2892 = vmatprep.subr.mxu0 0.0
    %2893 = vmatpush1.xpose.msra.mxu0 0.0
    %2894 = vmatprep.subr.mxu0 0.0
    %2895 = vmatpush1.xpose.msra.mxu0 0.0
    %2896 = vmatprep.subr.mxu0 0.0
    %2897 = vmatpush1.xpose.msra.mxu0 0.0
    %2898 = vmatprep.subr.mxu0 0.0
    %2899 = vmatpush1.xpose.msra.mxu0 0.0
    %2900 = vmatprep.subr.mxu0 0.0
    %2901 = vmatpush1.xpose.msra.mxu0 0.0
    %2902 = vmatprep.subr.mxu0 0.0
    %2903 = vmatpush1.xpose.msra.mxu0 0.0
    %2904 = vmatprep.subr.mxu0 0.0
    %2905 = vmatpush1.xpose.msra.mxu0 0.0
    %2906 = vmatprep.subr.mxu0 0.0
    %2907 = vmatpush1.xpose.msra.mxu0 0.0
    %2908 = vmatprep.subr.mxu0 0.0
    %2909 = vmatpush1.xpose.msra.mxu0 0.0
    %2910 = vmatprep.subr.mxu0 0.0
    %2911 = vmatpush1.xpose.msra.mxu0 0.0
    %2912 = vmatprep.subr.mxu0 0.0
    %2913 = vmatpush1.xpose.msra.mxu0 0.0
    %2914 = vmatprep.subr.mxu0 0.0
    %2915 = vmatpush1.xpose.msra.mxu0 0.0
    %2916 = vmatprep.subr.mxu0 0.0
    %2917 = vmatpush1.xpose.msra.mxu0 0.0
    %2918 = vmatprep.subr.mxu0 0.0
    %2919 = vmatpush1.xpose.msra.mxu0 0.0
    %2920 = vmatprep.subr.mxu0 0.0
    %2921 = vmatpush1.xpose.msra.mxu0 0.0
    %2922 = vmatprep.subr.mxu0 0.0
    %2923 = vmatpush1.xpose.msra.mxu0 0.0
    %2924 = vmatprep.subr.mxu0 0.0
    %2925 = vmatpush1.xpose.msra.mxu0 0.0
    %2926 = vmatprep.subr.mxu0 0.0
    %2927 = vmatpush1.xpose.msra.mxu0 0.0
    %2928 = vmatprep.subr.mxu0 0.0
    %2929 = vmatpush1.xpose.msra.mxu0 0.0
    %2930 = vmatprep.subr.mxu0 0.0
    %2931 = vmatpush1.xpose.msra.mxu0 0.0
    %2932 = vmatprep.subr.mxu0 0.0
    %2933 = vmatpush1.xpose.msra.mxu0 0.0
    %2934 = vmatprep.mubr.f32.mxu0 0.0
    %2935 = vmatmul.mubr.f32.gmra.mrb[0].mxu0 %v2866
    %v2936 = vpop.f32.mrb[0].mxu0
    %v2937 = vadd.f32 0.0, %v2936
    %v2938 = vpop.f32.mrb[0].mxu0
    %2939 = vdwg.mxu0
    %v2940 = vadd.f32 %v2859, %v77
    %v2941 = vadd.f32 %v2937, %v81
    %v2942 = vsel %vm194, %v2940, -inf
    %2943 = vmax.xlane.f32.xlu0 %v2942
    %v2944 = vpop.xlane.xlu0 %2943
    %v2945 = vsel %vm194, %v2941, -inf
    %2946 = vmax.xlane.f32.xlu0 %v2945
    %v2947 = vpop.xlane.xlu0 %2946
    %v2948 = vsub.f32 %v2940, %v2944
    %v2949 = vsub.f32 %v2941, %v2947
    %v2950 = vmul.f32 %v2948, 1.442695
    %v2951 = vpow.pop %v2950
    %v2952 = vmul.f32 %v2949, 1.442695
    %v2953 = vpow.pop %v2952
    %v2954 = vsel %vm194, %v2951, 0.0
    %2955 = vadd.xlane.f32.xlu0 %v2954
    %v2956 = vpop.xlane.xlu0 %2955
    %v2957 = vsel %vm194, %v2953, 0.0
    %2958 = vadd.xlane.f32.xlu0 %v2957
    %v2959 = vpop.xlane.xlu0 %2958
    %v2960 = vrcp.pop %v2956
    %v2961 = vrcp.pop %v2959
    %2962 = vrot.lane.b32.xlu0 %v1786, 72
    %v2963 = vpop.permute.xlu0 %2962
    %v2966 = vsel %vm194, %v2951, 0
    %2968 = vmatprep.subr.mxu0 0.0
    %2969 = vmatpush1.msra.mxu0 %v2963
    %2970 = vmatprep.subr.mxu0 0.0
    %2971 = vmatpush1.msra.mxu0 0.0
    %2972 = vmatprep.subr.mxu0 0.0
    %2973 = vmatpush1.msra.mxu0 0.0
    %2974 = vmatprep.subr.mxu0 0.0
    %2975 = vmatpush1.msra.mxu0 0.0
    %2976 = vmatprep.subr.mxu0 0.0
    %2977 = vmatpush1.msra.mxu0 0.0
    %2978 = vmatprep.subr.mxu0 0.0
    %2979 = vmatpush1.msra.mxu0 0.0
    %2980 = vmatprep.subr.mxu0 0.0
    %2981 = vmatpush1.msra.mxu0 0.0
    %2982 = vmatprep.subr.mxu0 0.0
    %2983 = vmatpush1.msra.mxu0 0.0
    %2984 = vmatprep.subr.mxu0 0.0
    %2985 = vmatpush1.msra.mxu0 0.0
    %2986 = vmatprep.subr.mxu0 0.0
    %2987 = vmatpush1.msra.mxu0 0.0
    %2988 = vmatprep.subr.mxu0 0.0
    %2989 = vmatpush1.msra.mxu0 0.0
    %2990 = vmatprep.subr.mxu0 0.0
    %2991 = vmatpush1.msra.mxu0 0.0
    %2992 = vmatprep.subr.mxu0 0.0
    %2993 = vmatpush1.msra.mxu0 0.0
    %2994 = vmatprep.subr.mxu0 0.0
    %2995 = vmatpush1.msra.mxu0 0.0
    %2996 = vmatprep.subr.mxu0 0.0
    %2997 = vmatpush1.msra.mxu0 0.0
    %2998 = vmatprep.subr.mxu0 0.0
    %2999 = vmatpush1.msra.mxu0 0.0
    %3000 = vmatprep.subr.mxu0 0.0
    %3001 = vmatpush1.msra.mxu0 0.0
    %3002 = vmatprep.subr.mxu0 0.0
    %3003 = vmatpush1.msra.mxu0 0.0
    %3004 = vmatprep.subr.mxu0 0.0
    %3005 = vmatpush1.msra.mxu0 0.0
    %3006 = vmatprep.subr.mxu0 0.0
    %3007 = vmatpush1.msra.mxu0 0.0
    %3008 = vmatprep.subr.mxu0 0.0
    %3009 = vmatpush1.msra.mxu0 0.0
    %3010 = vmatprep.subr.mxu0 0.0
    %3011 = vmatpush1.msra.mxu0 0.0
    %3012 = vmatprep.subr.mxu0 0.0
    %3013 = vmatpush1.msra.mxu0 0.0
    %3014 = vmatprep.subr.mxu0 0.0
    %3015 = vmatpush1.msra.mxu0 0.0
    %3016 = vmatprep.subr.mxu0 0.0
    %3017 = vmatpush1.msra.mxu0 0.0
    %3018 = vmatprep.subr.mxu0 0.0
    %3019 = vmatpush1.msra.mxu0 0.0
    %3020 = vmatprep.subr.mxu0 0.0
    %3021 = vmatpush1.msra.mxu0 0.0
    %3022 = vmatprep.subr.mxu0 0.0
    %3023 = vmatpush1.msra.mxu0 0.0
    %3024 = vmatprep.subr.mxu0 0.0
    %3025 = vmatpush1.msra.mxu0 0.0
    %3026 = vmatprep.subr.mxu0 0.0
    %3027 = vmatpush1.msra.mxu0 0.0
    %3028 = vmatprep.subr.mxu0 0.0
    %3029 = vmatpush1.msra.mxu0 0.0
    %3030 = vmatprep.subr.mxu0 0.0
    %3031 = vmatpush1.msra.mxu0 0.0
    %3032 = vmatprep.mubr.f32.mxu0 0.0
    %3033 = vmatmul.mubr.f32.gmra.mrb[0].mxu0 %v2966
    %v3034 = vpop.f32.mrb[0].mxu0
    %v3035 = vadd.f32 0.0, %v3034
    %v3036 = vpop.f32.mrb[0].mxu0
    %3037 = vdwg.mxu0
    %3038 = vrot.lane.b32.xlu0 %v1789, 72
    %v3039 = vpop.permute.xlu0 %3038
    %v3042 = vsel %vm194, %v2953, 0
    %3044 = vmatprep.subr.mxu0 0.0
    %3045 = vmatpush1.msra.mxu0 %v3039
    %3046 = vmatprep.subr.mxu0 0.0
    %3047 = vmatpush1.msra.mxu0 0.0
    %3048 = vmatprep.subr.mxu0 0.0
    %3049 = vmatpush1.msra.mxu0 0.0
    %3050 = vmatprep.subr.mxu0 0.0
    %3051 = vmatpush1.msra.mxu0 0.0
    %3052 = vmatprep.subr.mxu0 0.0
    %3053 = vmatpush1.msra.mxu0 0.0
    %3054 = vmatprep.subr.mxu0 0.0
    %3055 = vmatpush1.msra.mxu0 0.0
    %3056 = vmatprep.subr.mxu0 0.0
    %3057 = vmatpush1.msra.mxu0 0.0
    %3058 = vmatprep.subr.mxu0 0.0
    %3059 = vmatpush1.msra.mxu0 0.0
    %3060 = vmatprep.subr.mxu0 0.0
    %3061 = vmatpush1.msra.mxu0 0.0
    %3062 = vmatprep.subr.mxu0 0.0
    %3063 = vmatpush1.msra.mxu0 0.0
    %3064 = vmatprep.subr.mxu0 0.0
    %3065 = vmatpush1.msra.mxu0 0.0
    %3066 = vmatprep.subr.mxu0 0.0
    %3067 = vmatpush1.msra.mxu0 0.0
    %3068 = vmatprep.subr.mxu0 0.0
    %3069 = vmatpush1.msra.mxu0 0.0
    %3070 = vmatprep.subr.mxu0 0.0
    %3071 = vmatpush1.msra.mxu0 0.0
    %3072 = vmatprep.subr.mxu0 0.0
    %3073 = vmatpush1.msra.mxu0 0.0
    %3074 = vmatprep.subr.mxu0 0.0
    %3075 = vmatpush1.msra.mxu0 0.0
    %3076 = vmatprep.subr.mxu0 0.0
    %3077 = vmatpush1.msra.mxu0 0.0
    %3078 = vmatprep.subr.mxu0 0.0
    %3079 = vmatpush1.msra.mxu0 0.0
    %3080 = vmatprep.subr.mxu0 0.0
    %3081 = vmatpush1.msra.mxu0 0.0
    %3082 = vmatprep.subr.mxu0 0.0
    %3083 = vmatpush1.msra.mxu0 0.0
    %3084 = vmatprep.subr.mxu0 0.0
    %3085 = vmatpush1.msra.mxu0 0.0
    %3086 = vmatprep.subr.mxu0 0.0
    %3087 = vmatpush1.msra.mxu0 0.0
    %3088 = vmatprep.subr.mxu0 0.0
    %3089 = vmatpush1.msra.mxu0 0.0
    %3090 = vmatprep.subr.mxu0 0.0
    %3091 = vmatpush1.msra.mxu0 0.0
    %3092 = vmatprep.subr.mxu0 0.0
    %3093 = vmatpush1.msra.mxu0 0.0
    %3094 = vmatprep.subr.mxu0 0.0
    %3095 = vmatpush1.msra.mxu0 0.0
    %3096 = vmatprep.subr.mxu0 0.0
    %3097 = vmatpush1.msra.mxu0 0.0
    %3098 = vmatprep.subr.mxu0 0.0
    %3099 = vmatpush1.msra.mxu0 0.0
    %3100 = vmatprep.subr.mxu0 0.0
    %3101 = vmatpush1.msra.mxu0 0.0
    %3102 = vmatprep.subr.mxu0 0.0
    %3103 = vmatpush1.msra.mxu0 0.0
    %3104 = vmatprep.subr.mxu0 0.0
    %3105 = vmatpush1.msra.mxu0 0.0
    %3106 = vmatprep.subr.mxu0 0.0
    %3107 = vmatpush1.msra.mxu0 0.0
    %3108 = vmatprep.mubr.f32.mxu0 0.0
    %3109 = vmatmul.mubr.f32.gmra.mrb[0].mxu0 %v3042
    %v3110 = vpop.f32.mrb[0].mxu0
    %v3111 = vadd.f32 0.0, %v3110
    %v3112 = vpop.f32.mrb[0].mxu0
    %3113 = vdwg.mxu0
    %v3114 = vmul.f32 %v3035, %v2960
    %v3115 = vmul.f32 %v3111, %v2961
    %3118 = vrot.lane.b32.xlu0 %v2450, 8
    %v3119 = vpop.permute.xlu0 %3118
    %3120 = vrot.lane.b32.xlu0 %v2451, 8
    %v3121 = vpop.permute.xlu0 %3120
    %3126 = vrot.lane.b32.xlu0 %v2782, 16
    %v3127 = vpop.permute.xlu0 %3126
    %3128 = vrot.lane.b32.xlu0 %v2783, 16
    %v3129 = vpop.permute.xlu0 %3128
    %3134 = vrot.lane.b32.xlu0 %v3114, 24
    %v3135 = vpop.permute.xlu0 %3134
    %3136 = vrot.lane.b32.xlu0 %v3115, 24
    %v3137 = vpop.permute.xlu0 %3136
    %v3140 = vsel %vm194, %v2118, %v3119
    %v3141 = vsel %vm194, %v2119, %v3121
    %v3142 = vsel %vm1546, %v3140, %v3127
    %v3143 = vsel %vm1546, %v3141, %v3129
    %v3144 = vsel %vm1549, %v3142, %v3135
    %v3145 = vsel %vm1549, %v3143, %v3137
    %s3146 = scalar_lea.vmem [#allocation2], 64
    %v3147 = vld [vmem:[%s3146] sm:$0xf]
    %v3148 = vld [vmem:[%s3146 + $0x4] sm:$0xf]
    %v3149 = vld [vmem:[%s3146 + $0x8] sm:$0xf]
    %v3150 = vld [vmem:[%s3146 + $0xc] sm:$0xf]
    %v3151 = vpack.c.bf16 %v3145, %v3144
    %v3152 = vlaneseq
    %v3153 = vshrl.u32 %v3152, 7
    %v3154 = vsub.s32 0, %v3153
    %v3155 = vrot.slane %v43, %v3154
    %v3160 = vunpack.c.l.b16 %v3147
    %v3161 = vunpack.c.l.b16 %v3148
    %v3162 = vunpack.c.l.b16 %v3149
    %v3163 = vunpack.c.l.b16 %v3150
    %v3164 = vpack.c.b16 %v3161, %v3160
    %v3165 = vpack.c.b16 %v3163, %v3162
    %v3169 = vsel %vm84, %v3151, 0
    %3171 = vmatprep.subr.bf16.mxu0 0
    %3172 = vmatpush1.bf16.msra.mxu0 %v3164
    %3173 = vmatprep.subr.bf16.mxu0 0
    %3174 = vmatpush1.bf16.msra.mxu0 %v3165
    %3175 = vmatprep.subr.bf16.mxu0 0
    %3176 = vmatpush1.bf16.msra.mxu0 0
    %3177 = vmatprep.subr.bf16.mxu0 0
    %3178 = vmatpush1.bf16.msra.mxu0 0
    %3179 = vmatprep.subr.bf16.mxu0 0
    %3180 = vmatpush1.bf16.msra.mxu0 0
    %3181 = vmatprep.subr.bf16.mxu0 0
    %3182 = vmatpush1.bf16.msra.mxu0 0
    %3183 = vmatprep.subr.bf16.mxu0 0
    %3184 = vmatpush1.bf16.msra.mxu0 0
    %3185 = vmatprep.subr.bf16.mxu0 0
    %3186 = vmatpush1.bf16.msra.mxu0 0
    %3187 = vmatprep.subr.bf16.mxu0 0
    %3188 = vmatpush1.bf16.msra.mxu0 0
    %3189 = vmatprep.subr.bf16.mxu0 0
    %3190 = vmatpush1.bf16.msra.mxu0 0
    %3191 = vmatprep.subr.bf16.mxu0 0
    %3192 = vmatpush1.bf16.msra.mxu0 0
    %3193 = vmatprep.subr.bf16.mxu0 0
    %3194 = vmatpush1.bf16.msra.mxu0 0
    %3195 = vmatprep.subr.bf16.mxu0 0
    %3196 = vmatpush1.bf16.msra.mxu0 0
    %3197 = vmatprep.subr.bf16.mxu0 0
    %3198 = vmatpush1.bf16.msra.mxu0 0
    %3199 = vmatprep.subr.bf16.mxu0 0
    %3200 = vmatpush1.bf16.msra.mxu0 0
    %3201 = vmatprep.subr.bf16.mxu0 0
    %3202 = vmatpush1.bf16.msra.mxu0 0
    %3203 = vmatprep.mubr.bf16.mxu0 0
    %3204 = vmatmul.mubr.bf16.gmra.mrb[0].mxu0 %v3169
    %v3205 = vpop.f32.mrb[0].mxu0
    %v3206 = vadd.f32 %v3155, %v3205
    %v3207 = vpop.f32.mrb[0].mxu0
    %v3208 = vpop.f32.mrb[0].mxu0
    %v3209 = vadd.f32 %v3155, %v3208
    %v3210 = vpop.f32.mrb[0].mxu0
    %3211 = vdwg.mxu0
    %v3212 = vadd.f32 %v1618, %v3206
    %v3213 = vadd.f32 %v1619, %v3209
    %v3214 = vsel %vm84, %v3212, 0.0
    %3215 = vadd.xlane.f32.xlu0 %v3214
    %v3216 = vpop.xlane.xlu0 %3215
    %v3217 = vsel %vm84, %v3213, 0.0
    %3218 = vadd.xlane.f32.xlu0 %v3217
    %v3219 = vpop.xlane.xlu0 %3218
    %v3220 = vmul.f32 %v3216, %v91
    %v3221 = vmul.f32 %v3219, %v91
    %v3222 = vsub.f32 %v3212, %v3220
    %v3223 = vsub.f32 %v3213, %v3221
    %v3224 = vmul.f32 %v3222, %v3222
    %v3225 = vmul.f32 %v3223, %v3223
    %v3226 = vsel %vm84, %v3224, 0.0
    %3227 = vadd.xlane.f32.xlu0 %v3226
    %v3228 = vpop.xlane.xlu0 %3227
    %v3229 = vsel %vm84, %v3225, 0.0
    %3230 = vadd.xlane.f32.xlu0 %v3229
    %v3231 = vpop.xlane.xlu0 %3230
    %v3232 = vmul.f32 %v3228, %v91
    %v3233 = vmul.f32 %v3231, %v91
    %v3234 = vadd.f32 %v3232, 1e-05
    %v3235 = vadd.f32 %v3233, 1e-05
    %v3236 = vrsqrt.pop %v3234
    %v3237 = vrsqrt.pop %v3235
    %v3238 = vmul.f32 %v3222, %v3236
    %v3239 = vmul.f32 %v3223, %v3237
    %v3240 = vlaneseq
    %v3241 = vshrl.u32 %v3240, 7
    %v3242 = vsub.s32 1, %v3241
    %v3243 = vrot.slane %v43, %v3242
    %v3244 = vmul.f32 %v3238, %v3243
    %v3245 = vmul.f32 %v3239, %v3243
    %v3246 = vlaneseq
    %v3247 = vshrl.u32 %v3246, 7
    %v3248 = vsub.s32 2, %v3247
    %v3249 = vrot.slane %v43, %v3248
    %v3250 = vadd.f32 %v3244, %v3249
    %v3251 = vadd.f32 %v3245, %v3249
    %s3252 = scalar_lea.vmem [#allocation2], 80
    %v3253 = vld [vmem:[%s3252] sm:$0xf]
    %v3254 = vld [vmem:[%s3252 + $0x4] sm:$0xf]
    %v3255 = vld [vmem:[%s3252 + $0x8] sm:$0xf]
    %v3256 = vld [vmem:[%s3252 + $0xc] sm:$0xf]
    %v3257 = vpack.c.bf16 %v3251, %v3250
    %v3258 = vlaneseq
    %v3259 = vshrl.u32 %v3258, 7
    %v3260 = vsub.s32 3, %v3259
    %v3261 = vrot.slane %v43, %v3260
    %v3266 = vunpack.c.l.b16 %v3253
    %v3267 = vunpack.c.l.b16 %v3254
    %v3268 = vunpack.c.l.b16 %v3255
    %v3269 = vunpack.c.l.b16 %v3256
    %v3270 = vpack.c.b16 %v3267, %v3266
    %v3271 = vpack.c.b16 %v3269, %v3268
    %v3275 = vsel %vm84, %v3257, 0
    %3277 = vmatprep.subr.bf16.mxu0 0
    %3278 = vmatpush1.bf16.msra.mxu0 %v3270
    %3279 = vmatprep.subr.bf16.mxu0 0
    %3280 = vmatpush1.bf16.msra.mxu0 %v3271
    %3281 = vmatprep.subr.bf16.mxu0 0
    %3282 = vmatpush1.bf16.msra.mxu0 0
    %3283 = vmatprep.subr.bf16.mxu0 0
    %3284 = vmatpush1.bf16.msra.mxu0 0
    %3285 = vmatprep.subr.bf16.mxu0 0
    %3286 = vmatpush1.bf16.msra.mxu0 0
    %3287 = vmatprep.subr.bf16.mxu0 0
    %3288 = vmatpush1.bf16.msra.mxu0 0
    %3289 = vmatprep.subr.bf16.mxu0 0
    %3290 = vmatpush1.bf16.msra.mxu0 0
    %3291 = vmatprep.subr.bf16.mxu0 0
    %3292 = vmatpush1.bf16.msra.mxu0 0
    %3293 = vmatprep.subr.bf16.mxu0 0
    %3294 = vmatpush1.bf16.msra.mxu0 0
    %3295 = vmatprep.subr.bf16.mxu0 0
    %3296 = vmatpush1.bf16.msra.mxu0 0
    %3297 = vmatprep.subr.bf16.mxu0 0
    %3298 = vmatpush1.bf16.msra.mxu0 0
    %3299 = vmatprep.subr.bf16.mxu0 0
    %3300 = vmatpush1.bf16.msra.mxu0 0
    %3301 = vmatprep.subr.bf16.mxu0 0
    %3302 = vmatpush1.bf16.msra.mxu0 0
    %3303 = vmatprep.subr.bf16.mxu0 0
    %3304 = vmatpush1.bf16.msra.mxu0 0
    %3305 = vmatprep.subr.bf16.mxu0 0
    %3306 = vmatpush1.bf16.msra.mxu0 0
    %3307 = vmatprep.subr.bf16.mxu0 0
    %3308 = vmatpush1.bf16.msra.mxu0 0
    %3309 = vmatprep.mubr.bf16.mxu0 0
    %3310 = vmatmul.mubr.bf16.gmra.mrb[0].mxu0 %v3275
    %v3311 = vpop.f32.mrb[0].mxu0
    %v3312 = vadd.f32 %v3261, %v3311
    %v3313 = vpop.f32.mrb[0].mxu0
    %v3314 = vpop.f32.mrb[0].mxu0
    %v3315 = vadd.f32 %v3261, %v3314
    %v3316 = vpop.f32.mrb[0].mxu0
    %3317 = vdwg.mxu0
    %v3318 = vmax.f32 %v3312, 0.0
    %v3319 = vmax.f32 %v3315, 0.0
    %v3320 = vld [vmem:[%s5] sm:$0xf]
    %v3321 = vld [vmem:[%s5 + $0x4] sm:$0xf]
    %v3322 = vld [vmem:[%s5 + $0x8] sm:$0xf]
    %v3323 = vld [vmem:[%s5 + $0xc] sm:$0xf]
    %v3324 = vld [vmem:[%s5 + $0x10] sm:$0xf]
    %v3325 = vld [vmem:[%s5 + $0x14] sm:$0xf]
    %v3326 = vld [vmem:[%s5 + $0x18] sm:$0xf]
    %v3327 = vld [vmem:[%s5 + $0x1c] sm:$0xf]
    %v3328 = vld [vmem:[%s5 + $0x20] sm:$0xf]
    %v3329 = vld [vmem:[%s5 + $0x24] sm:$0xf]
    %v3330 = vld [vmem:[%s5 + $0x28] sm:$0xf]
    %v3331 = vld [vmem:[%s5 + $0x2c] sm:$0xf]
    %v3332 = vld [vmem:[%s5 + $0x30] sm:$0xf]
    %v3333 = vld [vmem:[%s5 + $0x34] sm:$0xf]
    %v3334 = vld [vmem:[%s5 + $0x38] sm:$0xf]
    %v3335 = vld [vmem:[%s5 + $0x3c] sm:$0xf]
    %v3336 = vpack.c.bf16 %v3319, %v3318
    %v3353 = vunpack.c.l.b16 %v3320
    %v3354 = vunpack.c.l.b16 %v3321
    %v3355 = vunpack.c.l.b16 %v3322
    %v3356 = vunpack.c.l.b16 %v3323
    %v3357 = vunpack.c.l.b16 %v3324
    %v3358 = vunpack.c.l.b16 %v3325
    %v3359 = vunpack.c.l.b16 %v3326
    %v3360 = vunpack.c.l.b16 %v3327
    %v3361 = vunpack.c.l.b16 %v3328
    %v3362 = vunpack.c.l.b16 %v3329
    %v3363 = vunpack.c.l.b16 %v3330
    %v3364 = vunpack.c.l.b16 %v3331
    %v3365 = vunpack.c.l.b16 %v3332
    %v3366 = vunpack.c.l.b16 %v3333
    %v3367 = vunpack.c.l.b16 %v3334
    %v3368 = vunpack.c.l.b16 %v3335
    %v3369 = vpack.c.b16 %v3354, %v3353
    %v3370 = vpack.c.b16 %v3356, %v3355
    %v3371 = vpack.c.b16 %v3358, %v3357
    %v3372 = vpack.c.b16 %v3360, %v3359
    %v3373 = vpack.c.b16 %v3362, %v3361
    %v3374 = vpack.c.b16 %v3364, %v3363
    %v3375 = vpack.c.b16 %v3366, %v3365
    %v3376 = vpack.c.b16 %v3368, %v3367
    %3385 = vmatprep.subr.bf16.mxu0 0
    %3386 = vmatpush1.bf16.msra.mxu0 %v3369
    %3387 = vmatprep.subr.bf16.mxu0 0
    %3388 = vmatpush1.bf16.msra.mxu0 %v3370
    %3389 = vmatprep.subr.bf16.mxu0 0
    %3390 = vmatpush1.bf16.msra.mxu0 %v3371
    %3391 = vmatprep.subr.bf16.mxu0 0
    %3392 = vmatpush1.bf16.msra.mxu0 %v3372
    %3393 = vmatprep.subr.bf16.mxu0 0
    %3394 = vmatpush1.bf16.msra.mxu0 %v3373
    %3395 = vmatprep.subr.bf16.mxu0 0
    %3396 = vmatpush1.bf16.msra.mxu0 %v3374
    %3397 = vmatprep.subr.bf16.mxu0 0
    %3398 = vmatpush1.bf16.msra.mxu0 %v3375
    %3399 = vmatprep.subr.bf16.mxu0 0
    %3400 = vmatpush1.bf16.msra.mxu0 %v3376
    %3401 = vmatprep.subr.bf16.mxu0 0
    %3402 = vmatpush1.bf16.msra.mxu0 0
    %3403 = vmatprep.subr.bf16.mxu0 0
    %3404 = vmatpush1.bf16.msra.mxu0 0
    %3405 = vmatprep.subr.bf16.mxu0 0
    %3406 = vmatpush1.bf16.msra.mxu0 0
    %3407 = vmatprep.subr.bf16.mxu0 0
    %3408 = vmatpush1.bf16.msra.mxu0 0
    %3409 = vmatprep.subr.bf16.mxu0 0
    %3410 = vmatpush1.bf16.msra.mxu0 0
    %3411 = vmatprep.subr.bf16.mxu0 0
    %3412 = vmatpush1.bf16.msra.mxu0 0
    %3413 = vmatprep.subr.bf16.mxu0 0
    %3414 = vmatpush1.bf16.msra.mxu0 0
    %3415 = vmatprep.subr.bf16.mxu0 0
    %3416 = vmatpush1.bf16.msra.mxu0 0
    %3417 = vmatprep.mubr.bf16.mxu0 0
    %3418 = vmatmul.mubr.bf16.gmra.mrb[0].mxu0 %v3336
    %v3419 = vpop.f32.mrb[0].mxu0
    %v3420 = vadd.f32 0.0, %v3419
    %v3421 = vpop.f32.mrb[0].mxu0
    %v3422 = vpop.f32.mrb[0].mxu0
    %v3423 = vadd.f32 0.0, %v3422
    %v3424 = vpop.f32.mrb[0].mxu0
    %3425 = vdwg.mxu0
    %v3426 = vadd.f32 %v3212, %v3420
    %v3427 = vadd.f32 %v3213, %v3423
    %v3428 = vlaneseq
    %v3429 = vshrl.u32 %v3428, 7
    %v3430 = vsub.s32 4, %v3429
    %v3431 = vrot.slane %v43, %v3430
    %v3432 = vadd.f32 %v3426, %v3431
    %v3433 = vadd.f32 %v3427, %v3431
    %3434 = vst.msk [vmem:[#allocation5] sm:$0xff] %vm84, %v3432
    %3435 = vst.msk [vmem:[#allocation5 + $0x8] sm:$0xff] %vm84, %v3433
    // Predicated region
    $region34: #{tpu_custom_call.1} parent=1 // pred_check
      _
    $region35: #{tpu_custom_call.1} parent=1 // pred_check_branch
      %3437 = sbr.rel (0) target = $region37
    $region36: #{tpu_custom_call.1} parent=1 // pred_region
      %s3439 = ssub.s32 256, 256
      %3440 = vsyncadd [#allocation4], %s3439
      %s3441 = sshll.u32 [#allocation5], 4
      %s3442 = int_to_ptr.vmem [resolvable:$true] %s3441
      %3447 = dma.vmem_to_hbm [thread:$0]  %s3442, 256, %s7, [#allocation4], 128, 128, 8
    $region37: #{tpu_custom_call.1} parent=1 // pred_fallthru
      _
    // Predicated region
    $region38: #{tpu_custom_call.1} parent=1 // pred_check
      _
    $region39: #{tpu_custom_call.1} parent=1 // pred_check_branch
      %3449 = sbr.rel (0) target = $region41
    $region40: #{tpu_custom_call.1} parent=1 // pred_region
      %3450 = dma.done [#allocation4], 256
    $region41: #{tpu_custom_call.1} parent=1 // pred_fallthru
      _
    %3451 = vsyncpa [#allocation3], 1
    %3452 = vsyncpa [#allocation4], 1

</llo_original>
